<compile_context>
chip_gen: v7x
topology: tpu7x:2x2x1
jax: 0.10.0
libtpu: 0.0.40
codegen_flags: <defaults>
</compile_context>

<pallas_src>
import functools
import math

import jax
import jax.numpy as jnp
from jax import lax
from jax.experimental import pallas as pl
from jax.experimental.pallas import tpu as pltpu

_BIG_NEGATIVE = -100000000.0


def set2vec_kernel(x_ref, wfh_ref, wgr_ref, bg_ref, we_ref, mask_ref,
                   h_out_ref, read_out_ref,
                   *, batch, nf, nf_pad, steps, unroll, attn_dtype):
    x = x_ref[...]                       # [B, N, nf]  f32 (sublane = N: dense for small B)
    wfh = wfh_ref[...]                   # [nf_pad, 5*nf_pad] bf16  (4 gate blocks + q_attn block)
    wgr = wgr_ref[...]                   # [nf, 4*nf_pad]    bf16  (read half of mprev)
    mask_add = mask_ref[...]             # [B, N, 1] f32
    # Loop-invariant broadcasts hoisted (JAX does not CSE broadcast_in_dim, so
    # inside `step` they would be re-emitted every unrolled iteration).
    bias_b = jnp.broadcast_to(bg_ref[...], (batch, 4 * nf_pad))       # [B, 4*nf_pad]
    we_c = we_ref[...].astype(attn_dtype)                             # [1, 1, nf] splat (NOT materialized)

    def step(_, carry):
        # hg_prev = h_{t-1} @ [Wh_i|Wh_f|Wh_g|Wh_o]  (computed at the end of the
        # previous step as part of the fused h dot), read_prev = read_{t-1}.
        hg_prev, h_prev, read_prev, c_prev = carry

        # --- LSTM cell: ONE bf16 MXU dot on the critical path of the gates ---
        gr = jnp.dot(read_prev.astype(jnp.bfloat16), wgr,
                     preferred_element_type=jnp.float32)              # [B, 4*nf_pad]
        gates = hg_prev + gr + bias_b                                  # [B, 4*nf_pad]; pad lanes = 0
        i_g = jax.nn.sigmoid(gates[:, 0 * nf_pad:1 * nf_pad])          # full-lane-width blocks
        f_g = jax.nn.sigmoid(gates[:, 1 * nf_pad:2 * nf_pad])
        g_g = jnp.tanh(gates[:, 2 * nf_pad:3 * nf_pad])
        o_g = jax.nn.sigmoid(gates[:, 3 * nf_pad:4 * nf_pad])
        c = f_g * c_prev + i_g * g_g                                   # [B, nf_pad]; pad stays 0
        h = o_g * jnp.tanh(c)                                          # [B, nf_pad]; pad stays 0

        # --- fused h dot: next step's gate contribution + this step's query ---
        hgq = jnp.dot(h.astype(jnp.bfloat16), wfh,
                      preferred_element_type=jnp.float32)              # [B, 5*nf_pad]
        hg = hgq[:, :4 * nf_pad]                                       # carried to step t+1
        query = hgq[:, 4 * nf_pad:4 * nf_pad + nf]                     # [B, nf]

        # --- attention: broadcast query over nodes (sublanes), energies via VPU
        #     multiply + lane reduction (no lane-sparse [*,1] MXU matmul) ---
        e_in = jnp.tanh((x + query[:, None, :]).astype(attn_dtype))    # [B, N, nf]
        energies = (jnp.sum((e_in * we_c).astype(jnp.float32),
                            axis=-1, keepdims=True) + mask_add)        # [B, N, 1]
        # softmax over ALL B*N entries, exactly like F.softmax(..., dim=0)
        emax = jnp.max(energies)                                       # scalar
        p = jnp.exp(energies - emax)                                   # [B, N, 1]
        tot = jnp.sum(p)                                               # scalar
        inv = pl.reciprocal(jnp.broadcast_to(tot, (1, 1)), approx=True)  # EUP
        read = jnp.sum(p * x, axis=1) * inv                            # [B, nf]
        return (hg, h, read, c)

    hg0 = jnp.zeros((batch, 4 * nf_pad), jnp.float32)   # h_0 = 0 -> zero gate contribution
    h0 = jnp.zeros((batch, nf_pad), jnp.float32)
    r0 = jnp.zeros((batch, nf), jnp.float32)
    c0 = jnp.zeros((batch, nf_pad), jnp.float32)
    _, hF, rF, _ = lax.fori_loop(0, steps, step, (hg0, h0, r0, c0), unroll=unroll)
    h_out_ref[...] = hF[:, :nf]
    read_out_ref[...] = rF


def _fuse_params(params, nf, nf_pad):
    """Pack the gate + q_attn weights into lane-padded fused bf16 matrices.

    h-side fused weight wfh: [nf_pad, 5*nf_pad]; block k in (i,f,g,o) occupies
    columns [k*nf_pad, k*nf_pad+nf); block 4 is q_attn.weight.T. Rows >= nf and
    all pad columns are zero. Read-side wgr: [nf, 4*nf_pad] with the same layout.
    """
    wfh = jnp.zeros((nf_pad, 5 * nf_pad), jnp.float32)
    wgr = jnp.zeros((nf, 4 * nf_pad), jnp.float32)
    bg = jnp.zeros((1, 4 * nf_pad), jnp.float32)
    for k, gate in enumerate(("i", "f", "g", "o")):
        w = params["w_h" + gate].astype(jnp.float32)     # [2*nf, nf]
        b = params["b_h" + gate].astype(jnp.float32)     # [1, nf]
        col = slice(k * nf_pad, k * nf_pad + nf)
        wfh = wfh.at[:nf, col].set(w[:nf, :])            # contracts with h
        wgr = wgr.at[:, col].set(w[nf:, :])              # contracts with read
        bg = bg.at[:, col].set(b)
    wfh = wfh.at[:nf, 4 * nf_pad:4 * nf_pad + nf].set(params["w_q"].T.astype(jnp.float32))
    # bf16 MXU operands: native on v5e/v6e/v7x, ~3x fewer MXU passes per dot and
    # half the weight VMEM footprint; accumulation stays f32 in-kernel.
    return wfh.astype(jnp.bfloat16), wgr.astype(jnp.bfloat16), bg


def _vmem_limit_bytes(batch, n_nodes, nf, nf_pad):
    """Size the scoped VMEM limit from the actual footprint (v5e default ~16 MiB;
    v7x physical ceiling is 64 MiB per TC — budget bf16 x / streaming at huge N)."""
    x_b = batch * n_nodes * nf * 4
    w_b = nf_pad * 5 * nf_pad * 2 + nf * 4 * nf_pad * 2
    misc = 4 * nf_pad * 4 + nf * 4 + batch * n_nodes * 4 + 4 * batch * nf * 4
    scratch = 8 * batch * n_nodes * nf * 4 + (2 << 20)   # live [B,N,nf] temporaries + slack
    est = 2 * (x_b + w_b + misc + scratch)
    return int(min(128 << 20, max(32 << 20, est)))


def set2vec_forward(input_set, params, mask=None, time_steps=8,
                    attn_dtype=jnp.float32, unroll=None):
    """input_set: [B, N, nf] float32, mask: [B, N] bool or None. Returns m [B, 2*nf].

    attn_dtype=jnp.bfloat16 is recommended on v6e/v7x (bf16 EUP/VPU for the big
    tanh block); keep f32 on v5e. unroll: sweep 4/8/16 for the production
    time_steps=100 case.
    """
    B, N, nf = input_set.shape
    nf_pad = ((nf + 127) // 128) * 128              # 128-aligned lane stride per gate block

    x = input_set.astype(jnp.float32)               # [B, N, nf]: no wrapper transpose
    wfh, wgr, bg = _fuse_params(params, nf, nf_pad)
    we3 = params["w_e"].astype(jnp.float32).reshape(1, 1, nf)

    if mask is None:
        mask_add = jnp.zeros((B, N, 1), jnp.float32)
    else:
        mask_add = ((1.0 - mask.astype(jnp.float32)) * _BIG_NEGATIVE)[:, :, None]

    if unroll is None:
        unroll = True if time_steps <= 16 else 8

    kernel = functools.partial(set2vec_kernel, batch=B, nf=nf, nf_pad=nf_pad,
                               steps=time_steps, unroll=unroll, attn_dtype=attn_dtype)
    vmem = pl.BlockSpec(memory_space=pltpu.MemorySpace.VMEM)
    h_out, read_out = pl.pallas_call(
        kernel,
        out_shape=(jax.ShapeDtypeStruct((B, nf), jnp.float32),
                   jax.ShapeDtypeStruct((B, nf), jnp.float32)),
        in_specs=[vmem] * 6,
        out_specs=(vmem, vmem),
        compiler_params=pltpu.CompilerParams(
            vmem_limit_bytes=_vmem_limit_bytes(B, N, nf, nf_pad)),
    )(x, wfh, wgr, bg, we3, mask_add)
    # m = cat([h, read], dim=1): one tiny XLA concat outside the serial hot loop.
    return jnp.concatenate([h_out, read_out], axis=1)


# ----------------------------- references ------------------------------------

def set2vec_ref(input_set, params, mask=None, time_steps=8):
    """Pure-JAX f32 mirror of the PyTorch forward (semantic reference)."""
    B, N, nf = input_set.shape
    mprev = jnp.zeros((B, 2 * nf), jnp.float32)
    cprev = jnp.zeros((B, nf), jnp.float32)
    mask_add = None
    if mask is not None:
        mask_add = ((1.0 - mask.astype(jnp.float32)) * _BIG_NEGATIVE).reshape(-1, 1)
    m = None
    for _ in range(time_steps):
        i = jax.nn.sigmoid(mprev @ params["w_hi"] + params["b_hi"])
        f = jax.nn.sigmoid(mprev @ params["w_hf"] + params["b_hf"])
        g = jnp.tanh(mprev @ params["w_hg"] + params["b_hg"])
        o = jax.nn.sigmoid(mprev @ params["w_ho"] + params["b_ho"])
        c = f * cprev + i * g
        h = o * jnp.tanh(c)
        query = (h @ params["w_q"].T)[:, None, :]
        energies = jnp.tanh(query + input_set).reshape(-1, nf) @ params["w_e"].T
        if mask_add is not None:
            energies = energies + mask_add
        att = jax.nn.softmax(energies, axis=0).reshape(B, N, 1)
        read = jnp.sum(att * input_set, axis=1)
        m = jnp.concatenate([h, read], axis=1)
        mprev, cprev = m, c
    return m


def set2vec_ref_matched(input_set, params, mask=None, time_steps=8):
    """Reference mirroring the kernel's numerics (bf16 MXU operands, f32 accum)."""
    B, N, nf = input_set.shape
    bf = lambda a: a.astype(jnp.bfloat16)
    wh = {g: bf(params["w_h" + g][:nf, :].astype(jnp.float32)) for g in "ifgo"}
    wr = {g: bf(params["w_h" + g][nf:, :].astype(jnp.float32)) for g in "ifgo"}
    wq = bf(params["w_q"].T.astype(jnp.float32))
    h = jnp.zeros((B, nf), jnp.float32)
    read = jnp.zeros((B, nf), jnp.float32)
    c = jnp.zeros((B, nf), jnp.float32)
    if mask is None:
        mask_add = jnp.zeros((B, N, 1), jnp.float32)
    else:
        mask_add = ((1.0 - mask.astype(jnp.float32)) * _BIG_NEGATIVE)[:, :, None]
    for _ in range(time_steps):
        def gate(g):
            return (jnp.dot(bf(h), wh[g], preferred_element_type=jnp.float32)
                    + jnp.dot(bf(read), wr[g], preferred_element_type=jnp.float32)
                    + params["b_h" + g])
        i = jax.nn.sigmoid(gate("i"))
        f = jax.nn.sigmoid(gate("f"))
        g_ = jnp.tanh(gate("g"))
        o = jax.nn.sigmoid(gate("o"))
        c = f * c + i * g_
        h = o * jnp.tanh(c)
        query = jnp.dot(bf(h), wq, preferred_element_type=jnp.float32)
        e_in = jnp.tanh(input_set + query[:, None, :])
        energies = jnp.sum(e_in * params["w_e"].reshape(1, 1, nf),
                           axis=-1, keepdims=True) + mask_add
        att = jax.nn.softmax(energies.reshape(-1), axis=0).reshape(B, N, 1)
        read = jnp.sum(att * input_set, axis=1)
    return jnp.concatenate([h, read], axis=1)


def init_params(node_features, key):
    nf = 2 * node_features                 # attention / cell dim
    hd = 2 * nf                            # LSTMCellHidden hidden dim
    stdv = 1.0 / math.sqrt(hd)
    ks = jax.random.split(key, 6)
    u = lambda k, shape, s: jax.random.uniform(k, shape, jnp.float32, minval=-s, maxval=s)
    return {
        "w_hi": u(ks[0], (hd, nf), stdv),
        "w_hf": u(ks[1], (hd, nf), stdv),
        "w_hg": u(ks[2], (hd, nf), stdv),
        "w_ho": u(ks[3], (hd, nf), stdv),
        "b_hi": jnp.zeros((1, nf), jnp.float32),
        "b_hf": jnp.zeros((1, nf), jnp.float32),
        "b_hg": jnp.zeros((1, nf), jnp.float32),
        "b_ho": jnp.zeros((1, nf), jnp.float32),
        "w_q": u(ks[4], (nf, nf), 1.0 / math.sqrt(nf)),   # q_attn.weight [out, in]
        "w_e": u(ks[5], (1, nf), 1.0 / math.sqrt(nf)),    # e_attn.weight [out, in]
    }


if __name__ == "__main__":
    node_features = 16              # -> nf = 2*node_features = 32
    B, N = 2, 8
    time_steps = 8                  # module default is 100; kept small for the test

    key = jax.random.PRNGKey(0)
    k_x, k_p = jax.random.split(key)
    params = init_params(node_features, k_p)
    nf = 2 * node_features

    input_set = jax.random.normal(k_x, (B, N, nf), jnp.float32)
    mask = jnp.ones((B, N), jnp.bool_).at[1, 6:].set(False)   # mask out two nodes of batch 1

    out = jax.block_until_ready(
        set2vec_forward(input_set, params, mask=mask, time_steps=time_steps))
    assert out.shape == (B, 2 * nf), out.shape

    # Tight check against a reference with matching (bf16-operand) numerics.
    ref_m = set2vec_ref_matched(input_set, params, mask=mask, time_steps=time_steps)
    err_m = float(jnp.max(jnp.abs(out - ref_m)))
    assert jnp.allclose(out, ref_m, rtol=1e-2, atol=1e-2), err_m
    # Loose semantic sanity check against the pure-f32 reference.
    ref_f = set2vec_ref(input_set, params, mask=mask, time_steps=time_steps)
    err_f = float(jnp.max(jnp.abs(out - ref_f)))
    assert jnp.allclose(out, ref_f, rtol=5e-2, atol=5e-2), err_f

    print("KERNEL_OK")
</pallas_src>

<mosaic_0001>
module attributes {stable_mosaic.version = 11 : i64} {
  func.func @set2vec_kernel(%arg0: memref<2x8x32xf32, #tpu.memory_space<vmem>>, %arg1: memref<128x640xbf16, #tpu.memory_space<vmem>>, %arg2: memref<32x512xbf16, #tpu.memory_space<vmem>>, %arg3: memref<1x512xf32, #tpu.memory_space<vmem>>, %arg4: memref<1x1x32xf32, #tpu.memory_space<vmem>>, %arg5: memref<2x8x1xf32, #tpu.memory_space<vmem>>, %arg6: memref<2x32xf32, #tpu.memory_space<vmem>>, %arg7: memref<2x32xf32, #tpu.memory_space<vmem>>) attributes {dimension_semantics = [], scalar_prefetch = 0 : i64, scratch_operands = 0 : i64, tpu.core_type = #tpu.core_type<tc>} {
    %c0 = arith.constant 0 : index
    %c0_0 = arith.constant 0 : index
    %c0_1 = arith.constant 0 : index
    %0 = vector.load %arg0[%c0, %c0_0, %c0_1] : memref<2x8x32xf32, #tpu.memory_space<vmem>>, vector<2x8x32xf32>
    %c0_2 = arith.constant 0 : index
    %c0_3 = arith.constant 0 : index
    %1 = vector.load %arg1[%c0_2, %c0_3] : memref<128x640xbf16, #tpu.memory_space<vmem>>, vector<128x640xbf16>
    %c0_4 = arith.constant 0 : index
    %c0_5 = arith.constant 0 : index
    %2 = vector.load %arg2[%c0_4, %c0_5] : memref<32x512xbf16, #tpu.memory_space<vmem>>, vector<32x512xbf16>
    %c0_6 = arith.constant 0 : index
    %c0_7 = arith.constant 0 : index
    %c0_8 = arith.constant 0 : index
    %3 = vector.load %arg5[%c0_6, %c0_7, %c0_8] : memref<2x8x1xf32, #tpu.memory_space<vmem>>, vector<2x8x1xf32>
    %c0_9 = arith.constant 0 : index
    %c0_10 = arith.constant 0 : index
    %4 = vector.load %arg3[%c0_9, %c0_10] : memref<1x512xf32, #tpu.memory_space<vmem>>, vector<1x512xf32>
    %5 = vector.shape_cast %4 : vector<1x512xf32> to vector<1x512xf32>
    %6 = vector.broadcast %5 : vector<1x512xf32> to vector<2x512xf32>
    %c0_11 = arith.constant 0 : index
    %c0_12 = arith.constant 0 : index
    %c0_13 = arith.constant 0 : index
    %7 = vector.load %arg4[%c0_11, %c0_12, %c0_13] : memref<1x1x32xf32, #tpu.memory_space<vmem>>, vector<1x1x32xf32>
    %cst = arith.constant 0.000000e+00 : f32
    %8 = vector.broadcast %cst : f32 to vector<2x512xf32>
    %cst_14 = arith.constant 0.000000e+00 : f32
    %9 = vector.broadcast %cst_14 : f32 to vector<2x128xf32>
    %cst_15 = arith.constant 0.000000e+00 : f32
    %10 = vector.broadcast %cst_15 : f32 to vector<2x32xf32>
    %cst_16 = arith.constant 0.000000e+00 : f32
    %11 = vector.broadcast %cst_16 : f32 to vector<2x128xf32>
    %c0_i32 = arith.constant 0 : i32
    %12 = arith.truncf %10 : vector<2x32xf32> to vector<2x32xbf16>
    %cst_17 = arith.constant dense<0.000000e+00> : vector<2x512xf32>
    %13 = tpu.matmul %12, %2, %cst_17 {dimension_numbers = #tpu.dot_dimension_numbers<[1], [0], [0], [1], [0, 0, 1, 1], [], []>} : vector<2x32xbf16>, vector<32x512xbf16>, vector<2x512xf32> -> vector<2x512xf32>
    %14 = arith.addf %8, %13 : vector<2x512xf32>
    %15 = arith.addf %14, %6 : vector<2x512xf32>
    %16 = vector.extract_strided_slice %15 {offsets = [0, 0], sizes = [2, 128], strides = [1, 1]} : vector<2x512xf32> to vector<2x128xf32>
    %17 = arith.negf %16 : vector<2x128xf32>
    %18 = math.exp %17 : vector<2x128xf32>
    %cst_18 = arith.constant 1.000000e+00 : f32
    %19 = vector.broadcast %cst_18 : f32 to vector<2x128xf32>
    %20 = arith.addf %19, %18 : vector<2x128xf32>
    %21 = arith.divf %19, %20 : vector<2x128xf32>
    %22 = vector.extract_strided_slice %15 {offsets = [0, 128], sizes = [2, 128], strides = [1, 1]} : vector<2x512xf32> to vector<2x128xf32>
    %23 = arith.negf %22 : vector<2x128xf32>
    %24 = math.exp %23 : vector<2x128xf32>
    %cst_19 = arith.constant 1.000000e+00 : f32
    %25 = vector.broadcast %cst_19 : f32 to vector<2x128xf32>
    %26 = arith.addf %25, %24 : vector<2x128xf32>
    %27 = arith.divf %25, %26 : vector<2x128xf32>
    %28 = vector.extract_strided_slice %15 {offsets = [0, 256], sizes = [2, 128], strides = [1, 1]} : vector<2x512xf32> to vector<2x128xf32>
    %29 = math.tanh %28 : vector<2x128xf32>
    %30 = vector.extract_strided_slice %15 {offsets = [0, 384], sizes = [2, 128], strides = [1, 1]} : vector<2x512xf32> to vector<2x128xf32>
    %31 = arith.negf %30 : vector<2x128xf32>
    %32 = math.exp %31 : vector<2x128xf32>
    %cst_20 = arith.constant 1.000000e+00 : f32
    %33 = vector.broadcast %cst_20 : f32 to vector<2x128xf32>
    %34 = arith.addf %33, %32 : vector<2x128xf32>
    %35 = arith.divf %33, %34 : vector<2x128xf32>
    %36 = arith.mulf %27, %11 : vector<2x128xf32>
    %37 = arith.mulf %21, %29 : vector<2x128xf32>
    %38 = arith.addf %36, %37 : vector<2x128xf32>
    %39 = math.tanh %38 : vector<2x128xf32>
    %40 = arith.mulf %35, %39 : vector<2x128xf32>
    %41 = arith.truncf %40 : vector<2x128xf32> to vector<2x128xbf16>
    %cst_21 = arith.constant dense<0.000000e+00> : vector<2x640xf32>
    %42 = tpu.matmul %41, %1, %cst_21 {dimension_numbers = #tpu.dot_dimension_numbers<[1], [0], [0], [1], [0, 0, 1, 1], [], []>} : vector<2x128xbf16>, vector<128x640xbf16>, vector<2x640xf32> -> vector<2x640xf32>
    %43 = vector.extract_strided_slice %42 {offsets = [0, 0], sizes = [2, 512], strides = [1, 1]} : vector<2x640xf32> to vector<2x512xf32>
    %44 = vector.extract_strided_slice %42 {offsets = [0, 512], sizes = [2, 32], strides = [1, 1]} : vector<2x640xf32> to vector<2x32xf32>
    %45 = vector.shape_cast %44 : vector<2x32xf32> to vector<2x1x32xf32>
    %46 = vector.broadcast %45 : vector<2x1x32xf32> to vector<2x8x32xf32>
    %47 = arith.addf %0, %46 : vector<2x8x32xf32>
    %48 = math.tanh %47 : vector<2x8x32xf32>
    %49 = vector.broadcast %7 : vector<1x1x32xf32> to vector<2x8x32xf32>
    %50 = arith.mulf %48, %49 : vector<2x8x32xf32>
    %cst_22 = arith.constant dense<0.000000e+00> : vector<2x8xf32>
    %51 = vector.multi_reduction <add>, %50, %cst_22 [2] : vector<2x8x32xf32> to vector<2x8xf32>
    %52 = vector.shape_cast %51 : vector<2x8xf32> to vector<2x8x1xf32>
    %53 = arith.addf %52, %3 : vector<2x8x1xf32>
    %54 = vector.shape_cast %53 : vector<2x8x1xf32> to vector<1x2x8x1xf32>
    %cst_23 = arith.constant dense<0xFF800000> : vector<1xf32>
    %55 = vector.multi_reduction <maximumf>, %54, %cst_23 [1, 2, 3] : vector<1x2x8x1xf32> to vector<1xf32>
    %56 = vector.shape_cast %55 : vector<1xf32> to vector<1x1x1x1xf32>
    %57 = vector.extract %56[0, 0, 0, 0] : f32 from vector<1x1x1x1xf32>
    %58 = vector.broadcast %57 : f32 to vector<2x8x1xf32>
    %59 = arith.subf %53, %58 : vector<2x8x1xf32>
    %60 = math.exp %59 : vector<2x8x1xf32>
    %61 = vector.shape_cast %60 : vector<2x8x1xf32> to vector<1x2x8x1xf32>
    %cst_24 = arith.constant dense<0.000000e+00> : vector<1xf32>
    %62 = vector.multi_reduction <add>, %61, %cst_24 [1, 2, 3] : vector<1x2x8x1xf32> to vector<1xf32>
    %63 = vector.shape_cast %62 : vector<1xf32> to vector<1x1x1x1xf32>
    %64 = vector.extract %63[0, 0, 0, 0] : f32 from vector<1x1x1x1xf32>
    %65 = vector.broadcast %64 : f32 to vector<1x1xf32>
    %66 = tpu.reciprocal %65 {approx = true} : vector<1x1xf32> -> vector<1x1xf32>
    %67 = vector.broadcast %60 : vector<2x8x1xf32> to vector<2x8x32xf32>
    %68 = arith.mulf %67, %0 : vector<2x8x32xf32>
    %cst_25 = arith.constant dense<0.000000e+00> : vector<2x32xf32>
    %69 = vector.multi_reduction <add>, %68, %cst_25 [1] : vector<2x8x32xf32> to vector<2x32xf32>
    %70 = vector.broadcast %66 : vector<1x1xf32> to vector<2x32xf32>
    %71 = arith.mulf %69, %70 : vector<2x32xf32>
    %c1_i32 = arith.constant 1 : i32
    %72 = arith.truncf %71 : vector<2x32xf32> to vector<2x32xbf16>
    %cst_26 = arith.constant dense<0.000000e+00> : vector<2x512xf32>
    %73 = tpu.matmul %72, %2, %cst_26 {dimension_numbers = #tpu.dot_dimension_numbers<[1], [0], [0], [1], [0, 0, 1, 1], [], []>} : vector<2x32xbf16>, vector<32x512xbf16>, vector<2x512xf32> -> vector<2x512xf32>
    %74 = arith.addf %43, %73 : vector<2x512xf32>
    %75 = arith.addf %74, %6 : vector<2x512xf32>
    %76 = vector.extract_strided_slice %75 {offsets = [0, 0], sizes = [2, 128], strides = [1, 1]} : vector<2x512xf32> to vector<2x128xf32>
    %77 = arith.negf %76 : vector<2x128xf32>
    %78 = math.exp %77 : vector<2x128xf32>
    %cst_27 = arith.constant 1.000000e+00 : f32
    %79 = vector.broadcast %cst_27 : f32 to vector<2x128xf32>
    %80 = arith.addf %79, %78 : vector<2x128xf32>
    %81 = arith.divf %79, %80 : vector<2x128xf32>
    %82 = vector.extract_strided_slice %75 {offsets = [0, 128], sizes = [2, 128], strides = [1, 1]} : vector<2x512xf32> to vector<2x128xf32>
    %83 = arith.negf %82 : vector<2x128xf32>
    %84 = math.exp %83 : vector<2x128xf32>
    %cst_28 = arith.constant 1.000000e+00 : f32
    %85 = vector.broadcast %cst_28 : f32 to vector<2x128xf32>
    %86 = arith.addf %85, %84 : vector<2x128xf32>
    %87 = arith.divf %85, %86 : vector<2x128xf32>
    %88 = vector.extract_strided_slice %75 {offsets = [0, 256], sizes = [2, 128], strides = [1, 1]} : vector<2x512xf32> to vector<2x128xf32>
    %89 = math.tanh %88 : vector<2x128xf32>
    %90 = vector.extract_strided_slice %75 {offsets = [0, 384], sizes = [2, 128], strides = [1, 1]} : vector<2x512xf32> to vector<2x128xf32>
    %91 = arith.negf %90 : vector<2x128xf32>
    %92 = math.exp %91 : vector<2x128xf32>
    %cst_29 = arith.constant 1.000000e+00 : f32
    %93 = vector.broadcast %cst_29 : f32 to vector<2x128xf32>
    %94 = arith.addf %93, %92 : vector<2x128xf32>
    %95 = arith.divf %93, %94 : vector<2x128xf32>
    %96 = arith.mulf %87, %38 : vector<2x128xf32>
    %97 = arith.mulf %81, %89 : vector<2x128xf32>
    %98 = arith.addf %96, %97 : vector<2x128xf32>
    %99 = math.tanh %98 : vector<2x128xf32>
    %100 = arith.mulf %95, %99 : vector<2x128xf32>
    %101 = arith.truncf %100 : vector<2x128xf32> to vector<2x128xbf16>
    %cst_30 = arith.constant dense<0.000000e+00> : vector<2x640xf32>
    %102 = tpu.matmul %101, %1, %cst_30 {dimension_numbers = #tpu.dot_dimension_numbers<[1], [0], [0], [1], [0, 0, 1, 1], [], []>} : vector<2x128xbf16>, vector<128x640xbf16>, vector<2x640xf32> -> vector<2x640xf32>
    %103 = vector.extract_strided_slice %102 {offsets = [0, 0], sizes = [2, 512], strides = [1, 1]} : vector<2x640xf32> to vector<2x512xf32>
    %104 = vector.extract_strided_slice %102 {offsets = [0, 512], sizes = [2, 32], strides = [1, 1]} : vector<2x640xf32> to vector<2x32xf32>
    %105 = vector.shape_cast %104 : vector<2x32xf32> to vector<2x1x32xf32>
    %106 = vector.broadcast %105 : vector<2x1x32xf32> to vector<2x8x32xf32>
    %107 = arith.addf %0, %106 : vector<2x8x32xf32>
    %108 = math.tanh %107 : vector<2x8x32xf32>
    %109 = vector.broadcast %7 : vector<1x1x32xf32> to vector<2x8x32xf32>
    %110 = arith.mulf %108, %109 : vector<2x8x32xf32>
    %cst_31 = arith.constant dense<0.000000e+00> : vector<2x8xf32>
    %111 = vector.multi_reduction <add>, %110, %cst_31 [2] : vector<2x8x32xf32> to vector<2x8xf32>
    %112 = vector.shape_cast %111 : vector<2x8xf32> to vector<2x8x1xf32>
    %113 = arith.addf %112, %3 : vector<2x8x1xf32>
    %114 = vector.shape_cast %113 : vector<2x8x1xf32> to vector<1x2x8x1xf32>
    %cst_32 = arith.constant dense<0xFF800000> : vector<1xf32>
    %115 = vector.multi_reduction <maximumf>, %114, %cst_32 [1, 2, 3] : vector<1x2x8x1xf32> to vector<1xf32>
    %116 = vector.shape_cast %115 : vector<1xf32> to vector<1x1x1x1xf32>
    %117 = vector.extract %116[0, 0, 0, 0] : f32 from vector<1x1x1x1xf32>
    %118 = vector.broadcast %117 : f32 to vector<2x8x1xf32>
    %119 = arith.subf %113, %118 : vector<2x8x1xf32>
    %120 = math.exp %119 : vector<2x8x1xf32>
    %121 = vector.shape_cast %120 : vector<2x8x1xf32> to vector<1x2x8x1xf32>
    %cst_33 = arith.constant dense<0.000000e+00> : vector<1xf32>
    %122 = vector.multi_reduction <add>, %121, %cst_33 [1, 2, 3] : vector<1x2x8x1xf32> to vector<1xf32>
    %123 = vector.shape_cast %122 : vector<1xf32> to vector<1x1x1x1xf32>
    %124 = vector.extract %123[0, 0, 0, 0] : f32 from vector<1x1x1x1xf32>
    %125 = vector.broadcast %124 : f32 to vector<1x1xf32>
    %126 = tpu.reciprocal %125 {approx = true} : vector<1x1xf32> -> vector<1x1xf32>
    %127 = vector.broadcast %120 : vector<2x8x1xf32> to vector<2x8x32xf32>
    %128 = arith.mulf %127, %0 : vector<2x8x32xf32>
    %cst_34 = arith.constant dense<0.000000e+00> : vector<2x32xf32>
    %129 = vector.multi_reduction <add>, %128, %cst_34 [1] : vector<2x8x32xf32> to vector<2x32xf32>
    %130 = vector.broadcast %126 : vector<1x1xf32> to vector<2x32xf32>
    %131 = arith.mulf %129, %130 : vector<2x32xf32>
    %c2_i32 = arith.constant 2 : i32
    %132 = arith.truncf %131 : vector<2x32xf32> to vector<2x32xbf16>
    %cst_35 = arith.constant dense<0.000000e+00> : vector<2x512xf32>
    %133 = tpu.matmul %132, %2, %cst_35 {dimension_numbers = #tpu.dot_dimension_numbers<[1], [0], [0], [1], [0, 0, 1, 1], [], []>} : vector<2x32xbf16>, vector<32x512xbf16>, vector<2x512xf32> -> vector<2x512xf32>
    %134 = arith.addf %103, %133 : vector<2x512xf32>
    %135 = arith.addf %134, %6 : vector<2x512xf32>
    %136 = vector.extract_strided_slice %135 {offsets = [0, 0], sizes = [2, 128], strides = [1, 1]} : vector<2x512xf32> to vector<2x128xf32>
    %137 = arith.negf %136 : vector<2x128xf32>
    %138 = math.exp %137 : vector<2x128xf32>
    %cst_36 = arith.constant 1.000000e+00 : f32
    %139 = vector.broadcast %cst_36 : f32 to vector<2x128xf32>
    %140 = arith.addf %139, %138 : vector<2x128xf32>
    %141 = arith.divf %139, %140 : vector<2x128xf32>
    %142 = vector.extract_strided_slice %135 {offsets = [0, 128], sizes = [2, 128], strides = [1, 1]} : vector<2x512xf32> to vector<2x128xf32>
    %143 = arith.negf %142 : vector<2x128xf32>
    %144 = math.exp %143 : vector<2x128xf32>
    %cst_37 = arith.constant 1.000000e+00 : f32
    %145 = vector.broadcast %cst_37 : f32 to vector<2x128xf32>
    %146 = arith.addf %145, %144 : vector<2x128xf32>
    %147 = arith.divf %145, %146 : vector<2x128xf32>
    %148 = vector.extract_strided_slice %135 {offsets = [0, 256], sizes = [2, 128], strides = [1, 1]} : vector<2x512xf32> to vector<2x128xf32>
    %149 = math.tanh %148 : vector<2x128xf32>
    %150 = vector.extract_strided_slice %135 {offsets = [0, 384], sizes = [2, 128], strides = [1, 1]} : vector<2x512xf32> to vector<2x128xf32>
    %151 = arith.negf %150 : vector<2x128xf32>
    %152 = math.exp %151 : vector<2x128xf32>
    %cst_38 = arith.constant 1.000000e+00 : f32
    %153 = vector.broadcast %cst_38 : f32 to vector<2x128xf32>
    %154 = arith.addf %153, %152 : vector<2x128xf32>
    %155 = arith.divf %153, %154 : vector<2x128xf32>
    %156 = arith.mulf %147, %98 : vector<2x128xf32>
    %157 = arith.mulf %141, %149 : vector<2x128xf32>
    %158 = arith.addf %156, %157 : vector<2x128xf32>
    %159 = math.tanh %158 : vector<2x128xf32>
    %160 = arith.mulf %155, %159 : vector<2x128xf32>
    %161 = arith.truncf %160 : vector<2x128xf32> to vector<2x128xbf16>
    %cst_39 = arith.constant dense<0.000000e+00> : vector<2x640xf32>
    %162 = tpu.matmul %161, %1, %cst_39 {dimension_numbers = #tpu.dot_dimension_numbers<[1], [0], [0], [1], [0, 0, 1, 1], [], []>} : vector<2x128xbf16>, vector<128x640xbf16>, vector<2x640xf32> -> vector<2x640xf32>
    %163 = vector.extract_strided_slice %162 {offsets = [0, 0], sizes = [2, 512], strides = [1, 1]} : vector<2x640xf32> to vector<2x512xf32>
    %164 = vector.extract_strided_slice %162 {offsets = [0, 512], sizes = [2, 32], strides = [1, 1]} : vector<2x640xf32> to vector<2x32xf32>
    %165 = vector.shape_cast %164 : vector<2x32xf32> to vector<2x1x32xf32>
    %166 = vector.broadcast %165 : vector<2x1x32xf32> to vector<2x8x32xf32>
    %167 = arith.addf %0, %166 : vector<2x8x32xf32>
    %168 = math.tanh %167 : vector<2x8x32xf32>
    %169 = vector.broadcast %7 : vector<1x1x32xf32> to vector<2x8x32xf32>
    %170 = arith.mulf %168, %169 : vector<2x8x32xf32>
    %cst_40 = arith.constant dense<0.000000e+00> : vector<2x8xf32>
    %171 = vector.multi_reduction <add>, %170, %cst_40 [2] : vector<2x8x32xf32> to vector<2x8xf32>
    %172 = vector.shape_cast %171 : vector<2x8xf32> to vector<2x8x1xf32>
    %173 = arith.addf %172, %3 : vector<2x8x1xf32>
    %174 = vector.shape_cast %173 : vector<2x8x1xf32> to vector<1x2x8x1xf32>
    %cst_41 = arith.constant dense<0xFF800000> : vector<1xf32>
    %175 = vector.multi_reduction <maximumf>, %174, %cst_41 [1, 2, 3] : vector<1x2x8x1xf32> to vector<1xf32>
    %176 = vector.shape_cast %175 : vector<1xf32> to vector<1x1x1x1xf32>
    %177 = vector.extract %176[0, 0, 0, 0] : f32 from vector<1x1x1x1xf32>
    %178 = vector.broadcast %177 : f32 to vector<2x8x1xf32>
    %179 = arith.subf %173, %178 : vector<2x8x1xf32>
    %180 = math.exp %179 : vector<2x8x1xf32>
    %181 = vector.shape_cast %180 : vector<2x8x1xf32> to vector<1x2x8x1xf32>
    %cst_42 = arith.constant dense<0.000000e+00> : vector<1xf32>
    %182 = vector.multi_reduction <add>, %181, %cst_42 [1, 2, 3] : vector<1x2x8x1xf32> to vector<1xf32>
    %183 = vector.shape_cast %182 : vector<1xf32> to vector<1x1x1x1xf32>
    %184 = vector.extract %183[0, 0, 0, 0] : f32 from vector<1x1x1x1xf32>
    %185 = vector.broadcast %184 : f32 to vector<1x1xf32>
    %186 = tpu.reciprocal %185 {approx = true} : vector<1x1xf32> -> vector<1x1xf32>
    %187 = vector.broadcast %180 : vector<2x8x1xf32> to vector<2x8x32xf32>
    %188 = arith.mulf %187, %0 : vector<2x8x32xf32>
    %cst_43 = arith.constant dense<0.000000e+00> : vector<2x32xf32>
    %189 = vector.multi_reduction <add>, %188, %cst_43 [1] : vector<2x8x32xf32> to vector<2x32xf32>
    %190 = vector.broadcast %186 : vector<1x1xf32> to vector<2x32xf32>
    %191 = arith.mulf %189, %190 : vector<2x32xf32>
    %c3_i32 = arith.constant 3 : i32
    %192 = arith.truncf %191 : vector<2x32xf32> to vector<2x32xbf16>
    %cst_44 = arith.constant dense<0.000000e+00> : vector<2x512xf32>
    %193 = tpu.matmul %192, %2, %cst_44 {dimension_numbers = #tpu.dot_dimension_numbers<[1], [0], [0], [1], [0, 0, 1, 1], [], []>} : vector<2x32xbf16>, vector<32x512xbf16>, vector<2x512xf32> -> vector<2x512xf32>
    %194 = arith.addf %163, %193 : vector<2x512xf32>
    %195 = arith.addf %194, %6 : vector<2x512xf32>
    %196 = vector.extract_strided_slice %195 {offsets = [0, 0], sizes = [2, 128], strides = [1, 1]} : vector<2x512xf32> to vector<2x128xf32>
    %197 = arith.negf %196 : vector<2x128xf32>
    %198 = math.exp %197 : vector<2x128xf32>
    %cst_45 = arith.constant 1.000000e+00 : f32
    %199 = vector.broadcast %cst_45 : f32 to vector<2x128xf32>
    %200 = arith.addf %199, %198 : vector<2x128xf32>
    %201 = arith.divf %199, %200 : vector<2x128xf32>
    %202 = vector.extract_strided_slice %195 {offsets = [0, 128], sizes = [2, 128], strides = [1, 1]} : vector<2x512xf32> to vector<2x128xf32>
    %203 = arith.negf %202 : vector<2x128xf32>
    %204 = math.exp %203 : vector<2x128xf32>
    %cst_46 = arith.constant 1.000000e+00 : f32
    %205 = vector.broadcast %cst_46 : f32 to vector<2x128xf32>
    %206 = arith.addf %205, %204 : vector<2x128xf32>
    %207 = arith.divf %205, %206 : vector<2x128xf32>
    %208 = vector.extract_strided_slice %195 {offsets = [0, 256], sizes = [2, 128], strides = [1, 1]} : vector<2x512xf32> to vector<2x128xf32>
    %209 = math.tanh %208 : vector<2x128xf32>
    %210 = vector.extract_strided_slice %195 {offsets = [0, 384], sizes = [2, 128], strides = [1, 1]} : vector<2x512xf32> to vector<2x128xf32>
    %211 = arith.negf %210 : vector<2x128xf32>
    %212 = math.exp %211 : vector<2x128xf32>
    %cst_47 = arith.constant 1.000000e+00 : f32
    %213 = vector.broadcast %cst_47 : f32 to vector<2x128xf32>
    %214 = arith.addf %213, %212 : vector<2x128xf32>
    %215 = arith.divf %213, %214 : vector<2x128xf32>
    %216 = arith.mulf %207, %158 : vector<2x128xf32>
    %217 = arith.mulf %201, %209 : vector<2x128xf32>
    %218 = arith.addf %216, %217 : vector<2x128xf32>
    %219 = math.tanh %218 : vector<2x128xf32>
    %220 = arith.mulf %215, %219 : vector<2x128xf32>
    %221 = arith.truncf %220 : vector<2x128xf32> to vector<2x128xbf16>
    %cst_48 = arith.constant dense<0.000000e+00> : vector<2x640xf32>
    %222 = tpu.matmul %221, %1, %cst_48 {dimension_numbers = #tpu.dot_dimension_numbers<[1], [0], [0], [1], [0, 0, 1, 1], [], []>} : vector<2x128xbf16>, vector<128x640xbf16>, vector<2x640xf32> -> vector<2x640xf32>
    %223 = vector.extract_strided_slice %222 {offsets = [0, 0], sizes = [2, 512], strides = [1, 1]} : vector<2x640xf32> to vector<2x512xf32>
    %224 = vector.extract_strided_slice %222 {offsets = [0, 512], sizes = [2, 32], strides = [1, 1]} : vector<2x640xf32> to vector<2x32xf32>
    %225 = vector.shape_cast %224 : vector<2x32xf32> to vector<2x1x32xf32>
    %226 = vector.broadcast %225 : vector<2x1x32xf32> to vector<2x8x32xf32>
    %227 = arith.addf %0, %226 : vector<2x8x32xf32>
    %228 = math.tanh %227 : vector<2x8x32xf32>
    %229 = vector.broadcast %7 : vector<1x1x32xf32> to vector<2x8x32xf32>
    %230 = arith.mulf %228, %229 : vector<2x8x32xf32>
    %cst_49 = arith.constant dense<0.000000e+00> : vector<2x8xf32>
    %231 = vector.multi_reduction <add>, %230, %cst_49 [2] : vector<2x8x32xf32> to vector<2x8xf32>
    %232 = vector.shape_cast %231 : vector<2x8xf32> to vector<2x8x1xf32>
    %233 = arith.addf %232, %3 : vector<2x8x1xf32>
    %234 = vector.shape_cast %233 : vector<2x8x1xf32> to vector<1x2x8x1xf32>
    %cst_50 = arith.constant dense<0xFF800000> : vector<1xf32>
    %235 = vector.multi_reduction <maximumf>, %234, %cst_50 [1, 2, 3] : vector<1x2x8x1xf32> to vector<1xf32>
    %236 = vector.shape_cast %235 : vector<1xf32> to vector<1x1x1x1xf32>
    %237 = vector.extract %236[0, 0, 0, 0] : f32 from vector<1x1x1x1xf32>
    %238 = vector.broadcast %237 : f32 to vector<2x8x1xf32>
    %239 = arith.subf %233, %238 : vector<2x8x1xf32>
    %240 = math.exp %239 : vector<2x8x1xf32>
    %241 = vector.shape_cast %240 : vector<2x8x1xf32> to vector<1x2x8x1xf32>
    %cst_51 = arith.constant dense<0.000000e+00> : vector<1xf32>
    %242 = vector.multi_reduction <add>, %241, %cst_51 [1, 2, 3] : vector<1x2x8x1xf32> to vector<1xf32>
    %243 = vector.shape_cast %242 : vector<1xf32> to vector<1x1x1x1xf32>
    %244 = vector.extract %243[0, 0, 0, 0] : f32 from vector<1x1x1x1xf32>
    %245 = vector.broadcast %244 : f32 to vector<1x1xf32>
    %246 = tpu.reciprocal %245 {approx = true} : vector<1x1xf32> -> vector<1x1xf32>
    %247 = vector.broadcast %240 : vector<2x8x1xf32> to vector<2x8x32xf32>
    %248 = arith.mulf %247, %0 : vector<2x8x32xf32>
    %cst_52 = arith.constant dense<0.000000e+00> : vector<2x32xf32>
    %249 = vector.multi_reduction <add>, %248, %cst_52 [1] : vector<2x8x32xf32> to vector<2x32xf32>
    %250 = vector.broadcast %246 : vector<1x1xf32> to vector<2x32xf32>
    %251 = arith.mulf %249, %250 : vector<2x32xf32>
    %c4_i32 = arith.constant 4 : i32
    %252 = arith.truncf %251 : vector<2x32xf32> to vector<2x32xbf16>
    %cst_53 = arith.constant dense<0.000000e+00> : vector<2x512xf32>
    %253 = tpu.matmul %252, %2, %cst_53 {dimension_numbers = #tpu.dot_dimension_numbers<[1], [0], [0], [1], [0, 0, 1, 1], [], []>} : vector<2x32xbf16>, vector<32x512xbf16>, vector<2x512xf32> -> vector<2x512xf32>
    %254 = arith.addf %223, %253 : vector<2x512xf32>
    %255 = arith.addf %254, %6 : vector<2x512xf32>
    %256 = vector.extract_strided_slice %255 {offsets = [0, 0], sizes = [2, 128], strides = [1, 1]} : vector<2x512xf32> to vector<2x128xf32>
    %257 = arith.negf %256 : vector<2x128xf32>
    %258 = math.exp %257 : vector<2x128xf32>
    %cst_54 = arith.constant 1.000000e+00 : f32
    %259 = vector.broadcast %cst_54 : f32 to vector<2x128xf32>
    %260 = arith.addf %259, %258 : vector<2x128xf32>
    %261 = arith.divf %259, %260 : vector<2x128xf32>
    %262 = vector.extract_strided_slice %255 {offsets = [0, 128], sizes = [2, 128], strides = [1, 1]} : vector<2x512xf32> to vector<2x128xf32>
    %263 = arith.negf %262 : vector<2x128xf32>
    %264 = math.exp %263 : vector<2x128xf32>
    %cst_55 = arith.constant 1.000000e+00 : f32
    %265 = vector.broadcast %cst_55 : f32 to vector<2x128xf32>
    %266 = arith.addf %265, %264 : vector<2x128xf32>
    %267 = arith.divf %265, %266 : vector<2x128xf32>
    %268 = vector.extract_strided_slice %255 {offsets = [0, 256], sizes = [2, 128], strides = [1, 1]} : vector<2x512xf32> to vector<2x128xf32>
    %269 = math.tanh %268 : vector<2x128xf32>
    %270 = vector.extract_strided_slice %255 {offsets = [0, 384], sizes = [2, 128], strides = [1, 1]} : vector<2x512xf32> to vector<2x128xf32>
    %271 = arith.negf %270 : vector<2x128xf32>
    %272 = math.exp %271 : vector<2x128xf32>
    %cst_56 = arith.constant 1.000000e+00 : f32
    %273 = vector.broadcast %cst_56 : f32 to vector<2x128xf32>
    %274 = arith.addf %273, %272 : vector<2x128xf32>
    %275 = arith.divf %273, %274 : vector<2x128xf32>
    %276 = arith.mulf %267, %218 : vector<2x128xf32>
    %277 = arith.mulf %261, %269 : vector<2x128xf32>
    %278 = arith.addf %276, %277 : vector<2x128xf32>
    %279 = math.tanh %278 : vector<2x128xf32>
    %280 = arith.mulf %275, %279 : vector<2x128xf32>
    %281 = arith.truncf %280 : vector<2x128xf32> to vector<2x128xbf16>
    %cst_57 = arith.constant dense<0.000000e+00> : vector<2x640xf32>
    %282 = tpu.matmul %281, %1, %cst_57 {dimension_numbers = #tpu.dot_dimension_numbers<[1], [0], [0], [1], [0, 0, 1, 1], [], []>} : vector<2x128xbf16>, vector<128x640xbf16>, vector<2x640xf32> -> vector<2x640xf32>
    %283 = vector.extract_strided_slice %282 {offsets = [0, 0], sizes = [2, 512], strides = [1, 1]} : vector<2x640xf32> to vector<2x512xf32>
    %284 = vector.extract_strided_slice %282 {offsets = [0, 512], sizes = [2, 32], strides = [1, 1]} : vector<2x640xf32> to vector<2x32xf32>
    %285 = vector.shape_cast %284 : vector<2x32xf32> to vector<2x1x32xf32>
    %286 = vector.broadcast %285 : vector<2x1x32xf32> to vector<2x8x32xf32>
    %287 = arith.addf %0, %286 : vector<2x8x32xf32>
    %288 = math.tanh %287 : vector<2x8x32xf32>
    %289 = vector.broadcast %7 : vector<1x1x32xf32> to vector<2x8x32xf32>
    %290 = arith.mulf %288, %289 : vector<2x8x32xf32>
    %cst_58 = arith.constant dense<0.000000e+00> : vector<2x8xf32>
    %291 = vector.multi_reduction <add>, %290, %cst_58 [2] : vector<2x8x32xf32> to vector<2x8xf32>
    %292 = vector.shape_cast %291 : vector<2x8xf32> to vector<2x8x1xf32>
    %293 = arith.addf %292, %3 : vector<2x8x1xf32>
    %294 = vector.shape_cast %293 : vector<2x8x1xf32> to vector<1x2x8x1xf32>
    %cst_59 = arith.constant dense<0xFF800000> : vector<1xf32>
    %295 = vector.multi_reduction <maximumf>, %294, %cst_59 [1, 2, 3] : vector<1x2x8x1xf32> to vector<1xf32>
    %296 = vector.shape_cast %295 : vector<1xf32> to vector<1x1x1x1xf32>
    %297 = vector.extract %296[0, 0, 0, 0] : f32 from vector<1x1x1x1xf32>
    %298 = vector.broadcast %297 : f32 to vector<2x8x1xf32>
    %299 = arith.subf %293, %298 : vector<2x8x1xf32>
    %300 = math.exp %299 : vector<2x8x1xf32>
    %301 = vector.shape_cast %300 : vector<2x8x1xf32> to vector<1x2x8x1xf32>
    %cst_60 = arith.constant dense<0.000000e+00> : vector<1xf32>
    %302 = vector.multi_reduction <add>, %301, %cst_60 [1, 2, 3] : vector<1x2x8x1xf32> to vector<1xf32>
    %303 = vector.shape_cast %302 : vector<1xf32> to vector<1x1x1x1xf32>
    %304 = vector.extract %303[0, 0, 0, 0] : f32 from vector<1x1x1x1xf32>
    %305 = vector.broadcast %304 : f32 to vector<1x1xf32>
    %306 = tpu.reciprocal %305 {approx = true} : vector<1x1xf32> -> vector<1x1xf32>
    %307 = vector.broadcast %300 : vector<2x8x1xf32> to vector<2x8x32xf32>
    %308 = arith.mulf %307, %0 : vector<2x8x32xf32>
    %cst_61 = arith.constant dense<0.000000e+00> : vector<2x32xf32>
    %309 = vector.multi_reduction <add>, %308, %cst_61 [1] : vector<2x8x32xf32> to vector<2x32xf32>
    %310 = vector.broadcast %306 : vector<1x1xf32> to vector<2x32xf32>
    %311 = arith.mulf %309, %310 : vector<2x32xf32>
    %c5_i32 = arith.constant 5 : i32
    %312 = arith.truncf %311 : vector<2x32xf32> to vector<2x32xbf16>
    %cst_62 = arith.constant dense<0.000000e+00> : vector<2x512xf32>
    %313 = tpu.matmul %312, %2, %cst_62 {dimension_numbers = #tpu.dot_dimension_numbers<[1], [0], [0], [1], [0, 0, 1, 1], [], []>} : vector<2x32xbf16>, vector<32x512xbf16>, vector<2x512xf32> -> vector<2x512xf32>
    %314 = arith.addf %283, %313 : vector<2x512xf32>
    %315 = arith.addf %314, %6 : vector<2x512xf32>
    %316 = vector.extract_strided_slice %315 {offsets = [0, 0], sizes = [2, 128], strides = [1, 1]} : vector<2x512xf32> to vector<2x128xf32>
    %317 = arith.negf %316 : vector<2x128xf32>
    %318 = math.exp %317 : vector<2x128xf32>
    %cst_63 = arith.constant 1.000000e+00 : f32
    %319 = vector.broadcast %cst_63 : f32 to vector<2x128xf32>
    %320 = arith.addf %319, %318 : vector<2x128xf32>
    %321 = arith.divf %319, %320 : vector<2x128xf32>
    %322 = vector.extract_strided_slice %315 {offsets = [0, 128], sizes = [2, 128], strides = [1, 1]} : vector<2x512xf32> to vector<2x128xf32>
    %323 = arith.negf %322 : vector<2x128xf32>
    %324 = math.exp %323 : vector<2x128xf32>
    %cst_64 = arith.constant 1.000000e+00 : f32
    %325 = vector.broadcast %cst_64 : f32 to vector<2x128xf32>
    %326 = arith.addf %325, %324 : vector<2x128xf32>
    %327 = arith.divf %325, %326 : vector<2x128xf32>
    %328 = vector.extract_strided_slice %315 {offsets = [0, 256], sizes = [2, 128], strides = [1, 1]} : vector<2x512xf32> to vector<2x128xf32>
    %329 = math.tanh %328 : vector<2x128xf32>
    %330 = vector.extract_strided_slice %315 {offsets = [0, 384], sizes = [2, 128], strides = [1, 1]} : vector<2x512xf32> to vector<2x128xf32>
    %331 = arith.negf %330 : vector<2x128xf32>
    %332 = math.exp %331 : vector<2x128xf32>
    %cst_65 = arith.constant 1.000000e+00 : f32
    %333 = vector.broadcast %cst_65 : f32 to vector<2x128xf32>
    %334 = arith.addf %333, %332 : vector<2x128xf32>
    %335 = arith.divf %333, %334 : vector<2x128xf32>
    %336 = arith.mulf %327, %278 : vector<2x128xf32>
    %337 = arith.mulf %321, %329 : vector<2x128xf32>
    %338 = arith.addf %336, %337 : vector<2x128xf32>
    %339 = math.tanh %338 : vector<2x128xf32>
    %340 = arith.mulf %335, %339 : vector<2x128xf32>
    %341 = arith.truncf %340 : vector<2x128xf32> to vector<2x128xbf16>
    %cst_66 = arith.constant dense<0.000000e+00> : vector<2x640xf32>
    %342 = tpu.matmul %341, %1, %cst_66 {dimension_numbers = #tpu.dot_dimension_numbers<[1], [0], [0], [1], [0, 0, 1, 1], [], []>} : vector<2x128xbf16>, vector<128x640xbf16>, vector<2x640xf32> -> vector<2x640xf32>
    %343 = vector.extract_strided_slice %342 {offsets = [0, 0], sizes = [2, 512], strides = [1, 1]} : vector<2x640xf32> to vector<2x512xf32>
    %344 = vector.extract_strided_slice %342 {offsets = [0, 512], sizes = [2, 32], strides = [1, 1]} : vector<2x640xf32> to vector<2x32xf32>
    %345 = vector.shape_cast %344 : vector<2x32xf32> to vector<2x1x32xf32>
    %346 = vector.broadcast %345 : vector<2x1x32xf32> to vector<2x8x32xf32>
    %347 = arith.addf %0, %346 : vector<2x8x32xf32>
    %348 = math.tanh %347 : vector<2x8x32xf32>
    %349 = vector.broadcast %7 : vector<1x1x32xf32> to vector<2x8x32xf32>
    %350 = arith.mulf %348, %349 : vector<2x8x32xf32>
    %cst_67 = arith.constant dense<0.000000e+00> : vector<2x8xf32>
    %351 = vector.multi_reduction <add>, %350, %cst_67 [2] : vector<2x8x32xf32> to vector<2x8xf32>
    %352 = vector.shape_cast %351 : vector<2x8xf32> to vector<2x8x1xf32>
    %353 = arith.addf %352, %3 : vector<2x8x1xf32>
    %354 = vector.shape_cast %353 : vector<2x8x1xf32> to vector<1x2x8x1xf32>
    %cst_68 = arith.constant dense<0xFF800000> : vector<1xf32>
    %355 = vector.multi_reduction <maximumf>, %354, %cst_68 [1, 2, 3] : vector<1x2x8x1xf32> to vector<1xf32>
    %356 = vector.shape_cast %355 : vector<1xf32> to vector<1x1x1x1xf32>
    %357 = vector.extract %356[0, 0, 0, 0] : f32 from vector<1x1x1x1xf32>
    %358 = vector.broadcast %357 : f32 to vector<2x8x1xf32>
    %359 = arith.subf %353, %358 : vector<2x8x1xf32>
    %360 = math.exp %359 : vector<2x8x1xf32>
    %361 = vector.shape_cast %360 : vector<2x8x1xf32> to vector<1x2x8x1xf32>
    %cst_69 = arith.constant dense<0.000000e+00> : vector<1xf32>
    %362 = vector.multi_reduction <add>, %361, %cst_69 [1, 2, 3] : vector<1x2x8x1xf32> to vector<1xf32>
    %363 = vector.shape_cast %362 : vector<1xf32> to vector<1x1x1x1xf32>
    %364 = vector.extract %363[0, 0, 0, 0] : f32 from vector<1x1x1x1xf32>
    %365 = vector.broadcast %364 : f32 to vector<1x1xf32>
    %366 = tpu.reciprocal %365 {approx = true} : vector<1x1xf32> -> vector<1x1xf32>
    %367 = vector.broadcast %360 : vector<2x8x1xf32> to vector<2x8x32xf32>
    %368 = arith.mulf %367, %0 : vector<2x8x32xf32>
    %cst_70 = arith.constant dense<0.000000e+00> : vector<2x32xf32>
    %369 = vector.multi_reduction <add>, %368, %cst_70 [1] : vector<2x8x32xf32> to vector<2x32xf32>
    %370 = vector.broadcast %366 : vector<1x1xf32> to vector<2x32xf32>
    %371 = arith.mulf %369, %370 : vector<2x32xf32>
    %c6_i32 = arith.constant 6 : i32
    %372 = arith.truncf %371 : vector<2x32xf32> to vector<2x32xbf16>
    %cst_71 = arith.constant dense<0.000000e+00> : vector<2x512xf32>
    %373 = tpu.matmul %372, %2, %cst_71 {dimension_numbers = #tpu.dot_dimension_numbers<[1], [0], [0], [1], [0, 0, 1, 1], [], []>} : vector<2x32xbf16>, vector<32x512xbf16>, vector<2x512xf32> -> vector<2x512xf32>
    %374 = arith.addf %343, %373 : vector<2x512xf32>
    %375 = arith.addf %374, %6 : vector<2x512xf32>
    %376 = vector.extract_strided_slice %375 {offsets = [0, 0], sizes = [2, 128], strides = [1, 1]} : vector<2x512xf32> to vector<2x128xf32>
    %377 = arith.negf %376 : vector<2x128xf32>
    %378 = math.exp %377 : vector<2x128xf32>
    %cst_72 = arith.constant 1.000000e+00 : f32
    %379 = vector.broadcast %cst_72 : f32 to vector<2x128xf32>
    %380 = arith.addf %379, %378 : vector<2x128xf32>
    %381 = arith.divf %379, %380 : vector<2x128xf32>
    %382 = vector.extract_strided_slice %375 {offsets = [0, 128], sizes = [2, 128], strides = [1, 1]} : vector<2x512xf32> to vector<2x128xf32>
    %383 = arith.negf %382 : vector<2x128xf32>
    %384 = math.exp %383 : vector<2x128xf32>
    %cst_73 = arith.constant 1.000000e+00 : f32
    %385 = vector.broadcast %cst_73 : f32 to vector<2x128xf32>
    %386 = arith.addf %385, %384 : vector<2x128xf32>
    %387 = arith.divf %385, %386 : vector<2x128xf32>
    %388 = vector.extract_strided_slice %375 {offsets = [0, 256], sizes = [2, 128], strides = [1, 1]} : vector<2x512xf32> to vector<2x128xf32>
    %389 = math.tanh %388 : vector<2x128xf32>
    %390 = vector.extract_strided_slice %375 {offsets = [0, 384], sizes = [2, 128], strides = [1, 1]} : vector<2x512xf32> to vector<2x128xf32>
    %391 = arith.negf %390 : vector<2x128xf32>
    %392 = math.exp %391 : vector<2x128xf32>
    %cst_74 = arith.constant 1.000000e+00 : f32
    %393 = vector.broadcast %cst_74 : f32 to vector<2x128xf32>
    %394 = arith.addf %393, %392 : vector<2x128xf32>
    %395 = arith.divf %393, %394 : vector<2x128xf32>
    %396 = arith.mulf %387, %338 : vector<2x128xf32>
    %397 = arith.mulf %381, %389 : vector<2x128xf32>
    %398 = arith.addf %396, %397 : vector<2x128xf32>
    %399 = math.tanh %398 : vector<2x128xf32>
    %400 = arith.mulf %395, %399 : vector<2x128xf32>
    %401 = arith.truncf %400 : vector<2x128xf32> to vector<2x128xbf16>
    %cst_75 = arith.constant dense<0.000000e+00> : vector<2x640xf32>
    %402 = tpu.matmul %401, %1, %cst_75 {dimension_numbers = #tpu.dot_dimension_numbers<[1], [0], [0], [1], [0, 0, 1, 1], [], []>} : vector<2x128xbf16>, vector<128x640xbf16>, vector<2x640xf32> -> vector<2x640xf32>
    %403 = vector.extract_strided_slice %402 {offsets = [0, 0], sizes = [2, 512], strides = [1, 1]} : vector<2x640xf32> to vector<2x512xf32>
    %404 = vector.extract_strided_slice %402 {offsets = [0, 512], sizes = [2, 32], strides = [1, 1]} : vector<2x640xf32> to vector<2x32xf32>
    %405 = vector.shape_cast %404 : vector<2x32xf32> to vector<2x1x32xf32>
    %406 = vector.broadcast %405 : vector<2x1x32xf32> to vector<2x8x32xf32>
    %407 = arith.addf %0, %406 : vector<2x8x32xf32>
    %408 = math.tanh %407 : vector<2x8x32xf32>
    %409 = vector.broadcast %7 : vector<1x1x32xf32> to vector<2x8x32xf32>
    %410 = arith.mulf %408, %409 : vector<2x8x32xf32>
    %cst_76 = arith.constant dense<0.000000e+00> : vector<2x8xf32>
    %411 = vector.multi_reduction <add>, %410, %cst_76 [2] : vector<2x8x32xf32> to vector<2x8xf32>
    %412 = vector.shape_cast %411 : vector<2x8xf32> to vector<2x8x1xf32>
    %413 = arith.addf %412, %3 : vector<2x8x1xf32>
    %414 = vector.shape_cast %413 : vector<2x8x1xf32> to vector<1x2x8x1xf32>
    %cst_77 = arith.constant dense<0xFF800000> : vector<1xf32>
    %415 = vector.multi_reduction <maximumf>, %414, %cst_77 [1, 2, 3] : vector<1x2x8x1xf32> to vector<1xf32>
    %416 = vector.shape_cast %415 : vector<1xf32> to vector<1x1x1x1xf32>
    %417 = vector.extract %416[0, 0, 0, 0] : f32 from vector<1x1x1x1xf32>
    %418 = vector.broadcast %417 : f32 to vector<2x8x1xf32>
    %419 = arith.subf %413, %418 : vector<2x8x1xf32>
    %420 = math.exp %419 : vector<2x8x1xf32>
    %421 = vector.shape_cast %420 : vector<2x8x1xf32> to vector<1x2x8x1xf32>
    %cst_78 = arith.constant dense<0.000000e+00> : vector<1xf32>
    %422 = vector.multi_reduction <add>, %421, %cst_78 [1, 2, 3] : vector<1x2x8x1xf32> to vector<1xf32>
    %423 = vector.shape_cast %422 : vector<1xf32> to vector<1x1x1x1xf32>
    %424 = vector.extract %423[0, 0, 0, 0] : f32 from vector<1x1x1x1xf32>
    %425 = vector.broadcast %424 : f32 to vector<1x1xf32>
    %426 = tpu.reciprocal %425 {approx = true} : vector<1x1xf32> -> vector<1x1xf32>
    %427 = vector.broadcast %420 : vector<2x8x1xf32> to vector<2x8x32xf32>
    %428 = arith.mulf %427, %0 : vector<2x8x32xf32>
    %cst_79 = arith.constant dense<0.000000e+00> : vector<2x32xf32>
    %429 = vector.multi_reduction <add>, %428, %cst_79 [1] : vector<2x8x32xf32> to vector<2x32xf32>
    %430 = vector.broadcast %426 : vector<1x1xf32> to vector<2x32xf32>
    %431 = arith.mulf %429, %430 : vector<2x32xf32>
    %c7_i32 = arith.constant 7 : i32
    %432 = arith.truncf %431 : vector<2x32xf32> to vector<2x32xbf16>
    %cst_80 = arith.constant dense<0.000000e+00> : vector<2x512xf32>
    %433 = tpu.matmul %432, %2, %cst_80 {dimension_numbers = #tpu.dot_dimension_numbers<[1], [0], [0], [1], [0, 0, 1, 1], [], []>} : vector<2x32xbf16>, vector<32x512xbf16>, vector<2x512xf32> -> vector<2x512xf32>
    %434 = arith.addf %403, %433 : vector<2x512xf32>
    %435 = arith.addf %434, %6 : vector<2x512xf32>
    %436 = vector.extract_strided_slice %435 {offsets = [0, 0], sizes = [2, 128], strides = [1, 1]} : vector<2x512xf32> to vector<2x128xf32>
    %437 = arith.negf %436 : vector<2x128xf32>
    %438 = math.exp %437 : vector<2x128xf32>
    %cst_81 = arith.constant 1.000000e+00 : f32
    %439 = vector.broadcast %cst_81 : f32 to vector<2x128xf32>
    %440 = arith.addf %439, %438 : vector<2x128xf32>
    %441 = arith.divf %439, %440 : vector<2x128xf32>
    %442 = vector.extract_strided_slice %435 {offsets = [0, 128], sizes = [2, 128], strides = [1, 1]} : vector<2x512xf32> to vector<2x128xf32>
    %443 = arith.negf %442 : vector<2x128xf32>
    %444 = math.exp %443 : vector<2x128xf32>
    %cst_82 = arith.constant 1.000000e+00 : f32
    %445 = vector.broadcast %cst_82 : f32 to vector<2x128xf32>
    %446 = arith.addf %445, %444 : vector<2x128xf32>
    %447 = arith.divf %445, %446 : vector<2x128xf32>
    %448 = vector.extract_strided_slice %435 {offsets = [0, 256], sizes = [2, 128], strides = [1, 1]} : vector<2x512xf32> to vector<2x128xf32>
    %449 = math.tanh %448 : vector<2x128xf32>
    %450 = vector.extract_strided_slice %435 {offsets = [0, 384], sizes = [2, 128], strides = [1, 1]} : vector<2x512xf32> to vector<2x128xf32>
    %451 = arith.negf %450 : vector<2x128xf32>
    %452 = math.exp %451 : vector<2x128xf32>
    %cst_83 = arith.constant 1.000000e+00 : f32
    %453 = vector.broadcast %cst_83 : f32 to vector<2x128xf32>
    %454 = arith.addf %453, %452 : vector<2x128xf32>
    %455 = arith.divf %453, %454 : vector<2x128xf32>
    %456 = arith.mulf %447, %398 : vector<2x128xf32>
    %457 = arith.mulf %441, %449 : vector<2x128xf32>
    %458 = arith.addf %456, %457 : vector<2x128xf32>
    %459 = math.tanh %458 : vector<2x128xf32>
    %460 = arith.mulf %455, %459 : vector<2x128xf32>
    %461 = arith.truncf %460 : vector<2x128xf32> to vector<2x128xbf16>
    %cst_84 = arith.constant dense<0.000000e+00> : vector<2x640xf32>
    %462 = tpu.matmul %461, %1, %cst_84 {dimension_numbers = #tpu.dot_dimension_numbers<[1], [0], [0], [1], [0, 0, 1, 1], [], []>} : vector<2x128xbf16>, vector<128x640xbf16>, vector<2x640xf32> -> vector<2x640xf32>
    %463 = vector.extract_strided_slice %462 {offsets = [0, 0], sizes = [2, 512], strides = [1, 1]} : vector<2x640xf32> to vector<2x512xf32>
    %464 = vector.extract_strided_slice %462 {offsets = [0, 512], sizes = [2, 32], strides = [1, 1]} : vector<2x640xf32> to vector<2x32xf32>
    %465 = vector.shape_cast %464 : vector<2x32xf32> to vector<2x1x32xf32>
    %466 = vector.broadcast %465 : vector<2x1x32xf32> to vector<2x8x32xf32>
    %467 = arith.addf %0, %466 : vector<2x8x32xf32>
    %468 = math.tanh %467 : vector<2x8x32xf32>
    %469 = vector.broadcast %7 : vector<1x1x32xf32> to vector<2x8x32xf32>
    %470 = arith.mulf %468, %469 : vector<2x8x32xf32>
    %cst_85 = arith.constant dense<0.000000e+00> : vector<2x8xf32>
    %471 = vector.multi_reduction <add>, %470, %cst_85 [2] : vector<2x8x32xf32> to vector<2x8xf32>
    %472 = vector.shape_cast %471 : vector<2x8xf32> to vector<2x8x1xf32>
    %473 = arith.addf %472, %3 : vector<2x8x1xf32>
    %474 = vector.shape_cast %473 : vector<2x8x1xf32> to vector<1x2x8x1xf32>
    %cst_86 = arith.constant dense<0xFF800000> : vector<1xf32>
    %475 = vector.multi_reduction <maximumf>, %474, %cst_86 [1, 2, 3] : vector<1x2x8x1xf32> to vector<1xf32>
    %476 = vector.shape_cast %475 : vector<1xf32> to vector<1x1x1x1xf32>
    %477 = vector.extract %476[0, 0, 0, 0] : f32 from vector<1x1x1x1xf32>
    %478 = vector.broadcast %477 : f32 to vector<2x8x1xf32>
    %479 = arith.subf %473, %478 : vector<2x8x1xf32>
    %480 = math.exp %479 : vector<2x8x1xf32>
    %481 = vector.shape_cast %480 : vector<2x8x1xf32> to vector<1x2x8x1xf32>
    %cst_87 = arith.constant dense<0.000000e+00> : vector<1xf32>
    %482 = vector.multi_reduction <add>, %481, %cst_87 [1, 2, 3] : vector<1x2x8x1xf32> to vector<1xf32>
    %483 = vector.shape_cast %482 : vector<1xf32> to vector<1x1x1x1xf32>
    %484 = vector.extract %483[0, 0, 0, 0] : f32 from vector<1x1x1x1xf32>
    %485 = vector.broadcast %484 : f32 to vector<1x1xf32>
    %486 = tpu.reciprocal %485 {approx = true} : vector<1x1xf32> -> vector<1x1xf32>
    %487 = vector.broadcast %480 : vector<2x8x1xf32> to vector<2x8x32xf32>
    %488 = arith.mulf %487, %0 : vector<2x8x32xf32>
    %cst_88 = arith.constant dense<0.000000e+00> : vector<2x32xf32>
    %489 = vector.multi_reduction <add>, %488, %cst_88 [1] : vector<2x8x32xf32> to vector<2x32xf32>
    %490 = vector.broadcast %486 : vector<1x1xf32> to vector<2x32xf32>
    %491 = arith.mulf %489, %490 : vector<2x32xf32>
    %492 = vector.extract_strided_slice %460 {offsets = [0, 0], sizes = [2, 32], strides = [1, 1]} : vector<2x128xf32> to vector<2x32xf32>
    %c0_89 = arith.constant 0 : index
    %c0_90 = arith.constant 0 : index
    %493 = vector.load %arg6[%c0_89, %c0_90] : memref<2x32xf32, #tpu.memory_space<vmem>>, vector<2x32xf32>
    tpu.vector_store %arg6[%c0_89, %c0_90], %492 {strides = array<i32>} : memref<2x32xf32, #tpu.memory_space<vmem>>, vector<2x32xf32>,
    %c0_91 = arith.constant 0 : index
    %c0_92 = arith.constant 0 : index
    %494 = vector.load %arg7[%c0_91, %c0_92] : memref<2x32xf32, #tpu.memory_space<vmem>>, vector<2x32xf32>
    tpu.vector_store %arg7[%c0_91, %c0_92], %491 {strides = array<i32>} : memref<2x32xf32, #tpu.memory_space<vmem>>, vector<2x32xf32>,
    return
  }
}

</mosaic_0001>

<llo_original>
// kernel: tpu_custom_call.1
$region0: #{tpu_custom_call.1}
  #allocation0 [shape = 'u32[]', space=smem, size = 0x4, offset = 0x4, fixed_abs, tag = 'smem constant byte address 0x4 - core index']
  #allocation1 [shape = 'u32[144,128]{1,0:T(1,128)}', space=vmem, size = 0x12000, scoped, tag = 'internal scratch']
  %s0 = inlined_call_operand.vmem [shape: f32[2,8,32], index: 0, kind: input, shape index: {}]
  %s1 = inlined_call_operand.hbm [shape: bf16[128,640], index: 1, kind: input, shape index: {}]
  %s2 = inlined_call_operand.hbm [shape: bf16[32,512], index: 2, kind: input, shape index: {}]
  %s3 = inlined_call_operand.vmem [shape: f32[1,512], index: 3, kind: input, shape index: {}]
  %s4 = inlined_call_operand.vmem [shape: f32[1,1,32], index: 4, kind: input, shape index: {}]
  %s5 = inlined_call_operand.vmem [shape: f32[2,8,1], index: 5, kind: input, shape index: {}]
  %s6 = inlined_call_operand.hbm [shape: f32[2,32], index: 6, kind: output, shape index: {0}]
  %s7 = inlined_call_operand.hbm [shape: f32[2,32], index: 7, kind: output, shape index: {1}]
  %8 = xla_tuple %s6, %s7
  %s9 = sld [smem:[#allocation0]]
  $region50: #{tpu_custom_call.1} parent=0
    _
  %s11 = ssub.s32 1, %s9
  %s12 = scalar_select 0, %s11, %s9
  $region1: #{tpu_custom_call.1} parent=0
    #allocation2 [shape = 'u8[163840]{0}', space=vmem, size = 0x28000, scoped, tag = 'input window, operand 1, single buffered']
    #allocation3 [shape = 's32[1]{0}', space=sflag, size = 0x4, scoped, tag = 'scoped memory for tpu_custom_call.1']
    #allocation4 [shape = 's32[1]{0}', space=sflag, size = 0x4, scoped, tag = 'scoped memory for tpu_custom_call.1']
    #allocation5 [shape = 'u8[32768]{0}', space=vmem, size = 0x8000, scoped, tag = 'input window, operand 2, single buffered']
    #allocation6 [shape = 's32[1]{0}', space=sflag, size = 0x4, scoped, tag = 'scoped memory for tpu_custom_call.1']
    #allocation7 [shape = 'u8[1024]{0}', space=vmem, size = 0x400, scoped, tag = 'output window, operand 0, single buffered']
    #allocation8 [shape = 'u8[1024]{0}', space=vmem, size = 0x400, scoped, tag = 'output window, operand 1, single buffered']
    #allocation9 [shape = 's32[1]{0}', space=sflag, size = 0x4, scoped, tag = 'scoped memory for tpu_custom_call.1']
    %13 = vsyncpa [#allocation3], 0
    %14 = vsyncpa [#allocation6], 0
    %15 = vsyncpa [#allocation4], 0
    %16 = vsyncpa [#allocation9], 0
    // Predicated region
    $region2: #{tpu_custom_call.1} parent=1 // pred_check
      _
    $region3: #{tpu_custom_call.1} parent=1 // pred_check_branch
      %18 = sbr.rel (0) target = $region5
    $region4: #{tpu_custom_call.1} parent=1 // pred_region
      _
    $region5: #{tpu_custom_call.1} parent=1 // pred_fallthru
      _
    // Predicated region
    $region6: #{tpu_custom_call.1} parent=1 // pred_check
      _
    $region7: #{tpu_custom_call.1} parent=1 // pred_check_branch
      %20 = sbr.rel (0) target = $region9
    $region8: #{tpu_custom_call.1} parent=1 // pred_region
      %s22 = ssub.s32 5120, 5120
      %23 = vsyncadd [#allocation3], %s22
      %s24 = sshll.u32 [#allocation2], 4
      %s25 = int_to_ptr.vmem [resolvable:$true] %s24
      %30 = dma.hbm_to_vmem [thread:$0]  %s1, 5120, %s25, [#allocation3], 320, 320, 20
    $region9: #{tpu_custom_call.1} parent=1 // pred_fallthru
      _
    // Predicated region
    $region10: #{tpu_custom_call.1} parent=1 // pred_check
      _
    $region11: #{tpu_custom_call.1} parent=1 // pred_check_branch
      %32 = sbr.rel (0) target = $region13
    $region12: #{tpu_custom_call.1} parent=1 // pred_region
      %s34 = ssub.s32 1024, 1024
      %35 = vsyncadd [#allocation6], %s34
      %s36 = sshll.u32 [#allocation5], 4
      %s37 = int_to_ptr.vmem [resolvable:$true] %s36
      %42 = dma.hbm_to_vmem [thread:$0]  %s2, 1024, %s37, [#allocation6], 256, 256, 16
    $region13: #{tpu_custom_call.1} parent=1 // pred_fallthru
      _
    // Predicated region
    $region14: #{tpu_custom_call.1} parent=1 // pred_check
      _
    $region15: #{tpu_custom_call.1} parent=1 // pred_check_branch
      %44 = sbr.rel (0) target = $region17
    $region16: #{tpu_custom_call.1} parent=1 // pred_region
      _
    $region17: #{tpu_custom_call.1} parent=1 // pred_fallthru
      _
    // Predicated region
    $region18: #{tpu_custom_call.1} parent=1 // pred_check
      _
    $region19: #{tpu_custom_call.1} parent=1 // pred_check_branch
      %46 = sbr.rel (0) target = $region21
    $region20: #{tpu_custom_call.1} parent=1 // pred_region
      _
    $region21: #{tpu_custom_call.1} parent=1 // pred_fallthru
      _
    // Predicated region
    $region22: #{tpu_custom_call.1} parent=1 // pred_check
      _
    $region23: #{tpu_custom_call.1} parent=1 // pred_check_branch
      %48 = sbr.rel (0) target = $region25
    $region24: #{tpu_custom_call.1} parent=1 // pred_region
      _
    $region25: #{tpu_custom_call.1} parent=1 // pred_fallthru
      _
    // Predicated region
    $region26: #{tpu_custom_call.1} parent=1 // pred_check
      _
    $region27: #{tpu_custom_call.1} parent=1 // pred_check_branch
      %50 = sbr.rel (0) target = $region29
    $region28: #{tpu_custom_call.1} parent=1 // pred_region
      %51 = dma.done [#allocation3], 5120
    $region29: #{tpu_custom_call.1} parent=1 // pred_fallthru
      _
    // Predicated region
    $region30: #{tpu_custom_call.1} parent=1 // pred_check
      _
    $region31: #{tpu_custom_call.1} parent=1 // pred_check_branch
      %53 = sbr.rel (0) target = $region33
    $region32: #{tpu_custom_call.1} parent=1 // pred_region
      %54 = dma.done [#allocation6], 1024
    $region33: #{tpu_custom_call.1} parent=1 // pred_fallthru
      _
    %v56 = vld [vmem:[%s0] sm:$0xff]
    %v57 = vld [vmem:[%s0 + $0x8] sm:$0xff]
    %v58 = vld [vmem:[#allocation2] sm:$0xff]
    %v59 = vld [vmem:[#allocation2 + $0x8] sm:$0xff]
    %v60 = vld [vmem:[#allocation2 + $0x10] sm:$0xf]
    %v61 = vld [vmem:[#allocation2 + $0x14] sm:$0xff]
    %v62 = vld [vmem:[#allocation2 + $0x1c] sm:$0xff]
    %v63 = vld [vmem:[#allocation2 + $0x24] sm:$0xf]
    %v64 = vld [vmem:[#allocation2 + $0x28] sm:$0xff]
    %v65 = vld [vmem:[#allocation2 + $0x30] sm:$0xff]
    %v66 = vld [vmem:[#allocation2 + $0x38] sm:$0xf]
    %v67 = vld [vmem:[#allocation2 + $0x3c] sm:$0xff]
    %v68 = vld [vmem:[#allocation2 + $0x44] sm:$0xff]
    %v69 = vld [vmem:[#allocation2 + $0x4c] sm:$0xf]
    %v70 = vld [vmem:[#allocation2 + $0x50] sm:$0xff]
    %v71 = vld [vmem:[#allocation2 + $0x58] sm:$0xff]
    %v72 = vld [vmem:[#allocation2 + $0x60] sm:$0xf]
    %v73 = vld [vmem:[#allocation2 + $0x64] sm:$0xff]
    %v74 = vld [vmem:[#allocation2 + $0x6c] sm:$0xff]
    %v75 = vld [vmem:[#allocation2 + $0x74] sm:$0xf]
    %v76 = vld [vmem:[#allocation2 + $0x78] sm:$0xff]
    %v77 = vld [vmem:[#allocation2 + $0x80] sm:$0xff]
    %v78 = vld [vmem:[#allocation2 + $0x88] sm:$0xf]
    %v79 = vld [vmem:[#allocation2 + $0x8c] sm:$0xff]
    %v80 = vld [vmem:[#allocation2 + $0x94] sm:$0xff]
    %v81 = vld [vmem:[#allocation2 + $0x9c] sm:$0xf]
    %v82 = vld [vmem:[#allocation2 + $0xa0] sm:$0xff]
    %v83 = vld [vmem:[#allocation2 + $0xa8] sm:$0xff]
    %v84 = vld [vmem:[#allocation2 + $0xb0] sm:$0xf]
    %v85 = vld [vmem:[#allocation2 + $0xb4] sm:$0xff]
    %v86 = vld [vmem:[#allocation2 + $0xbc] sm:$0xff]
    %v87 = vld [vmem:[#allocation2 + $0xc4] sm:$0xf]
    %v88 = vld [vmem:[#allocation2 + $0xc8] sm:$0xff]
    %v89 = vld [vmem:[#allocation2 + $0xd0] sm:$0xff]
    %v90 = vld [vmem:[#allocation2 + $0xd8] sm:$0xf]
    %v91 = vld [vmem:[#allocation2 + $0xdc] sm:$0xff]
    %v92 = vld [vmem:[#allocation2 + $0xe4] sm:$0xff]
    %v93 = vld [vmem:[#allocation2 + $0xec] sm:$0xf]
    %v94 = vld [vmem:[#allocation2 + $0xf0] sm:$0xff]
    %v95 = vld [vmem:[#allocation2 + $0xf8] sm:$0xff]
    %v96 = vld [vmem:[#allocation2 + $0x100] sm:$0xf]
    %v97 = vld [vmem:[#allocation2 + $0x104] sm:$0xff]
    %v98 = vld [vmem:[#allocation2 + $0x10c] sm:$0xff]
    %v99 = vld [vmem:[#allocation2 + $0x114] sm:$0xf]
    %v100 = vld [vmem:[#allocation2 + $0x118] sm:$0xff]
    %v101 = vld [vmem:[#allocation2 + $0x120] sm:$0xff]
    %v102 = vld [vmem:[#allocation2 + $0x128] sm:$0xf]
    %v103 = vld [vmem:[#allocation2 + $0x12c] sm:$0xff]
    %v104 = vld [vmem:[#allocation2 + $0x134] sm:$0xff]
    %v105 = vld [vmem:[#allocation2 + $0x13c] sm:$0xf]
    %v106 = vld [vmem:[#allocation5] sm:$0xff]
    %v107 = vld [vmem:[#allocation5 + $0x8] sm:$0xff]
    %v108 = vld [vmem:[#allocation5 + $0x10] sm:$0xff]
    %v109 = vld [vmem:[#allocation5 + $0x18] sm:$0xff]
    %v110 = vld [vmem:[#allocation5 + $0x20] sm:$0xff]
    %v111 = vld [vmem:[#allocation5 + $0x28] sm:$0xff]
    %v112 = vld [vmem:[#allocation5 + $0x30] sm:$0xff]
    %v113 = vld [vmem:[#allocation5 + $0x38] sm:$0xff]
    %v114 = vld [vmem:[%s5] sm:$0xff]
    %v115 = vld [vmem:[%s5 + $0x8] sm:$0xff]
    %v116 = vld [vmem:[%s3] sm:$0xf]
    %v118 = vlaneseq
    %v119 = vshrl.u32 %v118, 7
    %v120 = vsub.s32 0, %v119
    %v121 = vrot.slane %v116, %v120
    %v122 = vlaneseq
    %v123 = vshrl.u32 %v122, 7
    %v124 = vsub.s32 1, %v123
    %v125 = vrot.slane %v116, %v124
    %v126 = vlaneseq
    %v127 = vshrl.u32 %v126, 7
    %v128 = vsub.s32 2, %v127
    %v129 = vrot.slane %v116, %v128
    %v130 = vlaneseq
    %v131 = vshrl.u32 %v130, 7
    %v132 = vsub.s32 3, %v131
    %v133 = vrot.slane %v116, %v132
    %v138 = vld [vmem:[%s4] sm:$0x1]
    %v147 = vunpack.c.l.b16 %v106
    %v148 = vunpack.c.h.b16 %v106
    %v149 = vunpack.c.l.b16 %v107
    %v150 = vunpack.c.h.b16 %v107
    %v151 = vunpack.c.l.b16 %v108
    %v152 = vunpack.c.h.b16 %v108
    %v153 = vunpack.c.l.b16 %v109
    %v154 = vunpack.c.h.b16 %v109
    %v155 = vunpack.c.l.b16 %v110
    %v156 = vunpack.c.h.b16 %v110
    %v157 = vunpack.c.l.b16 %v111
    %v158 = vunpack.c.h.b16 %v111
    %v159 = vunpack.c.l.b16 %v112
    %v160 = vunpack.c.h.b16 %v112
    %v161 = vunpack.c.l.b16 %v113
    %v162 = vunpack.c.h.b16 %v113
    %v163 = vpack.c.b16 %v151, %v147
    %v164 = vpack.c.b16 %v152, %v148
    %v165 = vpack.c.b16 %v153, %v149
    %v166 = vpack.c.b16 %v154, %v150
    %v167 = vpack.c.b16 %v159, %v155
    %v168 = vpack.c.b16 %v160, %v156
    %v169 = vpack.c.b16 %v161, %v157
    %v170 = vpack.c.b16 %v162, %v158
    %vm179 = vcmask 261120
    %v181 = vsel %vm179, 0, 0
    %183 = vmatprep.subr.bf16.mxu0 %v164
    %184 = vmatpush1.bf16.msra.mxu0 %v163
    %185 = vmatprep.subr.bf16.mxu0 %v168
    %186 = vmatpush1.bf16.msra.mxu0 %v167
    %187 = vmatprep.subr.bf16.mxu0 0
    %188 = vmatpush1.bf16.msra.mxu0 0
    %189 = vmatprep.subr.bf16.mxu0 0
    %190 = vmatpush1.bf16.msra.mxu0 0
    %191 = vmatprep.subr.bf16.mxu0 0
    %192 = vmatpush1.bf16.msra.mxu0 0
    %193 = vmatprep.subr.bf16.mxu0 0
    %194 = vmatpush1.bf16.msra.mxu0 0
    %195 = vmatprep.subr.bf16.mxu0 0
    %196 = vmatpush1.bf16.msra.mxu0 0
    %197 = vmatprep.subr.bf16.mxu0 0
    %198 = vmatpush1.bf16.msra.mxu0 0
    %199 = vmatprep.subr.bf16.mxu0 0
    %200 = vmatpush1.bf16.msra.mxu0 0
    %201 = vmatprep.subr.bf16.mxu0 0
    %202 = vmatpush1.bf16.msra.mxu0 0
    %203 = vmatprep.subr.bf16.mxu0 0
    %204 = vmatpush1.bf16.msra.mxu0 0
    %205 = vmatprep.subr.bf16.mxu0 0
    %206 = vmatpush1.bf16.msra.mxu0 0
    %207 = vmatprep.subr.bf16.mxu0 0
    %208 = vmatpush1.bf16.msra.mxu0 0
    %209 = vmatprep.subr.bf16.mxu0 0
    %210 = vmatpush1.bf16.msra.mxu0 0
    %211 = vmatprep.subr.bf16.mxu0 0
    %212 = vmatpush1.bf16.msra.mxu0 0
    %213 = vmatprep.subr.bf16.mxu0 0
    %214 = vmatpush1.bf16.msra.mxu0 0
    %215 = vmatprep.mubr.bf16.mxu0 0
    %216 = vmatmul.mubr.bf16.gmra.mrb[0].mxu0 %v181
    %v217 = vpop.f32.mrb[0].mxu0
    %v218 = vadd.f32 %v121, %v217
    %v219 = vpop.f32.mrb[0].mxu0
    %v220 = vadd.f32 %v125, %v219
    %v221 = vpop.f32.mrb[0].mxu0
    %v222 = vpop.f32.mrb[0].mxu0
    %223 = vdwg.mxu0
    %224 = vmatprep.subr.bf16.mxu0 %v166
    %225 = vmatpush1.bf16.msra.mxu0 %v165
    %226 = vmatprep.subr.bf16.mxu0 %v170
    %227 = vmatpush1.bf16.msra.mxu0 %v169
    %228 = vmatprep.subr.bf16.mxu0 0
    %229 = vmatpush1.bf16.msra.mxu0 0
    %230 = vmatprep.subr.bf16.mxu0 0
    %231 = vmatpush1.bf16.msra.mxu0 0
    %232 = vmatprep.subr.bf16.mxu0 0
    %233 = vmatpush1.bf16.msra.mxu0 0
    %234 = vmatprep.subr.bf16.mxu0 0
    %235 = vmatpush1.bf16.msra.mxu0 0
    %236 = vmatprep.subr.bf16.mxu0 0
    %237 = vmatpush1.bf16.msra.mxu0 0
    %238 = vmatprep.subr.bf16.mxu0 0
    %239 = vmatpush1.bf16.msra.mxu0 0
    %240 = vmatprep.subr.bf16.mxu0 0
    %241 = vmatpush1.bf16.msra.mxu0 0
    %242 = vmatprep.subr.bf16.mxu0 0
    %243 = vmatpush1.bf16.msra.mxu0 0
    %244 = vmatprep.subr.bf16.mxu0 0
    %245 = vmatpush1.bf16.msra.mxu0 0
    %246 = vmatprep.subr.bf16.mxu0 0
    %247 = vmatpush1.bf16.msra.mxu0 0
    %248 = vmatprep.subr.bf16.mxu0 0
    %249 = vmatpush1.bf16.msra.mxu0 0
    %250 = vmatprep.subr.bf16.mxu0 0
    %251 = vmatpush1.bf16.msra.mxu0 0
    %252 = vmatprep.subr.bf16.mxu0 0
    %253 = vmatpush1.bf16.msra.mxu0 0
    %254 = vmatprep.subr.bf16.mxu0 0
    %255 = vmatpush1.bf16.msra.mxu0 0
    %256 = vmatprep.mubr.bf16.mxu0 0
    %257 = vmatmul.mubr.bf16.gmra.mrb[0].mxu0 %v181
    %v258 = vpop.f32.mrb[0].mxu0
    %v259 = vadd.f32 %v129, %v258
    %v260 = vpop.f32.mrb[0].mxu0
    %v261 = vadd.f32 %v133, %v260
    %v262 = vpop.f32.mrb[0].mxu0
    %v263 = vpop.f32.mrb[0].mxu0
    %264 = vdwg.mxu0
    %v265 = vxor.u32 %v218, 2147483648
    %v266 = vmul.f32 %v265, 1.442695
    %v267 = vpow.pop %v266
    %v268 = vadd.f32 %v267, 1.0
    %v269 = vrcp.pop %v268
    %v270 = vmul.f32 1.0, %v269
    %v271 = vxor.u32 %v220, 2147483648
    %v272 = vmul.f32 %v271, 1.442695
    %v273 = vpow.pop %v272
    %v274 = vadd.f32 %v273, 1.0
    %v275 = vrcp.pop %v274
    %v276 = vmul.f32 1.0, %v275
    %v277 = vtanh.pop %v259
    %v278 = vxor.u32 %v261, 2147483648
    %v279 = vmul.f32 %v278, 1.442695
    %v280 = vpow.pop %v279
    %v281 = vadd.f32 %v280, 1.0
    %v282 = vrcp.pop %v281
    %v283 = vmul.f32 1.0, %v282
    %v284 = vmul.f32 %v276, 0.0
    %v285 = vmul.f32 %v270, %v277
    %v286 = vadd.f32 %v284, %v285
    %v287 = vtanh.pop %v286
    %v288 = vmul.f32 %v283, %v287
    %v289 = vpack.c.bf16 %v288, %v288
    %v338 = vunpack.c.l.b16 %v58
    %v339 = vunpack.c.h.b16 %v58
    %v340 = vunpack.c.l.b16 %v59
    %v341 = vunpack.c.h.b16 %v59
    %v342 = vunpack.c.l.b16 %v60
    %v343 = vunpack.c.l.b16 %v61
    %v344 = vunpack.c.h.b16 %v61
    %v345 = vunpack.c.l.b16 %v62
    %v346 = vunpack.c.h.b16 %v62
    %v347 = vunpack.c.l.b16 %v63
    %v348 = vunpack.c.l.b16 %v64
    %v349 = vunpack.c.h.b16 %v64
    %v350 = vunpack.c.l.b16 %v65
    %v351 = vunpack.c.h.b16 %v65
    %v352 = vunpack.c.l.b16 %v66
    %v353 = vunpack.c.l.b16 %v67
    %v354 = vunpack.c.h.b16 %v67
    %v355 = vunpack.c.l.b16 %v68
    %v356 = vunpack.c.h.b16 %v68
    %v357 = vunpack.c.l.b16 %v69
    %v358 = vunpack.c.l.b16 %v70
    %v359 = vunpack.c.h.b16 %v70
    %v360 = vunpack.c.l.b16 %v71
    %v361 = vunpack.c.h.b16 %v71
    %v362 = vunpack.c.l.b16 %v72
    %v363 = vunpack.c.l.b16 %v73
    %v364 = vunpack.c.h.b16 %v73
    %v365 = vunpack.c.l.b16 %v74
    %v366 = vunpack.c.h.b16 %v74
    %v367 = vunpack.c.l.b16 %v75
    %v368 = vunpack.c.l.b16 %v76
    %v369 = vunpack.c.h.b16 %v76
    %v370 = vunpack.c.l.b16 %v77
    %v371 = vunpack.c.h.b16 %v77
    %v372 = vunpack.c.l.b16 %v78
    %v373 = vunpack.c.l.b16 %v79
    %v374 = vunpack.c.h.b16 %v79
    %v375 = vunpack.c.l.b16 %v80
    %v376 = vunpack.c.h.b16 %v80
    %v377 = vunpack.c.l.b16 %v81
    %v378 = vunpack.c.l.b16 %v82
    %v379 = vunpack.c.h.b16 %v82
    %v380 = vunpack.c.l.b16 %v83
    %v381 = vunpack.c.h.b16 %v83
    %v382 = vunpack.c.l.b16 %v84
    %v383 = vunpack.c.l.b16 %v85
    %v384 = vunpack.c.h.b16 %v85
    %v385 = vunpack.c.l.b16 %v86
    %v386 = vunpack.c.h.b16 %v86
    %v387 = vunpack.c.l.b16 %v87
    %v388 = vunpack.c.l.b16 %v88
    %v389 = vunpack.c.h.b16 %v88
    %v390 = vunpack.c.l.b16 %v89
    %v391 = vunpack.c.h.b16 %v89
    %v392 = vunpack.c.l.b16 %v90
    %v393 = vunpack.c.l.b16 %v91
    %v394 = vunpack.c.h.b16 %v91
    %v395 = vunpack.c.l.b16 %v92
    %v396 = vunpack.c.h.b16 %v92
    %v397 = vunpack.c.l.b16 %v93
    %v398 = vunpack.c.l.b16 %v94
    %v399 = vunpack.c.h.b16 %v94
    %v400 = vunpack.c.l.b16 %v95
    %v401 = vunpack.c.h.b16 %v95
    %v402 = vunpack.c.l.b16 %v96
    %v403 = vunpack.c.l.b16 %v97
    %v404 = vunpack.c.h.b16 %v97
    %v405 = vunpack.c.l.b16 %v98
    %v406 = vunpack.c.h.b16 %v98
    %v407 = vunpack.c.l.b16 %v99
    %v408 = vunpack.c.l.b16 %v100
    %v409 = vunpack.c.h.b16 %v100
    %v410 = vunpack.c.l.b16 %v101
    %v411 = vunpack.c.h.b16 %v101
    %v412 = vunpack.c.l.b16 %v102
    %v413 = vunpack.c.l.b16 %v103
    %v414 = vunpack.c.h.b16 %v103
    %v415 = vunpack.c.l.b16 %v104
    %v416 = vunpack.c.h.b16 %v104
    %v417 = vunpack.c.l.b16 %v105
    %v418 = vpack.c.b16 %v343, %v338
    %v419 = vpack.c.b16 %v344, %v339
    %v420 = vpack.c.b16 %v345, %v340
    %v421 = vpack.c.b16 %v346, %v341
    %v422 = vpack.c.b16 %v347, %v342
    %v423 = vpack.c.b16 %v353, %v348
    %v424 = vpack.c.b16 %v354, %v349
    %v425 = vpack.c.b16 %v355, %v350
    %v426 = vpack.c.b16 %v356, %v351
    %v427 = vpack.c.b16 %v357, %v352
    %v428 = vpack.c.b16 %v363, %v358
    %v429 = vpack.c.b16 %v364, %v359
    %v430 = vpack.c.b16 %v365, %v360
    %v431 = vpack.c.b16 %v366, %v361
    %v432 = vpack.c.b16 %v367, %v362
    %v433 = vpack.c.b16 %v373, %v368
    %v434 = vpack.c.b16 %v374, %v369
    %v435 = vpack.c.b16 %v375, %v370
    %v436 = vpack.c.b16 %v376, %v371
    %v437 = vpack.c.b16 %v377, %v372
    %v438 = vpack.c.b16 %v383, %v378
    %v439 = vpack.c.b16 %v384, %v379
    %v440 = vpack.c.b16 %v385, %v380
    %v441 = vpack.c.b16 %v386, %v381
    %v442 = vpack.c.b16 %v387, %v382
    %v443 = vpack.c.b16 %v393, %v388
    %v444 = vpack.c.b16 %v394, %v389
    %v445 = vpack.c.b16 %v395, %v390
    %v446 = vpack.c.b16 %v396, %v391
    %v447 = vpack.c.b16 %v397, %v392
    %v448 = vpack.c.b16 %v403, %v398
    %v449 = vpack.c.b16 %v404, %v399
    %v450 = vpack.c.b16 %v405, %v400
    %v451 = vpack.c.b16 %v406, %v401
    %v452 = vpack.c.b16 %v407, %v402
    %v453 = vpack.c.b16 %v413, %v408
    %v454 = vpack.c.b16 %v414, %v409
    %v455 = vpack.c.b16 %v415, %v410
    %v456 = vpack.c.b16 %v416, %v411
    %v457 = vpack.c.b16 %v417, %v412
    %498 = vmatprep.subr.bf16.mxu0 %v419
    %499 = vmatpush1.bf16.msra.mxu0 %v418
    %500 = vmatprep.subr.bf16.mxu0 %v424
    %501 = vmatpush1.bf16.msra.mxu0 %v423
    %502 = vmatprep.subr.bf16.mxu0 %v429
    %503 = vmatpush1.bf16.msra.mxu0 %v428
    %504 = vmatprep.subr.bf16.mxu0 %v434
    %505 = vmatpush1.bf16.msra.mxu0 %v433
    %506 = vmatprep.subr.bf16.mxu0 %v439
    %507 = vmatpush1.bf16.msra.mxu0 %v438
    %508 = vmatprep.subr.bf16.mxu0 %v444
    %509 = vmatpush1.bf16.msra.mxu0 %v443
    %510 = vmatprep.subr.bf16.mxu0 %v449
    %511 = vmatpush1.bf16.msra.mxu0 %v448
    %512 = vmatprep.subr.bf16.mxu0 %v454
    %513 = vmatpush1.bf16.msra.mxu0 %v453
    %514 = vmatprep.subr.bf16.mxu0 0
    %515 = vmatpush1.bf16.msra.mxu0 0
    %516 = vmatprep.subr.bf16.mxu0 0
    %517 = vmatpush1.bf16.msra.mxu0 0
    %518 = vmatprep.subr.bf16.mxu0 0
    %519 = vmatpush1.bf16.msra.mxu0 0
    %520 = vmatprep.subr.bf16.mxu0 0
    %521 = vmatpush1.bf16.msra.mxu0 0
    %522 = vmatprep.subr.bf16.mxu0 0
    %523 = vmatpush1.bf16.msra.mxu0 0
    %524 = vmatprep.subr.bf16.mxu0 0
    %525 = vmatpush1.bf16.msra.mxu0 0
    %526 = vmatprep.subr.bf16.mxu0 0
    %527 = vmatpush1.bf16.msra.mxu0 0
    %528 = vmatprep.subr.bf16.mxu0 0
    %529 = vmatpush1.bf16.msra.mxu0 0
    %530 = vmatprep.mubr.bf16.mxu0 0
    %531 = vmatmul.mubr.bf16.gmra.mrb[0].mxu0 %v289
    %v532 = vpop.f32.mrb[0].mxu0
    %v533 = vadd.f32 0.0, %v532
    %v534 = vpop.f32.mrb[0].mxu0
    %v535 = vadd.f32 0.0, %v534
    %v536 = vpop.f32.mrb[0].mxu0
    %v537 = vpop.f32.mrb[0].mxu0
    %538 = vdwg.mxu0
    %539 = vmatprep.subr.bf16.mxu0 %v421
    %540 = vmatpush1.bf16.msra.mxu0 %v420
    %541 = vmatprep.subr.bf16.mxu0 %v426
    %542 = vmatpush1.bf16.msra.mxu0 %v425
    %543 = vmatprep.subr.bf16.mxu0 %v431
    %544 = vmatpush1.bf16.msra.mxu0 %v430
    %545 = vmatprep.subr.bf16.mxu0 %v436
    %546 = vmatpush1.bf16.msra.mxu0 %v435
    %547 = vmatprep.subr.bf16.mxu0 %v441
    %548 = vmatpush1.bf16.msra.mxu0 %v440
    %549 = vmatprep.subr.bf16.mxu0 %v446
    %550 = vmatpush1.bf16.msra.mxu0 %v445
    %551 = vmatprep.subr.bf16.mxu0 %v451
    %552 = vmatpush1.bf16.msra.mxu0 %v450
    %553 = vmatprep.subr.bf16.mxu0 %v456
    %554 = vmatpush1.bf16.msra.mxu0 %v455
    %555 = vmatprep.subr.bf16.mxu0 0
    %556 = vmatpush1.bf16.msra.mxu0 0
    %557 = vmatprep.subr.bf16.mxu0 0
    %558 = vmatpush1.bf16.msra.mxu0 0
    %559 = vmatprep.subr.bf16.mxu0 0
    %560 = vmatpush1.bf16.msra.mxu0 0
    %561 = vmatprep.subr.bf16.mxu0 0
    %562 = vmatpush1.bf16.msra.mxu0 0
    %563 = vmatprep.subr.bf16.mxu0 0
    %564 = vmatpush1.bf16.msra.mxu0 0
    %565 = vmatprep.subr.bf16.mxu0 0
    %566 = vmatpush1.bf16.msra.mxu0 0
    %567 = vmatprep.subr.bf16.mxu0 0
    %568 = vmatpush1.bf16.msra.mxu0 0
    %569 = vmatprep.subr.bf16.mxu0 0
    %570 = vmatpush1.bf16.msra.mxu0 0
    %571 = vmatprep.mubr.bf16.mxu0 0
    %572 = vmatmul.mubr.bf16.gmra.mrb[0].mxu0 %v289
    %v573 = vpop.f32.mrb[0].mxu0
    %v574 = vadd.f32 0.0, %v573
    %v575 = vpop.f32.mrb[0].mxu0
    %v576 = vadd.f32 0.0, %v575
    %v577 = vpop.f32.mrb[0].mxu0
    %v578 = vpop.f32.mrb[0].mxu0
    %579 = vdwg.mxu0
    %580 = vmatprep.subr.bf16.mxu0 0
    %581 = vmatpush1.bf16.msra.mxu0 %v422
    %582 = vmatprep.subr.bf16.mxu0 0
    %583 = vmatpush1.bf16.msra.mxu0 %v427
    %584 = vmatprep.subr.bf16.mxu0 0
    %585 = vmatpush1.bf16.msra.mxu0 %v432
    %586 = vmatprep.subr.bf16.mxu0 0
    %587 = vmatpush1.bf16.msra.mxu0 %v437
    %588 = vmatprep.subr.bf16.mxu0 0
    %589 = vmatpush1.bf16.msra.mxu0 %v442
    %590 = vmatprep.subr.bf16.mxu0 0
    %591 = vmatpush1.bf16.msra.mxu0 %v447
    %592 = vmatprep.subr.bf16.mxu0 0
    %593 = vmatpush1.bf16.msra.mxu0 %v452
    %594 = vmatprep.subr.bf16.mxu0 0
    %595 = vmatpush1.bf16.msra.mxu0 %v457
    %596 = vmatprep.subr.bf16.mxu0 0
    %597 = vmatpush1.bf16.msra.mxu0 0
    %598 = vmatprep.subr.bf16.mxu0 0
    %599 = vmatpush1.bf16.msra.mxu0 0
    %600 = vmatprep.subr.bf16.mxu0 0
    %601 = vmatpush1.bf16.msra.mxu0 0
    %602 = vmatprep.subr.bf16.mxu0 0
    %603 = vmatpush1.bf16.msra.mxu0 0
    %604 = vmatprep.subr.bf16.mxu0 0
    %605 = vmatpush1.bf16.msra.mxu0 0
    %606 = vmatprep.subr.bf16.mxu0 0
    %607 = vmatpush1.bf16.msra.mxu0 0
    %608 = vmatprep.subr.bf16.mxu0 0
    %609 = vmatpush1.bf16.msra.mxu0 0
    %610 = vmatprep.subr.bf16.mxu0 0
    %611 = vmatpush1.bf16.msra.mxu0 0
    %612 = vmatprep.mubr.bf16.mxu0 0
    %613 = vmatmul.mubr.bf16.gmra.mrb[0].mxu0 %v289
    %v614 = vpop.f32.mrb[0].mxu0
    %v615 = vadd.f32 0.0, %v614
    %v616 = vpop.f32.mrb[0].mxu0
    %v617 = vpop.f32.mrb[0].mxu0
    %v618 = vpop.f32.mrb[0].mxu0
    %619 = vdwg.mxu0
    %v622 = vunpack.c.l.s4 1966171168
    %v623 = vunpack.c.0.s8 %v622
    %v624 = vlaneseq
    %v625 = vshrl.u32 %v624, 7
    %v626 = vsub.s32 %v623, %v625
    %v627 = vrot.slane %v615, %v626
    %v628 = vcombine.high %v627, %v627
    %v630 = vunpack.c.l.s4 1966171168
    %v631 = vunpack.c.0.s8 %v630
    %v632 = vlaneseq
    %v633 = vshrl.u32 %v632, 7
    %v634 = vsub.s32 %v631, %v633
    %v635 = vrot.slane %v627, %v634
    %v637 = vunpack.c.l.s4 1966171168
    %v638 = vunpack.c.0.s8 %v637
    %v639 = vlaneseq
    %v640 = vshrl.u32 %v639, 7
    %v641 = vsub.s32 %v638, %v640
    %v642 = vrot.slane %v628, %v641
    %v643 = vlaneseq
    %v644 = vshrl.u32 %v643, 7
    %v645 = vsub.s32 0, %v644
    %v646 = vrot.slane %v635, %v645
    %v647 = vlaneseq
    %v648 = vshrl.u32 %v647, 7
    %v649 = vsub.s32 0, %v648
    %v650 = vrot.slane %v642, %v649
    %v653 = vadd.f32 %v56, %v646
    %v654 = vadd.f32 %v57, %v650
    %v655 = vtanh.pop %v653
    %v656 = vtanh.pop %v654
    %v658 = vlaneseq
    %v659 = vshrl.u32 %v658, 7
    %v660 = vsub.s32 0, %v659
    %v661 = vrot.slane %v138, %v660
    %v663 = vmul.f32 %v655, %v661
    %v664 = vmul.f32 %v656, %v661
    %v665 = vsel %vm179, %v663, 0.0
    %666 = vadd.xlane.f32.xlu0 %v665
    %v667 = vpop.xlane.xlu0 %666
    %v668 = vsel %vm179, %v664, 0.0
    %669 = vadd.xlane.f32.xlu0 %v668
    %v670 = vpop.xlane.xlu0 %669
    %v671 = vadd.f32 %v667, %v114
    %v672 = vadd.f32 %v670, %v115
    %vm673 = vcmask 7168
    %v674 = vsel %vm673, %v671, -inf
    %v675 = vsel %vm673, %v672, -inf
    %v676 = vmax.f32 %v674, %v675
    %677 = vmax.xlane.f32.xlu0 %v676
    %v678 = vpop.xlane.xlu0 %677
    %v679 = vrot.slane %v678, 4
    %v680 = vmax.f32 %v678, %v679
    %v681 = vrot.slane %v680, 2
    %v682 = vmax.f32 %v680, %v681
    %v683 = vrot.slane %v682, 1
    %v684 = vmax.f32 %v682, %v683
    %s685 = vtos %v684
    %v686 = vstv %s685
    %v687 = vsub.f32 %v671, %v686
    %v688 = vsub.f32 %v672, %v686
    %v689 = vmul.f32 %v687, 1.442695
    %v690 = vpow.pop %v689
    %v691 = vmul.f32 %v688, 1.442695
    %v692 = vpow.pop %v691
    %v693 = vsel %vm673, %v690, 0.0
    %v694 = vsel %vm673, %v692, 0.0
    %v695 = vadd.f32 %v693, %v694
    %696 = vadd.xlane.f32.xlu0 %v695
    %v697 = vpop.xlane.xlu0 %696
    %v698 = vrot.slane %v697, 4
    %v699 = vadd.f32 %v697, %v698
    %v700 = vrot.slane %v699, 2
    %v701 = vadd.f32 %v699, %v700
    %v702 = vrot.slane %v701, 1
    %v703 = vadd.f32 %v701, %v702
    %s704 = vtos %v703
    %v705 = vstv %s704
    %v706 = vrcp.pop %v705
    %708 = vset.pattern.permute.xlu0 0
    %709 = vperm.xlu0 %708, %v690
    %v710 = vpop.permute.xlu0 %709
    %713 = vset.pattern.permute.xlu0 0
    %714 = vperm.xlu0 %713, %v692
    %v715 = vpop.permute.xlu0 %714
    %v717 = vmul.f32 %v710, %v56
    %v718 = vmul.f32 %v715, %v57
    %v719 = vsel %vm179, %v717, 0.0
    %v720 = vrot.slane %v719, 4
    %v721 = vadd.f32 %v719, %v720
    %v722 = vrot.slane %v721, 2
    %v723 = vadd.f32 %v721, %v722
    %v724 = vrot.slane %v723, 1
    %v725 = vadd.f32 %v723, %v724
    %v726 = vsel %vm179, %v718, 0.0
    %v727 = vrot.slane %v726, 4
    %v728 = vadd.f32 %v726, %v727
    %v729 = vrot.slane %v728, 2
    %v730 = vadd.f32 %v728, %v729
    %v731 = vrot.slane %v730, 1
    %v732 = vadd.f32 %v730, %v731
    %v733 = vmul.f32 %v725, %v706
    %v734 = vmul.f32 %v732, %v706
    %v735 = vpack.c.bf16 %v733, %v733
    %v736 = vpack.c.bf16 %v734, %v734
    %v739 = vunpack.c.l.b16 %v735
    %v740 = vunpack.c.l.b16 %v736
    %vm741 = vcmask 1041409
    %v742 = vsel %vm741, %v740, %v739
    %v743 = vpack.c.b16 %v742, %v742
    %v745 = vsel %vm179, %v743, 0
    %747 = vmatprep.subr.bf16.mxu0 %v164
    %748 = vmatpush1.bf16.msra.mxu0 %v163
    %749 = vmatprep.subr.bf16.mxu0 %v168
    %750 = vmatpush1.bf16.msra.mxu0 %v167
    %751 = vmatprep.subr.bf16.mxu0 0
    %752 = vmatpush1.bf16.msra.mxu0 0
    %753 = vmatprep.subr.bf16.mxu0 0
    %754 = vmatpush1.bf16.msra.mxu0 0
    %755 = vmatprep.subr.bf16.mxu0 0
    %756 = vmatpush1.bf16.msra.mxu0 0
    %757 = vmatprep.subr.bf16.mxu0 0
    %758 = vmatpush1.bf16.msra.mxu0 0
    %759 = vmatprep.subr.bf16.mxu0 0
    %760 = vmatpush1.bf16.msra.mxu0 0
    %761 = vmatprep.subr.bf16.mxu0 0
    %762 = vmatpush1.bf16.msra.mxu0 0
    %763 = vmatprep.subr.bf16.mxu0 0
    %764 = vmatpush1.bf16.msra.mxu0 0
    %765 = vmatprep.subr.bf16.mxu0 0
    %766 = vmatpush1.bf16.msra.mxu0 0
    %767 = vmatprep.subr.bf16.mxu0 0
    %768 = vmatpush1.bf16.msra.mxu0 0
    %769 = vmatprep.subr.bf16.mxu0 0
    %770 = vmatpush1.bf16.msra.mxu0 0
    %771 = vmatprep.subr.bf16.mxu0 0
    %772 = vmatpush1.bf16.msra.mxu0 0
    %773 = vmatprep.subr.bf16.mxu0 0
    %774 = vmatpush1.bf16.msra.mxu0 0
    %775 = vmatprep.subr.bf16.mxu0 0
    %776 = vmatpush1.bf16.msra.mxu0 0
    %777 = vmatprep.subr.bf16.mxu0 0
    %778 = vmatpush1.bf16.msra.mxu0 0
    %779 = vmatprep.mubr.bf16.mxu0 0
    %780 = vmatmul.mubr.bf16.gmra.mrb[0].mxu0 %v745
    %v781 = vpop.f32.mrb[0].mxu0
    %v782 = vadd.f32 0.0, %v781
    %v783 = vpop.f32.mrb[0].mxu0
    %v784 = vadd.f32 0.0, %v783
    %v785 = vpop.f32.mrb[0].mxu0
    %v786 = vpop.f32.mrb[0].mxu0
    %787 = vdwg.mxu0
    %788 = vmatprep.subr.bf16.mxu0 %v166
    %789 = vmatpush1.bf16.msra.mxu0 %v165
    %790 = vmatprep.subr.bf16.mxu0 %v170
    %791 = vmatpush1.bf16.msra.mxu0 %v169
    %792 = vmatprep.subr.bf16.mxu0 0
    %793 = vmatpush1.bf16.msra.mxu0 0
    %794 = vmatprep.subr.bf16.mxu0 0
    %795 = vmatpush1.bf16.msra.mxu0 0
    %796 = vmatprep.subr.bf16.mxu0 0
    %797 = vmatpush1.bf16.msra.mxu0 0
    %798 = vmatprep.subr.bf16.mxu0 0
    %799 = vmatpush1.bf16.msra.mxu0 0
    %800 = vmatprep.subr.bf16.mxu0 0
    %801 = vmatpush1.bf16.msra.mxu0 0
    %802 = vmatprep.subr.bf16.mxu0 0
    %803 = vmatpush1.bf16.msra.mxu0 0
    %804 = vmatprep.subr.bf16.mxu0 0
    %805 = vmatpush1.bf16.msra.mxu0 0
    %806 = vmatprep.subr.bf16.mxu0 0
    %807 = vmatpush1.bf16.msra.mxu0 0
    %808 = vmatprep.subr.bf16.mxu0 0
    %809 = vmatpush1.bf16.msra.mxu0 0
    %810 = vmatprep.subr.bf16.mxu0 0
    %811 = vmatpush1.bf16.msra.mxu0 0
    %812 = vmatprep.subr.bf16.mxu0 0
    %813 = vmatpush1.bf16.msra.mxu0 0
    %814 = vmatprep.subr.bf16.mxu0 0
    %815 = vmatpush1.bf16.msra.mxu0 0
    %816 = vmatprep.subr.bf16.mxu0 0
    %817 = vmatpush1.bf16.msra.mxu0 0
    %818 = vmatprep.subr.bf16.mxu0 0
    %819 = vmatpush1.bf16.msra.mxu0 0
    %820 = vmatprep.mubr.bf16.mxu0 0
    %821 = vmatmul.mubr.bf16.gmra.mrb[0].mxu0 %v745
    %v822 = vpop.f32.mrb[0].mxu0
    %v823 = vadd.f32 0.0, %v822
    %v824 = vpop.f32.mrb[0].mxu0
    %v825 = vadd.f32 0.0, %v824
    %v826 = vpop.f32.mrb[0].mxu0
    %v827 = vpop.f32.mrb[0].mxu0
    %828 = vdwg.mxu0
    %v829 = vadd.f32 %v533, %v782
    %v830 = vadd.f32 %v535, %v784
    %v831 = vadd.f32 %v574, %v823
    %v832 = vadd.f32 %v576, %v825
    %v833 = vadd.f32 %v829, %v121
    %v834 = vadd.f32 %v830, %v125
    %v835 = vadd.f32 %v831, %v129
    %v836 = vadd.f32 %v832, %v133
    %v837 = vxor.u32 %v833, 2147483648
    %v838 = vmul.f32 %v837, 1.442695
    %v839 = vpow.pop %v838
    %v840 = vadd.f32 %v839, 1.0
    %v841 = vrcp.pop %v840
    %v842 = vmul.f32 1.0, %v841
    %v843 = vxor.u32 %v834, 2147483648
    %v844 = vmul.f32 %v843, 1.442695
    %v845 = vpow.pop %v844
    %v846 = vadd.f32 %v845, 1.0
    %v847 = vrcp.pop %v846
    %v848 = vmul.f32 1.0, %v847
    %v849 = vtanh.pop %v835
    %v850 = vxor.u32 %v836, 2147483648
    %v851 = vmul.f32 %v850, 1.442695
    %v852 = vpow.pop %v851
    %v853 = vadd.f32 %v852, 1.0
    %v854 = vrcp.pop %v853
    %v855 = vmul.f32 1.0, %v854
    %v856 = vmul.f32 %v848, %v286
    %v857 = vmul.f32 %v842, %v849
    %v858 = vadd.f32 %v856, %v857
    %v859 = vtanh.pop %v858
    %v860 = vmul.f32 %v855, %v859
    %v861 = vpack.c.bf16 %v860, %v860
    %862 = vmatprep.subr.bf16.mxu0 %v419
    %863 = vmatpush1.bf16.msra.mxu0 %v418
    %864 = vmatprep.subr.bf16.mxu0 %v424
    %865 = vmatpush1.bf16.msra.mxu0 %v423
    %866 = vmatprep.subr.bf16.mxu0 %v429
    %867 = vmatpush1.bf16.msra.mxu0 %v428
    %868 = vmatprep.subr.bf16.mxu0 %v434
    %869 = vmatpush1.bf16.msra.mxu0 %v433
    %870 = vmatprep.subr.bf16.mxu0 %v439
    %871 = vmatpush1.bf16.msra.mxu0 %v438
    %872 = vmatprep.subr.bf16.mxu0 %v444
    %873 = vmatpush1.bf16.msra.mxu0 %v443
    %874 = vmatprep.subr.bf16.mxu0 %v449
    %875 = vmatpush1.bf16.msra.mxu0 %v448
    %876 = vmatprep.subr.bf16.mxu0 %v454
    %877 = vmatpush1.bf16.msra.mxu0 %v453
    %878 = vmatprep.subr.bf16.mxu0 0
    %879 = vmatpush1.bf16.msra.mxu0 0
    %880 = vmatprep.subr.bf16.mxu0 0
    %881 = vmatpush1.bf16.msra.mxu0 0
    %882 = vmatprep.subr.bf16.mxu0 0
    %883 = vmatpush1.bf16.msra.mxu0 0
    %884 = vmatprep.subr.bf16.mxu0 0
    %885 = vmatpush1.bf16.msra.mxu0 0
    %886 = vmatprep.subr.bf16.mxu0 0
    %887 = vmatpush1.bf16.msra.mxu0 0
    %888 = vmatprep.subr.bf16.mxu0 0
    %889 = vmatpush1.bf16.msra.mxu0 0
    %890 = vmatprep.subr.bf16.mxu0 0
    %891 = vmatpush1.bf16.msra.mxu0 0
    %892 = vmatprep.subr.bf16.mxu0 0
    %893 = vmatpush1.bf16.msra.mxu0 0
    %894 = vmatprep.mubr.bf16.mxu0 0
    %895 = vmatmul.mubr.bf16.gmra.mrb[0].mxu0 %v861
    %v896 = vpop.f32.mrb[0].mxu0
    %v897 = vadd.f32 0.0, %v896
    %v898 = vpop.f32.mrb[0].mxu0
    %v899 = vadd.f32 0.0, %v898
    %v900 = vpop.f32.mrb[0].mxu0
    %v901 = vpop.f32.mrb[0].mxu0
    %902 = vdwg.mxu0
    %903 = vmatprep.subr.bf16.mxu0 %v421
    %904 = vmatpush1.bf16.msra.mxu0 %v420
    %905 = vmatprep.subr.bf16.mxu0 %v426
    %906 = vmatpush1.bf16.msra.mxu0 %v425
    %907 = vmatprep.subr.bf16.mxu0 %v431
    %908 = vmatpush1.bf16.msra.mxu0 %v430
    %909 = vmatprep.subr.bf16.mxu0 %v436
    %910 = vmatpush1.bf16.msra.mxu0 %v435
    %911 = vmatprep.subr.bf16.mxu0 %v441
    %912 = vmatpush1.bf16.msra.mxu0 %v440
    %913 = vmatprep.subr.bf16.mxu0 %v446
    %914 = vmatpush1.bf16.msra.mxu0 %v445
    %915 = vmatprep.subr.bf16.mxu0 %v451
    %916 = vmatpush1.bf16.msra.mxu0 %v450
    %917 = vmatprep.subr.bf16.mxu0 %v456
    %918 = vmatpush1.bf16.msra.mxu0 %v455
    %919 = vmatprep.subr.bf16.mxu0 0
    %920 = vmatpush1.bf16.msra.mxu0 0
    %921 = vmatprep.subr.bf16.mxu0 0
    %922 = vmatpush1.bf16.msra.mxu0 0
    %923 = vmatprep.subr.bf16.mxu0 0
    %924 = vmatpush1.bf16.msra.mxu0 0
    %925 = vmatprep.subr.bf16.mxu0 0
    %926 = vmatpush1.bf16.msra.mxu0 0
    %927 = vmatprep.subr.bf16.mxu0 0
    %928 = vmatpush1.bf16.msra.mxu0 0
    %929 = vmatprep.subr.bf16.mxu0 0
    %930 = vmatpush1.bf16.msra.mxu0 0
    %931 = vmatprep.subr.bf16.mxu0 0
    %932 = vmatpush1.bf16.msra.mxu0 0
    %933 = vmatprep.subr.bf16.mxu0 0
    %934 = vmatpush1.bf16.msra.mxu0 0
    %935 = vmatprep.mubr.bf16.mxu0 0
    %936 = vmatmul.mubr.bf16.gmra.mrb[0].mxu0 %v861
    %v937 = vpop.f32.mrb[0].mxu0
    %v938 = vadd.f32 0.0, %v937
    %v939 = vpop.f32.mrb[0].mxu0
    %v940 = vadd.f32 0.0, %v939
    %v941 = vpop.f32.mrb[0].mxu0
    %v942 = vpop.f32.mrb[0].mxu0
    %943 = vdwg.mxu0
    %944 = vmatprep.subr.bf16.mxu0 0
    %945 = vmatpush1.bf16.msra.mxu0 %v422
    %946 = vmatprep.subr.bf16.mxu0 0
    %947 = vmatpush1.bf16.msra.mxu0 %v427
    %948 = vmatprep.subr.bf16.mxu0 0
    %949 = vmatpush1.bf16.msra.mxu0 %v432
    %950 = vmatprep.subr.bf16.mxu0 0
    %951 = vmatpush1.bf16.msra.mxu0 %v437
    %952 = vmatprep.subr.bf16.mxu0 0
    %953 = vmatpush1.bf16.msra.mxu0 %v442
    %954 = vmatprep.subr.bf16.mxu0 0
    %955 = vmatpush1.bf16.msra.mxu0 %v447
    %956 = vmatprep.subr.bf16.mxu0 0
    %957 = vmatpush1.bf16.msra.mxu0 %v452
    %958 = vmatprep.subr.bf16.mxu0 0
    %959 = vmatpush1.bf16.msra.mxu0 %v457
    %960 = vmatprep.subr.bf16.mxu0 0
    %961 = vmatpush1.bf16.msra.mxu0 0
    %962 = vmatprep.subr.bf16.mxu0 0
    %963 = vmatpush1.bf16.msra.mxu0 0
    %964 = vmatprep.subr.bf16.mxu0 0
    %965 = vmatpush1.bf16.msra.mxu0 0
    %966 = vmatprep.subr.bf16.mxu0 0
    %967 = vmatpush1.bf16.msra.mxu0 0
    %968 = vmatprep.subr.bf16.mxu0 0
    %969 = vmatpush1.bf16.msra.mxu0 0
    %970 = vmatprep.subr.bf16.mxu0 0
    %971 = vmatpush1.bf16.msra.mxu0 0
    %972 = vmatprep.subr.bf16.mxu0 0
    %973 = vmatpush1.bf16.msra.mxu0 0
    %974 = vmatprep.subr.bf16.mxu0 0
    %975 = vmatpush1.bf16.msra.mxu0 0
    %976 = vmatprep.mubr.bf16.mxu0 0
    %977 = vmatmul.mubr.bf16.gmra.mrb[0].mxu0 %v861
    %v978 = vpop.f32.mrb[0].mxu0
    %v979 = vadd.f32 0.0, %v978
    %v980 = vpop.f32.mrb[0].mxu0
    %v981 = vpop.f32.mrb[0].mxu0
    %v982 = vpop.f32.mrb[0].mxu0
    %983 = vdwg.mxu0
    %v986 = vunpack.c.l.s4 1966171168
    %v987 = vunpack.c.0.s8 %v986
    %v988 = vlaneseq
    %v989 = vshrl.u32 %v988, 7
    %v990 = vsub.s32 %v987, %v989
    %v991 = vrot.slane %v979, %v990
    %v992 = vcombine.high %v991, %v991
    %v994 = vunpack.c.l.s4 1966171168
    %v995 = vunpack.c.0.s8 %v994
    %v996 = vlaneseq
    %v997 = vshrl.u32 %v996, 7
    %v998 = vsub.s32 %v995, %v997
    %v999 = vrot.slane %v991, %v998
    %v1001 = vunpack.c.l.s4 1966171168
    %v1002 = vunpack.c.0.s8 %v1001
    %v1003 = vlaneseq
    %v1004 = vshrl.u32 %v1003, 7
    %v1005 = vsub.s32 %v1002, %v1004
    %v1006 = vrot.slane %v992, %v1005
    %v1007 = vlaneseq
    %v1008 = vshrl.u32 %v1007, 7
    %v1009 = vsub.s32 0, %v1008
    %v1010 = vrot.slane %v999, %v1009
    %v1011 = vlaneseq
    %v1012 = vshrl.u32 %v1011, 7
    %v1013 = vsub.s32 0, %v1012
    %v1014 = vrot.slane %v1006, %v1013
    %v1017 = vadd.f32 %v56, %v1010
    %v1018 = vadd.f32 %v57, %v1014
    %v1019 = vtanh.pop %v1017
    %v1020 = vtanh.pop %v1018
    %v1021 = vmul.f32 %v1019, %v661
    %v1022 = vmul.f32 %v1020, %v661
    %v1023 = vsel %vm179, %v1021, 0.0
    %1024 = vadd.xlane.f32.xlu0 %v1023
    %v1025 = vpop.xlane.xlu0 %1024
    %v1026 = vsel %vm179, %v1022, 0.0
    %1027 = vadd.xlane.f32.xlu0 %v1026
    %v1028 = vpop.xlane.xlu0 %1027
    %v1029 = vadd.f32 %v1025, %v114
    %v1030 = vadd.f32 %v1028, %v115
    %v1031 = vsel %vm673, %v1029, -inf
    %v1032 = vsel %vm673, %v1030, -inf
    %v1033 = vmax.f32 %v1031, %v1032
    %1034 = vmax.xlane.f32.xlu0 %v1033
    %v1035 = vpop.xlane.xlu0 %1034
    %v1036 = vrot.slane %v1035, 4
    %v1037 = vmax.f32 %v1035, %v1036
    %v1038 = vrot.slane %v1037, 2
    %v1039 = vmax.f32 %v1037, %v1038
    %v1040 = vrot.slane %v1039, 1
    %v1041 = vmax.f32 %v1039, %v1040
    %s1042 = vtos %v1041
    %v1043 = vstv %s1042
    %v1044 = vsub.f32 %v1029, %v1043
    %v1045 = vsub.f32 %v1030, %v1043
    %v1046 = vmul.f32 %v1044, 1.442695
    %v1047 = vpow.pop %v1046
    %v1048 = vmul.f32 %v1045, 1.442695
    %v1049 = vpow.pop %v1048
    %v1050 = vsel %vm673, %v1047, 0.0
    %v1051 = vsel %vm673, %v1049, 0.0
    %v1052 = vadd.f32 %v1050, %v1051
    %1053 = vadd.xlane.f32.xlu0 %v1052
    %v1054 = vpop.xlane.xlu0 %1053
    %v1055 = vrot.slane %v1054, 4
    %v1056 = vadd.f32 %v1054, %v1055
    %v1057 = vrot.slane %v1056, 2
    %v1058 = vadd.f32 %v1056, %v1057
    %v1059 = vrot.slane %v1058, 1
    %v1060 = vadd.f32 %v1058, %v1059
    %s1061 = vtos %v1060
    %v1062 = vstv %s1061
    %v1063 = vrcp.pop %v1062
    %1065 = vset.pattern.permute.xlu0 0
    %1066 = vperm.xlu0 %1065, %v1047
    %v1067 = vpop.permute.xlu0 %1066
    %1070 = vset.pattern.permute.xlu0 0
    %1071 = vperm.xlu0 %1070, %v1049
    %v1072 = vpop.permute.xlu0 %1071
    %v1074 = vmul.f32 %v1067, %v56
    %v1075 = vmul.f32 %v1072, %v57
    %v1076 = vsel %vm179, %v1074, 0.0
    %v1077 = vrot.slane %v1076, 4
    %v1078 = vadd.f32 %v1076, %v1077
    %v1079 = vrot.slane %v1078, 2
    %v1080 = vadd.f32 %v1078, %v1079
    %v1081 = vrot.slane %v1080, 1
    %v1082 = vadd.f32 %v1080, %v1081
    %v1083 = vsel %vm179, %v1075, 0.0
    %v1084 = vrot.slane %v1083, 4
    %v1085 = vadd.f32 %v1083, %v1084
    %v1086 = vrot.slane %v1085, 2
    %v1087 = vadd.f32 %v1085, %v1086
    %v1088 = vrot.slane %v1087, 1
    %v1089 = vadd.f32 %v1087, %v1088
    %v1090 = vmul.f32 %v1082, %v1063
    %v1091 = vmul.f32 %v1089, %v1063
    %v1092 = vpack.c.bf16 %v1090, %v1090
    %v1093 = vpack.c.bf16 %v1091, %v1091
    %v1096 = vunpack.c.l.b16 %v1092
    %v1097 = vunpack.c.l.b16 %v1093
    %v1098 = vsel %vm741, %v1097, %v1096
    %v1099 = vpack.c.b16 %v1098, %v1098
    %v1101 = vsel %vm179, %v1099, 0
    %1103 = vmatprep.subr.bf16.mxu0 %v164
    %1104 = vmatpush1.bf16.msra.mxu0 %v163
    %1105 = vmatprep.subr.bf16.mxu0 %v168
    %1106 = vmatpush1.bf16.msra.mxu0 %v167
    %1107 = vmatprep.subr.bf16.mxu0 0
    %1108 = vmatpush1.bf16.msra.mxu0 0
    %1109 = vmatprep.subr.bf16.mxu0 0
    %1110 = vmatpush1.bf16.msra.mxu0 0
    %1111 = vmatprep.subr.bf16.mxu0 0
    %1112 = vmatpush1.bf16.msra.mxu0 0
    %1113 = vmatprep.subr.bf16.mxu0 0
    %1114 = vmatpush1.bf16.msra.mxu0 0
    %1115 = vmatprep.subr.bf16.mxu0 0
    %1116 = vmatpush1.bf16.msra.mxu0 0
    %1117 = vmatprep.subr.bf16.mxu0 0
    %1118 = vmatpush1.bf16.msra.mxu0 0
    %1119 = vmatprep.subr.bf16.mxu0 0
    %1120 = vmatpush1.bf16.msra.mxu0 0
    %1121 = vmatprep.subr.bf16.mxu0 0
    %1122 = vmatpush1.bf16.msra.mxu0 0
    %1123 = vmatprep.subr.bf16.mxu0 0
    %1124 = vmatpush1.bf16.msra.mxu0 0
    %1125 = vmatprep.subr.bf16.mxu0 0
    %1126 = vmatpush1.bf16.msra.mxu0 0
    %1127 = vmatprep.subr.bf16.mxu0 0
    %1128 = vmatpush1.bf16.msra.mxu0 0
    %1129 = vmatprep.subr.bf16.mxu0 0
    %1130 = vmatpush1.bf16.msra.mxu0 0
    %1131 = vmatprep.subr.bf16.mxu0 0
    %1132 = vmatpush1.bf16.msra.mxu0 0
    %1133 = vmatprep.subr.bf16.mxu0 0
    %1134 = vmatpush1.bf16.msra.mxu0 0
    %1135 = vmatprep.mubr.bf16.mxu0 0
    %1136 = vmatmul.mubr.bf16.gmra.mrb[0].mxu0 %v1101
    %v1137 = vpop.f32.mrb[0].mxu0
    %v1138 = vadd.f32 0.0, %v1137
    %v1139 = vpop.f32.mrb[0].mxu0
    %v1140 = vadd.f32 0.0, %v1139
    %v1141 = vpop.f32.mrb[0].mxu0
    %v1142 = vpop.f32.mrb[0].mxu0
    %1143 = vdwg.mxu0
    %1144 = vmatprep.subr.bf16.mxu0 %v166
    %1145 = vmatpush1.bf16.msra.mxu0 %v165
    %1146 = vmatprep.subr.bf16.mxu0 %v170
    %1147 = vmatpush1.bf16.msra.mxu0 %v169
    %1148 = vmatprep.subr.bf16.mxu0 0
    %1149 = vmatpush1.bf16.msra.mxu0 0
    %1150 = vmatprep.subr.bf16.mxu0 0
    %1151 = vmatpush1.bf16.msra.mxu0 0
    %1152 = vmatprep.subr.bf16.mxu0 0
    %1153 = vmatpush1.bf16.msra.mxu0 0
    %1154 = vmatprep.subr.bf16.mxu0 0
    %1155 = vmatpush1.bf16.msra.mxu0 0
    %1156 = vmatprep.subr.bf16.mxu0 0
    %1157 = vmatpush1.bf16.msra.mxu0 0
    %1158 = vmatprep.subr.bf16.mxu0 0
    %1159 = vmatpush1.bf16.msra.mxu0 0
    %1160 = vmatprep.subr.bf16.mxu0 0
    %1161 = vmatpush1.bf16.msra.mxu0 0
    %1162 = vmatprep.subr.bf16.mxu0 0
    %1163 = vmatpush1.bf16.msra.mxu0 0
    %1164 = vmatprep.subr.bf16.mxu0 0
    %1165 = vmatpush1.bf16.msra.mxu0 0
    %1166 = vmatprep.subr.bf16.mxu0 0
    %1167 = vmatpush1.bf16.msra.mxu0 0
    %1168 = vmatprep.subr.bf16.mxu0 0
    %1169 = vmatpush1.bf16.msra.mxu0 0
    %1170 = vmatprep.subr.bf16.mxu0 0
    %1171 = vmatpush1.bf16.msra.mxu0 0
    %1172 = vmatprep.subr.bf16.mxu0 0
    %1173 = vmatpush1.bf16.msra.mxu0 0
    %1174 = vmatprep.subr.bf16.mxu0 0
    %1175 = vmatpush1.bf16.msra.mxu0 0
    %1176 = vmatprep.mubr.bf16.mxu0 0
    %1177 = vmatmul.mubr.bf16.gmra.mrb[0].mxu0 %v1101
    %v1178 = vpop.f32.mrb[0].mxu0
    %v1179 = vadd.f32 0.0, %v1178
    %v1180 = vpop.f32.mrb[0].mxu0
    %v1181 = vadd.f32 0.0, %v1180
    %v1182 = vpop.f32.mrb[0].mxu0
    %v1183 = vpop.f32.mrb[0].mxu0
    %1184 = vdwg.mxu0
    %v1185 = vadd.f32 %v897, %v1138
    %v1186 = vadd.f32 %v899, %v1140
    %v1187 = vadd.f32 %v938, %v1179
    %v1188 = vadd.f32 %v940, %v1181
    %v1189 = vadd.f32 %v1185, %v121
    %v1190 = vadd.f32 %v1186, %v125
    %v1191 = vadd.f32 %v1187, %v129
    %v1192 = vadd.f32 %v1188, %v133
    %v1193 = vxor.u32 %v1189, 2147483648
    %v1194 = vmul.f32 %v1193, 1.442695
    %v1195 = vpow.pop %v1194
    %v1196 = vadd.f32 %v1195, 1.0
    %v1197 = vrcp.pop %v1196
    %v1198 = vmul.f32 1.0, %v1197
    %v1199 = vxor.u32 %v1190, 2147483648
    %v1200 = vmul.f32 %v1199, 1.442695
    %v1201 = vpow.pop %v1200
    %v1202 = vadd.f32 %v1201, 1.0
    %v1203 = vrcp.pop %v1202
    %v1204 = vmul.f32 1.0, %v1203
    %v1205 = vtanh.pop %v1191
    %v1206 = vxor.u32 %v1192, 2147483648
    %v1207 = vmul.f32 %v1206, 1.442695
    %v1208 = vpow.pop %v1207
    %v1209 = vadd.f32 %v1208, 1.0
    %v1210 = vrcp.pop %v1209
    %v1211 = vmul.f32 1.0, %v1210
    %v1212 = vmul.f32 %v1204, %v858
    %v1213 = vmul.f32 %v1198, %v1205
    %v1214 = vadd.f32 %v1212, %v1213
    %v1215 = vtanh.pop %v1214
    %v1216 = vmul.f32 %v1211, %v1215
    %v1217 = vpack.c.bf16 %v1216, %v1216
    %1218 = vmatprep.subr.bf16.mxu0 %v419
    %1219 = vmatpush1.bf16.msra.mxu0 %v418
    %1220 = vmatprep.subr.bf16.mxu0 %v424
    %1221 = vmatpush1.bf16.msra.mxu0 %v423
    %1222 = vmatprep.subr.bf16.mxu0 %v429
    %1223 = vmatpush1.bf16.msra.mxu0 %v428
    %1224 = vmatprep.subr.bf16.mxu0 %v434
    %1225 = vmatpush1.bf16.msra.mxu0 %v433
    %1226 = vmatprep.subr.bf16.mxu0 %v439
    %1227 = vmatpush1.bf16.msra.mxu0 %v438
    %1228 = vmatprep.subr.bf16.mxu0 %v444
    %1229 = vmatpush1.bf16.msra.mxu0 %v443
    %1230 = vmatprep.subr.bf16.mxu0 %v449
    %1231 = vmatpush1.bf16.msra.mxu0 %v448
    %1232 = vmatprep.subr.bf16.mxu0 %v454
    %1233 = vmatpush1.bf16.msra.mxu0 %v453
    %1234 = vmatprep.subr.bf16.mxu0 0
    %1235 = vmatpush1.bf16.msra.mxu0 0
    %1236 = vmatprep.subr.bf16.mxu0 0
    %1237 = vmatpush1.bf16.msra.mxu0 0
    %1238 = vmatprep.subr.bf16.mxu0 0
    %1239 = vmatpush1.bf16.msra.mxu0 0
    %1240 = vmatprep.subr.bf16.mxu0 0
    %1241 = vmatpush1.bf16.msra.mxu0 0
    %1242 = vmatprep.subr.bf16.mxu0 0
    %1243 = vmatpush1.bf16.msra.mxu0 0
    %1244 = vmatprep.subr.bf16.mxu0 0
    %1245 = vmatpush1.bf16.msra.mxu0 0
    %1246 = vmatprep.subr.bf16.mxu0 0
    %1247 = vmatpush1.bf16.msra.mxu0 0
    %1248 = vmatprep.subr.bf16.mxu0 0
    %1249 = vmatpush1.bf16.msra.mxu0 0
    %1250 = vmatprep.mubr.bf16.mxu0 0
    %1251 = vmatmul.mubr.bf16.gmra.mrb[0].mxu0 %v1217
    %v1252 = vpop.f32.mrb[0].mxu0
    %v1253 = vadd.f32 0.0, %v1252
    %v1254 = vpop.f32.mrb[0].mxu0
    %v1255 = vadd.f32 0.0, %v1254
    %v1256 = vpop.f32.mrb[0].mxu0
    %v1257 = vpop.f32.mrb[0].mxu0
    %1258 = vdwg.mxu0
    %1259 = vmatprep.subr.bf16.mxu0 %v421
    %1260 = vmatpush1.bf16.msra.mxu0 %v420
    %1261 = vmatprep.subr.bf16.mxu0 %v426
    %1262 = vmatpush1.bf16.msra.mxu0 %v425
    %1263 = vmatprep.subr.bf16.mxu0 %v431
    %1264 = vmatpush1.bf16.msra.mxu0 %v430
    %1265 = vmatprep.subr.bf16.mxu0 %v436
    %1266 = vmatpush1.bf16.msra.mxu0 %v435
    %1267 = vmatprep.subr.bf16.mxu0 %v441
    %1268 = vmatpush1.bf16.msra.mxu0 %v440
    %1269 = vmatprep.subr.bf16.mxu0 %v446
    %1270 = vmatpush1.bf16.msra.mxu0 %v445
    %1271 = vmatprep.subr.bf16.mxu0 %v451
    %1272 = vmatpush1.bf16.msra.mxu0 %v450
    %1273 = vmatprep.subr.bf16.mxu0 %v456
    %1274 = vmatpush1.bf16.msra.mxu0 %v455
    %1275 = vmatprep.subr.bf16.mxu0 0
    %1276 = vmatpush1.bf16.msra.mxu0 0
    %1277 = vmatprep.subr.bf16.mxu0 0
    %1278 = vmatpush1.bf16.msra.mxu0 0
    %1279 = vmatprep.subr.bf16.mxu0 0
    %1280 = vmatpush1.bf16.msra.mxu0 0
    %1281 = vmatprep.subr.bf16.mxu0 0
    %1282 = vmatpush1.bf16.msra.mxu0 0
    %1283 = vmatprep.subr.bf16.mxu0 0
    %1284 = vmatpush1.bf16.msra.mxu0 0
    %1285 = vmatprep.subr.bf16.mxu0 0
    %1286 = vmatpush1.bf16.msra.mxu0 0
    %1287 = vmatprep.subr.bf16.mxu0 0
    %1288 = vmatpush1.bf16.msra.mxu0 0
    %1289 = vmatprep.subr.bf16.mxu0 0
    %1290 = vmatpush1.bf16.msra.mxu0 0
    %1291 = vmatprep.mubr.bf16.mxu0 0
    %1292 = vmatmul.mubr.bf16.gmra.mrb[0].mxu0 %v1217
    %v1293 = vpop.f32.mrb[0].mxu0
    %v1294 = vadd.f32 0.0, %v1293
    %v1295 = vpop.f32.mrb[0].mxu0
    %v1296 = vadd.f32 0.0, %v1295
    %v1297 = vpop.f32.mrb[0].mxu0
    %v1298 = vpop.f32.mrb[0].mxu0
    %1299 = vdwg.mxu0
    %1300 = vmatprep.subr.bf16.mxu0 0
    %1301 = vmatpush1.bf16.msra.mxu0 %v422
    %1302 = vmatprep.subr.bf16.mxu0 0
    %1303 = vmatpush1.bf16.msra.mxu0 %v427
    %1304 = vmatprep.subr.bf16.mxu0 0
    %1305 = vmatpush1.bf16.msra.mxu0 %v432
    %1306 = vmatprep.subr.bf16.mxu0 0
    %1307 = vmatpush1.bf16.msra.mxu0 %v437
    %1308 = vmatprep.subr.bf16.mxu0 0
    %1309 = vmatpush1.bf16.msra.mxu0 %v442
    %1310 = vmatprep.subr.bf16.mxu0 0
    %1311 = vmatpush1.bf16.msra.mxu0 %v447
    %1312 = vmatprep.subr.bf16.mxu0 0
    %1313 = vmatpush1.bf16.msra.mxu0 %v452
    %1314 = vmatprep.subr.bf16.mxu0 0
    %1315 = vmatpush1.bf16.msra.mxu0 %v457
    %1316 = vmatprep.subr.bf16.mxu0 0
    %1317 = vmatpush1.bf16.msra.mxu0 0
    %1318 = vmatprep.subr.bf16.mxu0 0
    %1319 = vmatpush1.bf16.msra.mxu0 0
    %1320 = vmatprep.subr.bf16.mxu0 0
    %1321 = vmatpush1.bf16.msra.mxu0 0
    %1322 = vmatprep.subr.bf16.mxu0 0
    %1323 = vmatpush1.bf16.msra.mxu0 0
    %1324 = vmatprep.subr.bf16.mxu0 0
    %1325 = vmatpush1.bf16.msra.mxu0 0
    %1326 = vmatprep.subr.bf16.mxu0 0
    %1327 = vmatpush1.bf16.msra.mxu0 0
    %1328 = vmatprep.subr.bf16.mxu0 0
    %1329 = vmatpush1.bf16.msra.mxu0 0
    %1330 = vmatprep.subr.bf16.mxu0 0
    %1331 = vmatpush1.bf16.msra.mxu0 0
    %1332 = vmatprep.mubr.bf16.mxu0 0
    %1333 = vmatmul.mubr.bf16.gmra.mrb[0].mxu0 %v1217
    %v1334 = vpop.f32.mrb[0].mxu0
    %v1335 = vadd.f32 0.0, %v1334
    %v1336 = vpop.f32.mrb[0].mxu0
    %v1337 = vpop.f32.mrb[0].mxu0
    %v1338 = vpop.f32.mrb[0].mxu0
    %1339 = vdwg.mxu0
    %v1342 = vunpack.c.l.s4 1966171168
    %v1343 = vunpack.c.0.s8 %v1342
    %v1344 = vlaneseq
    %v1345 = vshrl.u32 %v1344, 7
    %v1346 = vsub.s32 %v1343, %v1345
    %v1347 = vrot.slane %v1335, %v1346
    %v1348 = vcombine.high %v1347, %v1347
    %v1350 = vunpack.c.l.s4 1966171168
    %v1351 = vunpack.c.0.s8 %v1350
    %v1352 = vlaneseq
    %v1353 = vshrl.u32 %v1352, 7
    %v1354 = vsub.s32 %v1351, %v1353
    %v1355 = vrot.slane %v1347, %v1354
    %v1357 = vunpack.c.l.s4 1966171168
    %v1358 = vunpack.c.0.s8 %v1357
    %v1359 = vlaneseq
    %v1360 = vshrl.u32 %v1359, 7
    %v1361 = vsub.s32 %v1358, %v1360
    %v1362 = vrot.slane %v1348, %v1361
    %v1363 = vlaneseq
    %v1364 = vshrl.u32 %v1363, 7
    %v1365 = vsub.s32 0, %v1364
    %v1366 = vrot.slane %v1355, %v1365
    %v1367 = vlaneseq
    %v1368 = vshrl.u32 %v1367, 7
    %v1369 = vsub.s32 0, %v1368
    %v1370 = vrot.slane %v1362, %v1369
    %v1373 = vadd.f32 %v56, %v1366
    %v1374 = vadd.f32 %v57, %v1370
    %v1375 = vtanh.pop %v1373
    %v1376 = vtanh.pop %v1374
    %v1377 = vmul.f32 %v1375, %v661
    %v1378 = vmul.f32 %v1376, %v661
    %v1379 = vsel %vm179, %v1377, 0.0
    %1380 = vadd.xlane.f32.xlu0 %v1379
    %v1381 = vpop.xlane.xlu0 %1380
    %v1382 = vsel %vm179, %v1378, 0.0
    %1383 = vadd.xlane.f32.xlu0 %v1382
    %v1384 = vpop.xlane.xlu0 %1383
    %v1385 = vadd.f32 %v1381, %v114
    %v1386 = vadd.f32 %v1384, %v115
    %v1387 = vsel %vm673, %v1385, -inf
    %v1388 = vsel %vm673, %v1386, -inf
    %v1389 = vmax.f32 %v1387, %v1388
    %1390 = vmax.xlane.f32.xlu0 %v1389
    %v1391 = vpop.xlane.xlu0 %1390
    %v1392 = vrot.slane %v1391, 4
    %v1393 = vmax.f32 %v1391, %v1392
    %v1394 = vrot.slane %v1393, 2
    %v1395 = vmax.f32 %v1393, %v1394
    %v1396 = vrot.slane %v1395, 1
    %v1397 = vmax.f32 %v1395, %v1396
    %s1398 = vtos %v1397
    %v1399 = vstv %s1398
    %v1400 = vsub.f32 %v1385, %v1399
    %v1401 = vsub.f32 %v1386, %v1399
    %v1402 = vmul.f32 %v1400, 1.442695
    %v1403 = vpow.pop %v1402
    %v1404 = vmul.f32 %v1401, 1.442695
    %v1405 = vpow.pop %v1404
    %v1406 = vsel %vm673, %v1403, 0.0
    %v1407 = vsel %vm673, %v1405, 0.0
    %v1408 = vadd.f32 %v1406, %v1407
    %1409 = vadd.xlane.f32.xlu0 %v1408
    %v1410 = vpop.xlane.xlu0 %1409
    %v1411 = vrot.slane %v1410, 4
    %v1412 = vadd.f32 %v1410, %v1411
    %v1413 = vrot.slane %v1412, 2
    %v1414 = vadd.f32 %v1412, %v1413
    %v1415 = vrot.slane %v1414, 1
    %v1416 = vadd.f32 %v1414, %v1415
    %s1417 = vtos %v1416
    %v1418 = vstv %s1417
    %v1419 = vrcp.pop %v1418
    %1421 = vset.pattern.permute.xlu0 0
    %1422 = vperm.xlu0 %1421, %v1403
    %v1423 = vpop.permute.xlu0 %1422
    %1426 = vset.pattern.permute.xlu0 0
    %1427 = vperm.xlu0 %1426, %v1405
    %v1428 = vpop.permute.xlu0 %1427
    %v1430 = vmul.f32 %v1423, %v56
    %v1431 = vmul.f32 %v1428, %v57
    %v1432 = vsel %vm179, %v1430, 0.0
    %v1433 = vrot.slane %v1432, 4
    %v1434 = vadd.f32 %v1432, %v1433
    %v1435 = vrot.slane %v1434, 2
    %v1436 = vadd.f32 %v1434, %v1435
    %v1437 = vrot.slane %v1436, 1
    %v1438 = vadd.f32 %v1436, %v1437
    %v1439 = vsel %vm179, %v1431, 0.0
    %v1440 = vrot.slane %v1439, 4
    %v1441 = vadd.f32 %v1439, %v1440
    %v1442 = vrot.slane %v1441, 2
    %v1443 = vadd.f32 %v1441, %v1442
    %v1444 = vrot.slane %v1443, 1
    %v1445 = vadd.f32 %v1443, %v1444
    %v1446 = vmul.f32 %v1438, %v1419
    %v1447 = vmul.f32 %v1445, %v1419
    %v1448 = vpack.c.bf16 %v1446, %v1446
    %v1449 = vpack.c.bf16 %v1447, %v1447
    %v1452 = vunpack.c.l.b16 %v1448
    %v1453 = vunpack.c.l.b16 %v1449
    %v1454 = vsel %vm741, %v1453, %v1452
    %v1455 = vpack.c.b16 %v1454, %v1454
    %v1457 = vsel %vm179, %v1455, 0
    %1459 = vmatprep.subr.bf16.mxu0 %v164
    %1460 = vmatpush1.bf16.msra.mxu0 %v163
    %1461 = vmatprep.subr.bf16.mxu0 %v168
    %1462 = vmatpush1.bf16.msra.mxu0 %v167
    %1463 = vmatprep.subr.bf16.mxu0 0
    %1464 = vmatpush1.bf16.msra.mxu0 0
    %1465 = vmatprep.subr.bf16.mxu0 0
    %1466 = vmatpush1.bf16.msra.mxu0 0
    %1467 = vmatprep.subr.bf16.mxu0 0
    %1468 = vmatpush1.bf16.msra.mxu0 0
    %1469 = vmatprep.subr.bf16.mxu0 0
    %1470 = vmatpush1.bf16.msra.mxu0 0
    %1471 = vmatprep.subr.bf16.mxu0 0
    %1472 = vmatpush1.bf16.msra.mxu0 0
    %1473 = vmatprep.subr.bf16.mxu0 0
    %1474 = vmatpush1.bf16.msra.mxu0 0
    %1475 = vmatprep.subr.bf16.mxu0 0
    %1476 = vmatpush1.bf16.msra.mxu0 0
    %1477 = vmatprep.subr.bf16.mxu0 0
    %1478 = vmatpush1.bf16.msra.mxu0 0
    %1479 = vmatprep.subr.bf16.mxu0 0
    %1480 = vmatpush1.bf16.msra.mxu0 0
    %1481 = vmatprep.subr.bf16.mxu0 0
    %1482 = vmatpush1.bf16.msra.mxu0 0
    %1483 = vmatprep.subr.bf16.mxu0 0
    %1484 = vmatpush1.bf16.msra.mxu0 0
    %1485 = vmatprep.subr.bf16.mxu0 0
    %1486 = vmatpush1.bf16.msra.mxu0 0
    %1487 = vmatprep.subr.bf16.mxu0 0
    %1488 = vmatpush1.bf16.msra.mxu0 0
    %1489 = vmatprep.subr.bf16.mxu0 0
    %1490 = vmatpush1.bf16.msra.mxu0 0
    %1491 = vmatprep.mubr.bf16.mxu0 0
    %1492 = vmatmul.mubr.bf16.gmra.mrb[0].mxu0 %v1457
    %v1493 = vpop.f32.mrb[0].mxu0
    %v1494 = vadd.f32 0.0, %v1493
    %v1495 = vpop.f32.mrb[0].mxu0
    %v1496 = vadd.f32 0.0, %v1495
    %v1497 = vpop.f32.mrb[0].mxu0
    %v1498 = vpop.f32.mrb[0].mxu0
    %1499 = vdwg.mxu0
    %1500 = vmatprep.subr.bf16.mxu0 %v166
    %1501 = vmatpush1.bf16.msra.mxu0 %v165
    %1502 = vmatprep.subr.bf16.mxu0 %v170
    %1503 = vmatpush1.bf16.msra.mxu0 %v169
    %1504 = vmatprep.subr.bf16.mxu0 0
    %1505 = vmatpush1.bf16.msra.mxu0 0
    %1506 = vmatprep.subr.bf16.mxu0 0
    %1507 = vmatpush1.bf16.msra.mxu0 0
    %1508 = vmatprep.subr.bf16.mxu0 0
    %1509 = vmatpush1.bf16.msra.mxu0 0
    %1510 = vmatprep.subr.bf16.mxu0 0
    %1511 = vmatpush1.bf16.msra.mxu0 0
    %1512 = vmatprep.subr.bf16.mxu0 0
    %1513 = vmatpush1.bf16.msra.mxu0 0
    %1514 = vmatprep.subr.bf16.mxu0 0
    %1515 = vmatpush1.bf16.msra.mxu0 0
    %1516 = vmatprep.subr.bf16.mxu0 0
    %1517 = vmatpush1.bf16.msra.mxu0 0
    %1518 = vmatprep.subr.bf16.mxu0 0
    %1519 = vmatpush1.bf16.msra.mxu0 0
    %1520 = vmatprep.subr.bf16.mxu0 0
    %1521 = vmatpush1.bf16.msra.mxu0 0
    %1522 = vmatprep.subr.bf16.mxu0 0
    %1523 = vmatpush1.bf16.msra.mxu0 0
    %1524 = vmatprep.subr.bf16.mxu0 0
    %1525 = vmatpush1.bf16.msra.mxu0 0
    %1526 = vmatprep.subr.bf16.mxu0 0
    %1527 = vmatpush1.bf16.msra.mxu0 0
    %1528 = vmatprep.subr.bf16.mxu0 0
    %1529 = vmatpush1.bf16.msra.mxu0 0
    %1530 = vmatprep.subr.bf16.mxu0 0
    %1531 = vmatpush1.bf16.msra.mxu0 0
    %1532 = vmatprep.mubr.bf16.mxu0 0
    %1533 = vmatmul.mubr.bf16.gmra.mrb[0].mxu0 %v1457
    %v1534 = vpop.f32.mrb[0].mxu0
    %v1535 = vadd.f32 0.0, %v1534
    %v1536 = vpop.f32.mrb[0].mxu0
    %v1537 = vadd.f32 0.0, %v1536
    %v1538 = vpop.f32.mrb[0].mxu0
    %v1539 = vpop.f32.mrb[0].mxu0
    %1540 = vdwg.mxu0
    %v1541 = vadd.f32 %v1253, %v1494
    %v1542 = vadd.f32 %v1255, %v1496
    %v1543 = vadd.f32 %v1294, %v1535
    %v1544 = vadd.f32 %v1296, %v1537
    %v1545 = vadd.f32 %v1541, %v121
    %v1546 = vadd.f32 %v1542, %v125
    %v1547 = vadd.f32 %v1543, %v129
    %v1548 = vadd.f32 %v1544, %v133
    %v1549 = vxor.u32 %v1545, 2147483648
    %v1550 = vmul.f32 %v1549, 1.442695
    %v1551 = vpow.pop %v1550
    %v1552 = vadd.f32 %v1551, 1.0
    %v1553 = vrcp.pop %v1552
    %v1554 = vmul.f32 1.0, %v1553
    %v1555 = vxor.u32 %v1546, 2147483648
    %v1556 = vmul.f32 %v1555, 1.442695
    %v1557 = vpow.pop %v1556
    %v1558 = vadd.f32 %v1557, 1.0
    %v1559 = vrcp.pop %v1558
    %v1560 = vmul.f32 1.0, %v1559
    %v1561 = vtanh.pop %v1547
    %v1562 = vxor.u32 %v1548, 2147483648
    %v1563 = vmul.f32 %v1562, 1.442695
    %v1564 = vpow.pop %v1563
    %v1565 = vadd.f32 %v1564, 1.0
    %v1566 = vrcp.pop %v1565
    %v1567 = vmul.f32 1.0, %v1566
    %v1568 = vmul.f32 %v1560, %v1214
    %v1569 = vmul.f32 %v1554, %v1561
    %v1570 = vadd.f32 %v1568, %v1569
    %v1571 = vtanh.pop %v1570
    %v1572 = vmul.f32 %v1567, %v1571
    %v1573 = vpack.c.bf16 %v1572, %v1572
    %1574 = vmatprep.subr.bf16.mxu0 %v419
    %1575 = vmatpush1.bf16.msra.mxu0 %v418
    %1576 = vmatprep.subr.bf16.mxu0 %v424
    %1577 = vmatpush1.bf16.msra.mxu0 %v423
    %1578 = vmatprep.subr.bf16.mxu0 %v429
    %1579 = vmatpush1.bf16.msra.mxu0 %v428
    %1580 = vmatprep.subr.bf16.mxu0 %v434
    %1581 = vmatpush1.bf16.msra.mxu0 %v433
    %1582 = vmatprep.subr.bf16.mxu0 %v439
    %1583 = vmatpush1.bf16.msra.mxu0 %v438
    %1584 = vmatprep.subr.bf16.mxu0 %v444
    %1585 = vmatpush1.bf16.msra.mxu0 %v443
    %1586 = vmatprep.subr.bf16.mxu0 %v449
    %1587 = vmatpush1.bf16.msra.mxu0 %v448
    %1588 = vmatprep.subr.bf16.mxu0 %v454
    %1589 = vmatpush1.bf16.msra.mxu0 %v453
    %1590 = vmatprep.subr.bf16.mxu0 0
    %1591 = vmatpush1.bf16.msra.mxu0 0
    %1592 = vmatprep.subr.bf16.mxu0 0
    %1593 = vmatpush1.bf16.msra.mxu0 0
    %1594 = vmatprep.subr.bf16.mxu0 0
    %1595 = vmatpush1.bf16.msra.mxu0 0
    %1596 = vmatprep.subr.bf16.mxu0 0
    %1597 = vmatpush1.bf16.msra.mxu0 0
    %1598 = vmatprep.subr.bf16.mxu0 0
    %1599 = vmatpush1.bf16.msra.mxu0 0
    %1600 = vmatprep.subr.bf16.mxu0 0
    %1601 = vmatpush1.bf16.msra.mxu0 0
    %1602 = vmatprep.subr.bf16.mxu0 0
    %1603 = vmatpush1.bf16.msra.mxu0 0
    %1604 = vmatprep.subr.bf16.mxu0 0
    %1605 = vmatpush1.bf16.msra.mxu0 0
    %1606 = vmatprep.mubr.bf16.mxu0 0
    %1607 = vmatmul.mubr.bf16.gmra.mrb[0].mxu0 %v1573
    %v1608 = vpop.f32.mrb[0].mxu0
    %v1609 = vadd.f32 0.0, %v1608
    %v1610 = vpop.f32.mrb[0].mxu0
    %v1611 = vadd.f32 0.0, %v1610
    %v1612 = vpop.f32.mrb[0].mxu0
    %v1613 = vpop.f32.mrb[0].mxu0
    %1614 = vdwg.mxu0
    %1615 = vmatprep.subr.bf16.mxu0 %v421
    %1616 = vmatpush1.bf16.msra.mxu0 %v420
    %1617 = vmatprep.subr.bf16.mxu0 %v426
    %1618 = vmatpush1.bf16.msra.mxu0 %v425
    %1619 = vmatprep.subr.bf16.mxu0 %v431
    %1620 = vmatpush1.bf16.msra.mxu0 %v430
    %1621 = vmatprep.subr.bf16.mxu0 %v436
    %1622 = vmatpush1.bf16.msra.mxu0 %v435
    %1623 = vmatprep.subr.bf16.mxu0 %v441
    %1624 = vmatpush1.bf16.msra.mxu0 %v440
    %1625 = vmatprep.subr.bf16.mxu0 %v446
    %1626 = vmatpush1.bf16.msra.mxu0 %v445
    %1627 = vmatprep.subr.bf16.mxu0 %v451
    %1628 = vmatpush1.bf16.msra.mxu0 %v450
    %1629 = vmatprep.subr.bf16.mxu0 %v456
    %1630 = vmatpush1.bf16.msra.mxu0 %v455
    %1631 = vmatprep.subr.bf16.mxu0 0
    %1632 = vmatpush1.bf16.msra.mxu0 0
    %1633 = vmatprep.subr.bf16.mxu0 0
    %1634 = vmatpush1.bf16.msra.mxu0 0
    %1635 = vmatprep.subr.bf16.mxu0 0
    %1636 = vmatpush1.bf16.msra.mxu0 0
    %1637 = vmatprep.subr.bf16.mxu0 0
    %1638 = vmatpush1.bf16.msra.mxu0 0
    %1639 = vmatprep.subr.bf16.mxu0 0
    %1640 = vmatpush1.bf16.msra.mxu0 0
    %1641 = vmatprep.subr.bf16.mxu0 0
    %1642 = vmatpush1.bf16.msra.mxu0 0
    %1643 = vmatprep.subr.bf16.mxu0 0
    %1644 = vmatpush1.bf16.msra.mxu0 0
    %1645 = vmatprep.subr.bf16.mxu0 0
    %1646 = vmatpush1.bf16.msra.mxu0 0
    %1647 = vmatprep.mubr.bf16.mxu0 0
    %1648 = vmatmul.mubr.bf16.gmra.mrb[0].mxu0 %v1573
    %v1649 = vpop.f32.mrb[0].mxu0
    %v1650 = vadd.f32 0.0, %v1649
    %v1651 = vpop.f32.mrb[0].mxu0
    %v1652 = vadd.f32 0.0, %v1651
    %v1653 = vpop.f32.mrb[0].mxu0
    %v1654 = vpop.f32.mrb[0].mxu0
    %1655 = vdwg.mxu0
    %1656 = vmatprep.subr.bf16.mxu0 0
    %1657 = vmatpush1.bf16.msra.mxu0 %v422
    %1658 = vmatprep.subr.bf16.mxu0 0
    %1659 = vmatpush1.bf16.msra.mxu0 %v427
    %1660 = vmatprep.subr.bf16.mxu0 0
    %1661 = vmatpush1.bf16.msra.mxu0 %v432
    %1662 = vmatprep.subr.bf16.mxu0 0
    %1663 = vmatpush1.bf16.msra.mxu0 %v437
    %1664 = vmatprep.subr.bf16.mxu0 0
    %1665 = vmatpush1.bf16.msra.mxu0 %v442
    %1666 = vmatprep.subr.bf16.mxu0 0
    %1667 = vmatpush1.bf16.msra.mxu0 %v447
    %1668 = vmatprep.subr.bf16.mxu0 0
    %1669 = vmatpush1.bf16.msra.mxu0 %v452
    %1670 = vmatprep.subr.bf16.mxu0 0
    %1671 = vmatpush1.bf16.msra.mxu0 %v457
    %1672 = vmatprep.subr.bf16.mxu0 0
    %1673 = vmatpush1.bf16.msra.mxu0 0
    %1674 = vmatprep.subr.bf16.mxu0 0
    %1675 = vmatpush1.bf16.msra.mxu0 0
    %1676 = vmatprep.subr.bf16.mxu0 0
    %1677 = vmatpush1.bf16.msra.mxu0 0
    %1678 = vmatprep.subr.bf16.mxu0 0
    %1679 = vmatpush1.bf16.msra.mxu0 0
    %1680 = vmatprep.subr.bf16.mxu0 0
    %1681 = vmatpush1.bf16.msra.mxu0 0
    %1682 = vmatprep.subr.bf16.mxu0 0
    %1683 = vmatpush1.bf16.msra.mxu0 0
    %1684 = vmatprep.subr.bf16.mxu0 0
    %1685 = vmatpush1.bf16.msra.mxu0 0
    %1686 = vmatprep.subr.bf16.mxu0 0
    %1687 = vmatpush1.bf16.msra.mxu0 0
    %1688 = vmatprep.mubr.bf16.mxu0 0
    %1689 = vmatmul.mubr.bf16.gmra.mrb[0].mxu0 %v1573
    %v1690 = vpop.f32.mrb[0].mxu0
    %v1691 = vadd.f32 0.0, %v1690
    %v1692 = vpop.f32.mrb[0].mxu0
    %v1693 = vpop.f32.mrb[0].mxu0
    %v1694 = vpop.f32.mrb[0].mxu0
    %1695 = vdwg.mxu0
    %v1698 = vunpack.c.l.s4 1966171168
    %v1699 = vunpack.c.0.s8 %v1698
    %v1700 = vlaneseq
    %v1701 = vshrl.u32 %v1700, 7
    %v1702 = vsub.s32 %v1699, %v1701
    %v1703 = vrot.slane %v1691, %v1702
    %v1704 = vcombine.high %v1703, %v1703
    %v1706 = vunpack.c.l.s4 1966171168
    %v1707 = vunpack.c.0.s8 %v1706
    %v1708 = vlaneseq
    %v1709 = vshrl.u32 %v1708, 7
    %v1710 = vsub.s32 %v1707, %v1709
    %v1711 = vrot.slane %v1703, %v1710
    %v1713 = vunpack.c.l.s4 1966171168
    %v1714 = vunpack.c.0.s8 %v1713
    %v1715 = vlaneseq
    %v1716 = vshrl.u32 %v1715, 7
    %v1717 = vsub.s32 %v1714, %v1716
    %v1718 = vrot.slane %v1704, %v1717
    %v1719 = vlaneseq
    %v1720 = vshrl.u32 %v1719, 7
    %v1721 = vsub.s32 0, %v1720
    %v1722 = vrot.slane %v1711, %v1721
    %v1723 = vlaneseq
    %v1724 = vshrl.u32 %v1723, 7
    %v1725 = vsub.s32 0, %v1724
    %v1726 = vrot.slane %v1718, %v1725
    %v1729 = vadd.f32 %v56, %v1722
    %v1730 = vadd.f32 %v57, %v1726
    %v1731 = vtanh.pop %v1729
    %v1732 = vtanh.pop %v1730
    %v1733 = vmul.f32 %v1731, %v661
    %v1734 = vmul.f32 %v1732, %v661
    %v1735 = vsel %vm179, %v1733, 0.0
    %1736 = vadd.xlane.f32.xlu0 %v1735
    %v1737 = vpop.xlane.xlu0 %1736
    %v1738 = vsel %vm179, %v1734, 0.0
    %1739 = vadd.xlane.f32.xlu0 %v1738
    %v1740 = vpop.xlane.xlu0 %1739
    %v1741 = vadd.f32 %v1737, %v114
    %v1742 = vadd.f32 %v1740, %v115
    %v1743 = vsel %vm673, %v1741, -inf
    %v1744 = vsel %vm673, %v1742, -inf
    %v1745 = vmax.f32 %v1743, %v1744
    %1746 = vmax.xlane.f32.xlu0 %v1745
    %v1747 = vpop.xlane.xlu0 %1746
    %v1748 = vrot.slane %v1747, 4
    %v1749 = vmax.f32 %v1747, %v1748
    %v1750 = vrot.slane %v1749, 2
    %v1751 = vmax.f32 %v1749, %v1750
    %v1752 = vrot.slane %v1751, 1
    %v1753 = vmax.f32 %v1751, %v1752
    %s1754 = vtos %v1753
    %v1755 = vstv %s1754
    %v1756 = vsub.f32 %v1741, %v1755
    %v1757 = vsub.f32 %v1742, %v1755
    %v1758 = vmul.f32 %v1756, 1.442695
    %v1759 = vpow.pop %v1758
    %v1760 = vmul.f32 %v1757, 1.442695
    %v1761 = vpow.pop %v1760
    %v1762 = vsel %vm673, %v1759, 0.0
    %v1763 = vsel %vm673, %v1761, 0.0
    %v1764 = vadd.f32 %v1762, %v1763
    %1765 = vadd.xlane.f32.xlu0 %v1764
    %v1766 = vpop.xlane.xlu0 %1765
    %v1767 = vrot.slane %v1766, 4
    %v1768 = vadd.f32 %v1766, %v1767
    %v1769 = vrot.slane %v1768, 2
    %v1770 = vadd.f32 %v1768, %v1769
    %v1771 = vrot.slane %v1770, 1
    %v1772 = vadd.f32 %v1770, %v1771
    %s1773 = vtos %v1772
    %v1774 = vstv %s1773
    %v1775 = vrcp.pop %v1774
    %1777 = vset.pattern.permute.xlu0 0
    %1778 = vperm.xlu0 %1777, %v1759
    %v1779 = vpop.permute.xlu0 %1778
    %1782 = vset.pattern.permute.xlu0 0
    %1783 = vperm.xlu0 %1782, %v1761
    %v1784 = vpop.permute.xlu0 %1783
    %v1786 = vmul.f32 %v1779, %v56
    %v1787 = vmul.f32 %v1784, %v57
    %v1788 = vsel %vm179, %v1786, 0.0
    %v1789 = vrot.slane %v1788, 4
    %v1790 = vadd.f32 %v1788, %v1789
    %v1791 = vrot.slane %v1790, 2
    %v1792 = vadd.f32 %v1790, %v1791
    %v1793 = vrot.slane %v1792, 1
    %v1794 = vadd.f32 %v1792, %v1793
    %v1795 = vsel %vm179, %v1787, 0.0
    %v1796 = vrot.slane %v1795, 4
    %v1797 = vadd.f32 %v1795, %v1796
    %v1798 = vrot.slane %v1797, 2
    %v1799 = vadd.f32 %v1797, %v1798
    %v1800 = vrot.slane %v1799, 1
    %v1801 = vadd.f32 %v1799, %v1800
    %v1802 = vmul.f32 %v1794, %v1775
    %v1803 = vmul.f32 %v1801, %v1775
    %v1804 = vpack.c.bf16 %v1802, %v1802
    %v1805 = vpack.c.bf16 %v1803, %v1803
    %v1808 = vunpack.c.l.b16 %v1804
    %v1809 = vunpack.c.l.b16 %v1805
    %v1810 = vsel %vm741, %v1809, %v1808
    %v1811 = vpack.c.b16 %v1810, %v1810
    %v1813 = vsel %vm179, %v1811, 0
    %1815 = vmatprep.subr.bf16.mxu0 %v164
    %1816 = vmatpush1.bf16.msra.mxu0 %v163
    %1817 = vmatprep.subr.bf16.mxu0 %v168
    %1818 = vmatpush1.bf16.msra.mxu0 %v167
    %1819 = vmatprep.subr.bf16.mxu0 0
    %1820 = vmatpush1.bf16.msra.mxu0 0
    %1821 = vmatprep.subr.bf16.mxu0 0
    %1822 = vmatpush1.bf16.msra.mxu0 0
    %1823 = vmatprep.subr.bf16.mxu0 0
    %1824 = vmatpush1.bf16.msra.mxu0 0
    %1825 = vmatprep.subr.bf16.mxu0 0
    %1826 = vmatpush1.bf16.msra.mxu0 0
    %1827 = vmatprep.subr.bf16.mxu0 0
    %1828 = vmatpush1.bf16.msra.mxu0 0
    %1829 = vmatprep.subr.bf16.mxu0 0
    %1830 = vmatpush1.bf16.msra.mxu0 0
    %1831 = vmatprep.subr.bf16.mxu0 0
    %1832 = vmatpush1.bf16.msra.mxu0 0
    %1833 = vmatprep.subr.bf16.mxu0 0
    %1834 = vmatpush1.bf16.msra.mxu0 0
    %1835 = vmatprep.subr.bf16.mxu0 0
    %1836 = vmatpush1.bf16.msra.mxu0 0
    %1837 = vmatprep.subr.bf16.mxu0 0
    %1838 = vmatpush1.bf16.msra.mxu0 0
    %1839 = vmatprep.subr.bf16.mxu0 0
    %1840 = vmatpush1.bf16.msra.mxu0 0
    %1841 = vmatprep.subr.bf16.mxu0 0
    %1842 = vmatpush1.bf16.msra.mxu0 0
    %1843 = vmatprep.subr.bf16.mxu0 0
    %1844 = vmatpush1.bf16.msra.mxu0 0
    %1845 = vmatprep.subr.bf16.mxu0 0
    %1846 = vmatpush1.bf16.msra.mxu0 0
    %1847 = vmatprep.mubr.bf16.mxu0 0
    %1848 = vmatmul.mubr.bf16.gmra.mrb[0].mxu0 %v1813
    %v1849 = vpop.f32.mrb[0].mxu0
    %v1850 = vadd.f32 0.0, %v1849
    %v1851 = vpop.f32.mrb[0].mxu0
    %v1852 = vadd.f32 0.0, %v1851
    %v1853 = vpop.f32.mrb[0].mxu0
    %v1854 = vpop.f32.mrb[0].mxu0
    %1855 = vdwg.mxu0
    %1856 = vmatprep.subr.bf16.mxu0 %v166
    %1857 = vmatpush1.bf16.msra.mxu0 %v165
    %1858 = vmatprep.subr.bf16.mxu0 %v170
    %1859 = vmatpush1.bf16.msra.mxu0 %v169
    %1860 = vmatprep.subr.bf16.mxu0 0
    %1861 = vmatpush1.bf16.msra.mxu0 0
    %1862 = vmatprep.subr.bf16.mxu0 0
    %1863 = vmatpush1.bf16.msra.mxu0 0
    %1864 = vmatprep.subr.bf16.mxu0 0
    %1865 = vmatpush1.bf16.msra.mxu0 0
    %1866 = vmatprep.subr.bf16.mxu0 0
    %1867 = vmatpush1.bf16.msra.mxu0 0
    %1868 = vmatprep.subr.bf16.mxu0 0
    %1869 = vmatpush1.bf16.msra.mxu0 0
    %1870 = vmatprep.subr.bf16.mxu0 0
    %1871 = vmatpush1.bf16.msra.mxu0 0
    %1872 = vmatprep.subr.bf16.mxu0 0
    %1873 = vmatpush1.bf16.msra.mxu0 0
    %1874 = vmatprep.subr.bf16.mxu0 0
    %1875 = vmatpush1.bf16.msra.mxu0 0
    %1876 = vmatprep.subr.bf16.mxu0 0
    %1877 = vmatpush1.bf16.msra.mxu0 0
    %1878 = vmatprep.subr.bf16.mxu0 0
    %1879 = vmatpush1.bf16.msra.mxu0 0
    %1880 = vmatprep.subr.bf16.mxu0 0
    %1881 = vmatpush1.bf16.msra.mxu0 0
    %1882 = vmatprep.subr.bf16.mxu0 0
    %1883 = vmatpush1.bf16.msra.mxu0 0
    %1884 = vmatprep.subr.bf16.mxu0 0
    %1885 = vmatpush1.bf16.msra.mxu0 0
    %1886 = vmatprep.subr.bf16.mxu0 0
    %1887 = vmatpush1.bf16.msra.mxu0 0
    %1888 = vmatprep.mubr.bf16.mxu0 0
    %1889 = vmatmul.mubr.bf16.gmra.mrb[0].mxu0 %v1813
    %v1890 = vpop.f32.mrb[0].mxu0
    %v1891 = vadd.f32 0.0, %v1890
    %v1892 = vpop.f32.mrb[0].mxu0
    %v1893 = vadd.f32 0.0, %v1892
    %v1894 = vpop.f32.mrb[0].mxu0
    %v1895 = vpop.f32.mrb[0].mxu0
    %1896 = vdwg.mxu0
    %v1897 = vadd.f32 %v1609, %v1850
    %v1898 = vadd.f32 %v1611, %v1852
    %v1899 = vadd.f32 %v1650, %v1891
    %v1900 = vadd.f32 %v1652, %v1893
    %v1901 = vadd.f32 %v1897, %v121
    %v1902 = vadd.f32 %v1898, %v125
    %v1903 = vadd.f32 %v1899, %v129
    %v1904 = vadd.f32 %v1900, %v133
    %v1905 = vxor.u32 %v1901, 2147483648
    %v1906 = vmul.f32 %v1905, 1.442695
    %v1907 = vpow.pop %v1906
    %v1908 = vadd.f32 %v1907, 1.0
    %v1909 = vrcp.pop %v1908
    %v1910 = vmul.f32 1.0, %v1909
    %v1911 = vxor.u32 %v1902, 2147483648
    %v1912 = vmul.f32 %v1911, 1.442695
    %v1913 = vpow.pop %v1912
    %v1914 = vadd.f32 %v1913, 1.0
    %v1915 = vrcp.pop %v1914
    %v1916 = vmul.f32 1.0, %v1915
    %v1917 = vtanh.pop %v1903
    %v1918 = vxor.u32 %v1904, 2147483648
    %v1919 = vmul.f32 %v1918, 1.442695
    %v1920 = vpow.pop %v1919
    %v1921 = vadd.f32 %v1920, 1.0
    %v1922 = vrcp.pop %v1921
    %v1923 = vmul.f32 1.0, %v1922
    %v1924 = vmul.f32 %v1916, %v1570
    %v1925 = vmul.f32 %v1910, %v1917
    %v1926 = vadd.f32 %v1924, %v1925
    %v1927 = vtanh.pop %v1926
    %v1928 = vmul.f32 %v1923, %v1927
    %v1929 = vpack.c.bf16 %v1928, %v1928
    %1930 = vmatprep.subr.bf16.mxu0 %v419
    %1931 = vmatpush1.bf16.msra.mxu0 %v418
    %1932 = vmatprep.subr.bf16.mxu0 %v424
    %1933 = vmatpush1.bf16.msra.mxu0 %v423
    %1934 = vmatprep.subr.bf16.mxu0 %v429
    %1935 = vmatpush1.bf16.msra.mxu0 %v428
    %1936 = vmatprep.subr.bf16.mxu0 %v434
    %1937 = vmatpush1.bf16.msra.mxu0 %v433
    %1938 = vmatprep.subr.bf16.mxu0 %v439
    %1939 = vmatpush1.bf16.msra.mxu0 %v438
    %1940 = vmatprep.subr.bf16.mxu0 %v444
    %1941 = vmatpush1.bf16.msra.mxu0 %v443
    %1942 = vmatprep.subr.bf16.mxu0 %v449
    %1943 = vmatpush1.bf16.msra.mxu0 %v448
    %1944 = vmatprep.subr.bf16.mxu0 %v454
    %1945 = vmatpush1.bf16.msra.mxu0 %v453
    %1946 = vmatprep.subr.bf16.mxu0 0
    %1947 = vmatpush1.bf16.msra.mxu0 0
    %1948 = vmatprep.subr.bf16.mxu0 0
    %1949 = vmatpush1.bf16.msra.mxu0 0
    %1950 = vmatprep.subr.bf16.mxu0 0
    %1951 = vmatpush1.bf16.msra.mxu0 0
    %1952 = vmatprep.subr.bf16.mxu0 0
    %1953 = vmatpush1.bf16.msra.mxu0 0
    %1954 = vmatprep.subr.bf16.mxu0 0
    %1955 = vmatpush1.bf16.msra.mxu0 0
    %1956 = vmatprep.subr.bf16.mxu0 0
    %1957 = vmatpush1.bf16.msra.mxu0 0
    %1958 = vmatprep.subr.bf16.mxu0 0
    %1959 = vmatpush1.bf16.msra.mxu0 0
    %1960 = vmatprep.subr.bf16.mxu0 0
    %1961 = vmatpush1.bf16.msra.mxu0 0
    %1962 = vmatprep.mubr.bf16.mxu0 0
    %1963 = vmatmul.mubr.bf16.gmra.mrb[0].mxu0 %v1929
    %v1964 = vpop.f32.mrb[0].mxu0
    %v1965 = vadd.f32 0.0, %v1964
    %v1966 = vpop.f32.mrb[0].mxu0
    %v1967 = vadd.f32 0.0, %v1966
    %v1968 = vpop.f32.mrb[0].mxu0
    %v1969 = vpop.f32.mrb[0].mxu0
    %1970 = vdwg.mxu0
    %1971 = vmatprep.subr.bf16.mxu0 %v421
    %1972 = vmatpush1.bf16.msra.mxu0 %v420
    %1973 = vmatprep.subr.bf16.mxu0 %v426
    %1974 = vmatpush1.bf16.msra.mxu0 %v425
    %1975 = vmatprep.subr.bf16.mxu0 %v431
    %1976 = vmatpush1.bf16.msra.mxu0 %v430
    %1977 = vmatprep.subr.bf16.mxu0 %v436
    %1978 = vmatpush1.bf16.msra.mxu0 %v435
    %1979 = vmatprep.subr.bf16.mxu0 %v441
    %1980 = vmatpush1.bf16.msra.mxu0 %v440
    %1981 = vmatprep.subr.bf16.mxu0 %v446
    %1982 = vmatpush1.bf16.msra.mxu0 %v445
    %1983 = vmatprep.subr.bf16.mxu0 %v451
    %1984 = vmatpush1.bf16.msra.mxu0 %v450
    %1985 = vmatprep.subr.bf16.mxu0 %v456
    %1986 = vmatpush1.bf16.msra.mxu0 %v455
    %1987 = vmatprep.subr.bf16.mxu0 0
    %1988 = vmatpush1.bf16.msra.mxu0 0
    %1989 = vmatprep.subr.bf16.mxu0 0
    %1990 = vmatpush1.bf16.msra.mxu0 0
    %1991 = vmatprep.subr.bf16.mxu0 0
    %1992 = vmatpush1.bf16.msra.mxu0 0
    %1993 = vmatprep.subr.bf16.mxu0 0
    %1994 = vmatpush1.bf16.msra.mxu0 0
    %1995 = vmatprep.subr.bf16.mxu0 0
    %1996 = vmatpush1.bf16.msra.mxu0 0
    %1997 = vmatprep.subr.bf16.mxu0 0
    %1998 = vmatpush1.bf16.msra.mxu0 0
    %1999 = vmatprep.subr.bf16.mxu0 0
    %2000 = vmatpush1.bf16.msra.mxu0 0
    %2001 = vmatprep.subr.bf16.mxu0 0
    %2002 = vmatpush1.bf16.msra.mxu0 0
    %2003 = vmatprep.mubr.bf16.mxu0 0
    %2004 = vmatmul.mubr.bf16.gmra.mrb[0].mxu0 %v1929
    %v2005 = vpop.f32.mrb[0].mxu0
    %v2006 = vadd.f32 0.0, %v2005
    %v2007 = vpop.f32.mrb[0].mxu0
    %v2008 = vadd.f32 0.0, %v2007
    %v2009 = vpop.f32.mrb[0].mxu0
    %v2010 = vpop.f32.mrb[0].mxu0
    %2011 = vdwg.mxu0
    %2012 = vmatprep.subr.bf16.mxu0 0
    %2013 = vmatpush1.bf16.msra.mxu0 %v422
    %2014 = vmatprep.subr.bf16.mxu0 0
    %2015 = vmatpush1.bf16.msra.mxu0 %v427
    %2016 = vmatprep.subr.bf16.mxu0 0
    %2017 = vmatpush1.bf16.msra.mxu0 %v432
    %2018 = vmatprep.subr.bf16.mxu0 0
    %2019 = vmatpush1.bf16.msra.mxu0 %v437
    %2020 = vmatprep.subr.bf16.mxu0 0
    %2021 = vmatpush1.bf16.msra.mxu0 %v442
    %2022 = vmatprep.subr.bf16.mxu0 0
    %2023 = vmatpush1.bf16.msra.mxu0 %v447
    %2024 = vmatprep.subr.bf16.mxu0 0
    %2025 = vmatpush1.bf16.msra.mxu0 %v452
    %2026 = vmatprep.subr.bf16.mxu0 0
    %2027 = vmatpush1.bf16.msra.mxu0 %v457
    %2028 = vmatprep.subr.bf16.mxu0 0
    %2029 = vmatpush1.bf16.msra.mxu0 0
    %2030 = vmatprep.subr.bf16.mxu0 0
    %2031 = vmatpush1.bf16.msra.mxu0 0
    %2032 = vmatprep.subr.bf16.mxu0 0
    %2033 = vmatpush1.bf16.msra.mxu0 0
    %2034 = vmatprep.subr.bf16.mxu0 0
    %2035 = vmatpush1.bf16.msra.mxu0 0
    %2036 = vmatprep.subr.bf16.mxu0 0
    %2037 = vmatpush1.bf16.msra.mxu0 0
    %2038 = vmatprep.subr.bf16.mxu0 0
    %2039 = vmatpush1.bf16.msra.mxu0 0
    %2040 = vmatprep.subr.bf16.mxu0 0
    %2041 = vmatpush1.bf16.msra.mxu0 0
    %2042 = vmatprep.subr.bf16.mxu0 0
    %2043 = vmatpush1.bf16.msra.mxu0 0
    %2044 = vmatprep.mubr.bf16.mxu0 0
    %2045 = vmatmul.mubr.bf16.gmra.mrb[0].mxu0 %v1929
    %v2046 = vpop.f32.mrb[0].mxu0
    %v2047 = vadd.f32 0.0, %v2046
    %v2048 = vpop.f32.mrb[0].mxu0
    %v2049 = vpop.f32.mrb[0].mxu0
    %v2050 = vpop.f32.mrb[0].mxu0
    %2051 = vdwg.mxu0
    %v2054 = vunpack.c.l.s4 1966171168
    %v2055 = vunpack.c.0.s8 %v2054
    %v2056 = vlaneseq
    %v2057 = vshrl.u32 %v2056, 7
    %v2058 = vsub.s32 %v2055, %v2057
    %v2059 = vrot.slane %v2047, %v2058
    %v2060 = vcombine.high %v2059, %v2059
    %v2062 = vunpack.c.l.s4 1966171168
    %v2063 = vunpack.c.0.s8 %v2062
    %v2064 = vlaneseq
    %v2065 = vshrl.u32 %v2064, 7
    %v2066 = vsub.s32 %v2063, %v2065
    %v2067 = vrot.slane %v2059, %v2066
    %v2069 = vunpack.c.l.s4 1966171168
    %v2070 = vunpack.c.0.s8 %v2069
    %v2071 = vlaneseq
    %v2072 = vshrl.u32 %v2071, 7
    %v2073 = vsub.s32 %v2070, %v2072
    %v2074 = vrot.slane %v2060, %v2073
    %v2075 = vlaneseq
    %v2076 = vshrl.u32 %v2075, 7
    %v2077 = vsub.s32 0, %v2076
    %v2078 = vrot.slane %v2067, %v2077
    %v2079 = vlaneseq
    %v2080 = vshrl.u32 %v2079, 7
    %v2081 = vsub.s32 0, %v2080
    %v2082 = vrot.slane %v2074, %v2081
    %v2085 = vadd.f32 %v56, %v2078
    %v2086 = vadd.f32 %v57, %v2082
    %v2087 = vtanh.pop %v2085
    %v2088 = vtanh.pop %v2086
    %v2089 = vmul.f32 %v2087, %v661
    %v2090 = vmul.f32 %v2088, %v661
    %v2091 = vsel %vm179, %v2089, 0.0
    %2092 = vadd.xlane.f32.xlu0 %v2091
    %v2093 = vpop.xlane.xlu0 %2092
    %v2094 = vsel %vm179, %v2090, 0.0
    %2095 = vadd.xlane.f32.xlu0 %v2094
    %v2096 = vpop.xlane.xlu0 %2095
    %v2097 = vadd.f32 %v2093, %v114
    %v2098 = vadd.f32 %v2096, %v115
    %v2099 = vsel %vm673, %v2097, -inf
    %v2100 = vsel %vm673, %v2098, -inf
    %v2101 = vmax.f32 %v2099, %v2100
    %2102 = vmax.xlane.f32.xlu0 %v2101
    %v2103 = vpop.xlane.xlu0 %2102
    %v2104 = vrot.slane %v2103, 4
    %v2105 = vmax.f32 %v2103, %v2104
    %v2106 = vrot.slane %v2105, 2
    %v2107 = vmax.f32 %v2105, %v2106
    %v2108 = vrot.slane %v2107, 1
    %v2109 = vmax.f32 %v2107, %v2108
    %s2110 = vtos %v2109
    %v2111 = vstv %s2110
    %v2112 = vsub.f32 %v2097, %v2111
    %v2113 = vsub.f32 %v2098, %v2111
    %v2114 = vmul.f32 %v2112, 1.442695
    %v2115 = vpow.pop %v2114
    %v2116 = vmul.f32 %v2113, 1.442695
    %v2117 = vpow.pop %v2116
    %v2118 = vsel %vm673, %v2115, 0.0
    %v2119 = vsel %vm673, %v2117, 0.0
    %v2120 = vadd.f32 %v2118, %v2119
    %2121 = vadd.xlane.f32.xlu0 %v2120
    %v2122 = vpop.xlane.xlu0 %2121
    %v2123 = vrot.slane %v2122, 4
    %v2124 = vadd.f32 %v2122, %v2123
    %v2125 = vrot.slane %v2124, 2
    %v2126 = vadd.f32 %v2124, %v2125
    %v2127 = vrot.slane %v2126, 1
    %v2128 = vadd.f32 %v2126, %v2127
    %s2129 = vtos %v2128
    %v2130 = vstv %s2129
    %v2131 = vrcp.pop %v2130
    %2133 = vset.pattern.permute.xlu0 0
    %2134 = vperm.xlu0 %2133, %v2115
    %v2135 = vpop.permute.xlu0 %2134
    %2138 = vset.pattern.permute.xlu0 0
    %2139 = vperm.xlu0 %2138, %v2117
    %v2140 = vpop.permute.xlu0 %2139
    %v2142 = vmul.f32 %v2135, %v56
    %v2143 = vmul.f32 %v2140, %v57
    %v2144 = vsel %vm179, %v2142, 0.0
    %v2145 = vrot.slane %v2144, 4
    %v2146 = vadd.f32 %v2144, %v2145
    %v2147 = vrot.slane %v2146, 2
    %v2148 = vadd.f32 %v2146, %v2147
    %v2149 = vrot.slane %v2148, 1
    %v2150 = vadd.f32 %v2148, %v2149
    %v2151 = vsel %vm179, %v2143, 0.0
    %v2152 = vrot.slane %v2151, 4
    %v2153 = vadd.f32 %v2151, %v2152
    %v2154 = vrot.slane %v2153, 2
    %v2155 = vadd.f32 %v2153, %v2154
    %v2156 = vrot.slane %v2155, 1
    %v2157 = vadd.f32 %v2155, %v2156
    %v2158 = vmul.f32 %v2150, %v2131
    %v2159 = vmul.f32 %v2157, %v2131
    %v2160 = vpack.c.bf16 %v2158, %v2158
    %v2161 = vpack.c.bf16 %v2159, %v2159
    %v2164 = vunpack.c.l.b16 %v2160
    %v2165 = vunpack.c.l.b16 %v2161
    %v2166 = vsel %vm741, %v2165, %v2164
    %v2167 = vpack.c.b16 %v2166, %v2166
    %v2169 = vsel %vm179, %v2167, 0
    %2171 = vmatprep.subr.bf16.mxu0 %v164
    %2172 = vmatpush1.bf16.msra.mxu0 %v163
    %2173 = vmatprep.subr.bf16.mxu0 %v168
    %2174 = vmatpush1.bf16.msra.mxu0 %v167
    %2175 = vmatprep.subr.bf16.mxu0 0
    %2176 = vmatpush1.bf16.msra.mxu0 0
    %2177 = vmatprep.subr.bf16.mxu0 0
    %2178 = vmatpush1.bf16.msra.mxu0 0
    %2179 = vmatprep.subr.bf16.mxu0 0
    %2180 = vmatpush1.bf16.msra.mxu0 0
    %2181 = vmatprep.subr.bf16.mxu0 0
    %2182 = vmatpush1.bf16.msra.mxu0 0
    %2183 = vmatprep.subr.bf16.mxu0 0
    %2184 = vmatpush1.bf16.msra.mxu0 0
    %2185 = vmatprep.subr.bf16.mxu0 0
    %2186 = vmatpush1.bf16.msra.mxu0 0
    %2187 = vmatprep.subr.bf16.mxu0 0
    %2188 = vmatpush1.bf16.msra.mxu0 0
    %2189 = vmatprep.subr.bf16.mxu0 0
    %2190 = vmatpush1.bf16.msra.mxu0 0
    %2191 = vmatprep.subr.bf16.mxu0 0
    %2192 = vmatpush1.bf16.msra.mxu0 0
    %2193 = vmatprep.subr.bf16.mxu0 0
    %2194 = vmatpush1.bf16.msra.mxu0 0
    %2195 = vmatprep.subr.bf16.mxu0 0
    %2196 = vmatpush1.bf16.msra.mxu0 0
    %2197 = vmatprep.subr.bf16.mxu0 0
    %2198 = vmatpush1.bf16.msra.mxu0 0
    %2199 = vmatprep.subr.bf16.mxu0 0
    %2200 = vmatpush1.bf16.msra.mxu0 0
    %2201 = vmatprep.subr.bf16.mxu0 0
    %2202 = vmatpush1.bf16.msra.mxu0 0
    %2203 = vmatprep.mubr.bf16.mxu0 0
    %2204 = vmatmul.mubr.bf16.gmra.mrb[0].mxu0 %v2169
    %v2205 = vpop.f32.mrb[0].mxu0
    %v2206 = vadd.f32 0.0, %v2205
    %v2207 = vpop.f32.mrb[0].mxu0
    %v2208 = vadd.f32 0.0, %v2207
    %v2209 = vpop.f32.mrb[0].mxu0
    %v2210 = vpop.f32.mrb[0].mxu0
    %2211 = vdwg.mxu0
    %2212 = vmatprep.subr.bf16.mxu0 %v166
    %2213 = vmatpush1.bf16.msra.mxu0 %v165
    %2214 = vmatprep.subr.bf16.mxu0 %v170
    %2215 = vmatpush1.bf16.msra.mxu0 %v169
    %2216 = vmatprep.subr.bf16.mxu0 0
    %2217 = vmatpush1.bf16.msra.mxu0 0
    %2218 = vmatprep.subr.bf16.mxu0 0
    %2219 = vmatpush1.bf16.msra.mxu0 0
    %2220 = vmatprep.subr.bf16.mxu0 0
    %2221 = vmatpush1.bf16.msra.mxu0 0
    %2222 = vmatprep.subr.bf16.mxu0 0
    %2223 = vmatpush1.bf16.msra.mxu0 0
    %2224 = vmatprep.subr.bf16.mxu0 0
    %2225 = vmatpush1.bf16.msra.mxu0 0
    %2226 = vmatprep.subr.bf16.mxu0 0
    %2227 = vmatpush1.bf16.msra.mxu0 0
    %2228 = vmatprep.subr.bf16.mxu0 0
    %2229 = vmatpush1.bf16.msra.mxu0 0
    %2230 = vmatprep.subr.bf16.mxu0 0
    %2231 = vmatpush1.bf16.msra.mxu0 0
    %2232 = vmatprep.subr.bf16.mxu0 0
    %2233 = vmatpush1.bf16.msra.mxu0 0
    %2234 = vmatprep.subr.bf16.mxu0 0
    %2235 = vmatpush1.bf16.msra.mxu0 0
    %2236 = vmatprep.subr.bf16.mxu0 0
    %2237 = vmatpush1.bf16.msra.mxu0 0
    %2238 = vmatprep.subr.bf16.mxu0 0
    %2239 = vmatpush1.bf16.msra.mxu0 0
    %2240 = vmatprep.subr.bf16.mxu0 0
    %2241 = vmatpush1.bf16.msra.mxu0 0
    %2242 = vmatprep.subr.bf16.mxu0 0
    %2243 = vmatpush1.bf16.msra.mxu0 0
    %2244 = vmatprep.mubr.bf16.mxu0 0
    %2245 = vmatmul.mubr.bf16.gmra.mrb[0].mxu0 %v2169
    %v2246 = vpop.f32.mrb[0].mxu0
    %v2247 = vadd.f32 0.0, %v2246
    %v2248 = vpop.f32.mrb[0].mxu0
    %v2249 = vadd.f32 0.0, %v2248
    %v2250 = vpop.f32.mrb[0].mxu0
    %v2251 = vpop.f32.mrb[0].mxu0
    %2252 = vdwg.mxu0
    %v2253 = vadd.f32 %v1965, %v2206
    %v2254 = vadd.f32 %v1967, %v2208
    %v2255 = vadd.f32 %v2006, %v2247
    %v2256 = vadd.f32 %v2008, %v2249
    %v2257 = vadd.f32 %v2253, %v121
    %v2258 = vadd.f32 %v2254, %v125
    %v2259 = vadd.f32 %v2255, %v129
    %v2260 = vadd.f32 %v2256, %v133
    %v2261 = vxor.u32 %v2257, 2147483648
    %v2262 = vmul.f32 %v2261, 1.442695
    %v2263 = vpow.pop %v2262
    %v2264 = vadd.f32 %v2263, 1.0
    %v2265 = vrcp.pop %v2264
    %v2266 = vmul.f32 1.0, %v2265
    %v2267 = vxor.u32 %v2258, 2147483648
    %v2268 = vmul.f32 %v2267, 1.442695
    %v2269 = vpow.pop %v2268
    %v2270 = vadd.f32 %v2269, 1.0
    %v2271 = vrcp.pop %v2270
    %v2272 = vmul.f32 1.0, %v2271
    %v2273 = vtanh.pop %v2259
    %v2274 = vxor.u32 %v2260, 2147483648
    %v2275 = vmul.f32 %v2274, 1.442695
    %v2276 = vpow.pop %v2275
    %v2277 = vadd.f32 %v2276, 1.0
    %v2278 = vrcp.pop %v2277
    %v2279 = vmul.f32 1.0, %v2278
    %v2280 = vmul.f32 %v2272, %v1926
    %v2281 = vmul.f32 %v2266, %v2273
    %v2282 = vadd.f32 %v2280, %v2281
    %v2283 = vtanh.pop %v2282
    %v2284 = vmul.f32 %v2279, %v2283
    %v2285 = vpack.c.bf16 %v2284, %v2284
    %2286 = vmatprep.subr.bf16.mxu0 %v419
    %2287 = vmatpush1.bf16.msra.mxu0 %v418
    %2288 = vmatprep.subr.bf16.mxu0 %v424
    %2289 = vmatpush1.bf16.msra.mxu0 %v423
    %2290 = vmatprep.subr.bf16.mxu0 %v429
    %2291 = vmatpush1.bf16.msra.mxu0 %v428
    %2292 = vmatprep.subr.bf16.mxu0 %v434
    %2293 = vmatpush1.bf16.msra.mxu0 %v433
    %2294 = vmatprep.subr.bf16.mxu0 %v439
    %2295 = vmatpush1.bf16.msra.mxu0 %v438
    %2296 = vmatprep.subr.bf16.mxu0 %v444
    %2297 = vmatpush1.bf16.msra.mxu0 %v443
    %2298 = vmatprep.subr.bf16.mxu0 %v449
    %2299 = vmatpush1.bf16.msra.mxu0 %v448
    %2300 = vmatprep.subr.bf16.mxu0 %v454
    %2301 = vmatpush1.bf16.msra.mxu0 %v453
    %2302 = vmatprep.subr.bf16.mxu0 0
    %2303 = vmatpush1.bf16.msra.mxu0 0
    %2304 = vmatprep.subr.bf16.mxu0 0
    %2305 = vmatpush1.bf16.msra.mxu0 0
    %2306 = vmatprep.subr.bf16.mxu0 0
    %2307 = vmatpush1.bf16.msra.mxu0 0
    %2308 = vmatprep.subr.bf16.mxu0 0
    %2309 = vmatpush1.bf16.msra.mxu0 0
    %2310 = vmatprep.subr.bf16.mxu0 0
    %2311 = vmatpush1.bf16.msra.mxu0 0
    %2312 = vmatprep.subr.bf16.mxu0 0
    %2313 = vmatpush1.bf16.msra.mxu0 0
    %2314 = vmatprep.subr.bf16.mxu0 0
    %2315 = vmatpush1.bf16.msra.mxu0 0
    %2316 = vmatprep.subr.bf16.mxu0 0
    %2317 = vmatpush1.bf16.msra.mxu0 0
    %2318 = vmatprep.mubr.bf16.mxu0 0
    %2319 = vmatmul.mubr.bf16.gmra.mrb[0].mxu0 %v2285
    %v2320 = vpop.f32.mrb[0].mxu0
    %v2321 = vadd.f32 0.0, %v2320
    %v2322 = vpop.f32.mrb[0].mxu0
    %v2323 = vadd.f32 0.0, %v2322
    %v2324 = vpop.f32.mrb[0].mxu0
    %v2325 = vpop.f32.mrb[0].mxu0
    %2326 = vdwg.mxu0
    %2327 = vmatprep.subr.bf16.mxu0 %v421
    %2328 = vmatpush1.bf16.msra.mxu0 %v420
    %2329 = vmatprep.subr.bf16.mxu0 %v426
    %2330 = vmatpush1.bf16.msra.mxu0 %v425
    %2331 = vmatprep.subr.bf16.mxu0 %v431
    %2332 = vmatpush1.bf16.msra.mxu0 %v430
    %2333 = vmatprep.subr.bf16.mxu0 %v436
    %2334 = vmatpush1.bf16.msra.mxu0 %v435
    %2335 = vmatprep.subr.bf16.mxu0 %v441
    %2336 = vmatpush1.bf16.msra.mxu0 %v440
    %2337 = vmatprep.subr.bf16.mxu0 %v446
    %2338 = vmatpush1.bf16.msra.mxu0 %v445
    %2339 = vmatprep.subr.bf16.mxu0 %v451
    %2340 = vmatpush1.bf16.msra.mxu0 %v450
    %2341 = vmatprep.subr.bf16.mxu0 %v456
    %2342 = vmatpush1.bf16.msra.mxu0 %v455
    %2343 = vmatprep.subr.bf16.mxu0 0
    %2344 = vmatpush1.bf16.msra.mxu0 0
    %2345 = vmatprep.subr.bf16.mxu0 0
    %2346 = vmatpush1.bf16.msra.mxu0 0
    %2347 = vmatprep.subr.bf16.mxu0 0
    %2348 = vmatpush1.bf16.msra.mxu0 0
    %2349 = vmatprep.subr.bf16.mxu0 0
    %2350 = vmatpush1.bf16.msra.mxu0 0
    %2351 = vmatprep.subr.bf16.mxu0 0
    %2352 = vmatpush1.bf16.msra.mxu0 0
    %2353 = vmatprep.subr.bf16.mxu0 0
    %2354 = vmatpush1.bf16.msra.mxu0 0
    %2355 = vmatprep.subr.bf16.mxu0 0
    %2356 = vmatpush1.bf16.msra.mxu0 0
    %2357 = vmatprep.subr.bf16.mxu0 0
    %2358 = vmatpush1.bf16.msra.mxu0 0
    %2359 = vmatprep.mubr.bf16.mxu0 0
    %2360 = vmatmul.mubr.bf16.gmra.mrb[0].mxu0 %v2285
    %v2361 = vpop.f32.mrb[0].mxu0
    %v2362 = vadd.f32 0.0, %v2361
    %v2363 = vpop.f32.mrb[0].mxu0
    %v2364 = vadd.f32 0.0, %v2363
    %v2365 = vpop.f32.mrb[0].mxu0
    %v2366 = vpop.f32.mrb[0].mxu0
    %2367 = vdwg.mxu0
    %2368 = vmatprep.subr.bf16.mxu0 0
    %2369 = vmatpush1.bf16.msra.mxu0 %v422
    %2370 = vmatprep.subr.bf16.mxu0 0
    %2371 = vmatpush1.bf16.msra.mxu0 %v427
    %2372 = vmatprep.subr.bf16.mxu0 0
    %2373 = vmatpush1.bf16.msra.mxu0 %v432
    %2374 = vmatprep.subr.bf16.mxu0 0
    %2375 = vmatpush1.bf16.msra.mxu0 %v437
    %2376 = vmatprep.subr.bf16.mxu0 0
    %2377 = vmatpush1.bf16.msra.mxu0 %v442
    %2378 = vmatprep.subr.bf16.mxu0 0
    %2379 = vmatpush1.bf16.msra.mxu0 %v447
    %2380 = vmatprep.subr.bf16.mxu0 0
    %2381 = vmatpush1.bf16.msra.mxu0 %v452
    %2382 = vmatprep.subr.bf16.mxu0 0
    %2383 = vmatpush1.bf16.msra.mxu0 %v457
    %2384 = vmatprep.subr.bf16.mxu0 0
    %2385 = vmatpush1.bf16.msra.mxu0 0
    %2386 = vmatprep.subr.bf16.mxu0 0
    %2387 = vmatpush1.bf16.msra.mxu0 0
    %2388 = vmatprep.subr.bf16.mxu0 0
    %2389 = vmatpush1.bf16.msra.mxu0 0
    %2390 = vmatprep.subr.bf16.mxu0 0
    %2391 = vmatpush1.bf16.msra.mxu0 0
    %2392 = vmatprep.subr.bf16.mxu0 0
    %2393 = vmatpush1.bf16.msra.mxu0 0
    %2394 = vmatprep.subr.bf16.mxu0 0
    %2395 = vmatpush1.bf16.msra.mxu0 0
    %2396 = vmatprep.subr.bf16.mxu0 0
    %2397 = vmatpush1.bf16.msra.mxu0 0
    %2398 = vmatprep.subr.bf16.mxu0 0
    %2399 = vmatpush1.bf16.msra.mxu0 0
    %2400 = vmatprep.mubr.bf16.mxu0 0
    %2401 = vmatmul.mubr.bf16.gmra.mrb[0].mxu0 %v2285
    %v2402 = vpop.f32.mrb[0].mxu0
    %v2403 = vadd.f32 0.0, %v2402
    %v2404 = vpop.f32.mrb[0].mxu0
    %v2405 = vpop.f32.mrb[0].mxu0
    %v2406 = vpop.f32.mrb[0].mxu0
    %2407 = vdwg.mxu0
    %v2410 = vunpack.c.l.s4 1966171168
    %v2411 = vunpack.c.0.s8 %v2410
    %v2412 = vlaneseq
    %v2413 = vshrl.u32 %v2412, 7
    %v2414 = vsub.s32 %v2411, %v2413
    %v2415 = vrot.slane %v2403, %v2414
    %v2416 = vcombine.high %v2415, %v2415
    %v2418 = vunpack.c.l.s4 1966171168
    %v2419 = vunpack.c.0.s8 %v2418
    %v2420 = vlaneseq
    %v2421 = vshrl.u32 %v2420, 7
    %v2422 = vsub.s32 %v2419, %v2421
    %v2423 = vrot.slane %v2415, %v2422
    %v2425 = vunpack.c.l.s4 1966171168
    %v2426 = vunpack.c.0.s8 %v2425
    %v2427 = vlaneseq
    %v2428 = vshrl.u32 %v2427, 7
    %v2429 = vsub.s32 %v2426, %v2428
    %v2430 = vrot.slane %v2416, %v2429
    %v2431 = vlaneseq
    %v2432 = vshrl.u32 %v2431, 7
    %v2433 = vsub.s32 0, %v2432
    %v2434 = vrot.slane %v2423, %v2433
    %v2435 = vlaneseq
    %v2436 = vshrl.u32 %v2435, 7
    %v2437 = vsub.s32 0, %v2436
    %v2438 = vrot.slane %v2430, %v2437
    %v2441 = vadd.f32 %v56, %v2434
    %v2442 = vadd.f32 %v57, %v2438
    %v2443 = vtanh.pop %v2441
    %v2444 = vtanh.pop %v2442
    %v2445 = vmul.f32 %v2443, %v661
    %v2446 = vmul.f32 %v2444, %v661
    %v2447 = vsel %vm179, %v2445, 0.0
    %2448 = vadd.xlane.f32.xlu0 %v2447
    %v2449 = vpop.xlane.xlu0 %2448
    %v2450 = vsel %vm179, %v2446, 0.0
    %2451 = vadd.xlane.f32.xlu0 %v2450
    %v2452 = vpop.xlane.xlu0 %2451
    %v2453 = vadd.f32 %v2449, %v114
    %v2454 = vadd.f32 %v2452, %v115
    %v2455 = vsel %vm673, %v2453, -inf
    %v2456 = vsel %vm673, %v2454, -inf
    %v2457 = vmax.f32 %v2455, %v2456
    %2458 = vmax.xlane.f32.xlu0 %v2457
    %v2459 = vpop.xlane.xlu0 %2458
    %v2460 = vrot.slane %v2459, 4
    %v2461 = vmax.f32 %v2459, %v2460
    %v2462 = vrot.slane %v2461, 2
    %v2463 = vmax.f32 %v2461, %v2462
    %v2464 = vrot.slane %v2463, 1
    %v2465 = vmax.f32 %v2463, %v2464
    %s2466 = vtos %v2465
    %v2467 = vstv %s2466
    %v2468 = vsub.f32 %v2453, %v2467
    %v2469 = vsub.f32 %v2454, %v2467
    %v2470 = vmul.f32 %v2468, 1.442695
    %v2471 = vpow.pop %v2470
    %v2472 = vmul.f32 %v2469, 1.442695
    %v2473 = vpow.pop %v2472
    %v2474 = vsel %vm673, %v2471, 0.0
    %v2475 = vsel %vm673, %v2473, 0.0
    %v2476 = vadd.f32 %v2474, %v2475
    %2477 = vadd.xlane.f32.xlu0 %v2476
    %v2478 = vpop.xlane.xlu0 %2477
    %v2479 = vrot.slane %v2478, 4
    %v2480 = vadd.f32 %v2478, %v2479
    %v2481 = vrot.slane %v2480, 2
    %v2482 = vadd.f32 %v2480, %v2481
    %v2483 = vrot.slane %v2482, 1
    %v2484 = vadd.f32 %v2482, %v2483
    %s2485 = vtos %v2484
    %v2486 = vstv %s2485
    %v2487 = vrcp.pop %v2486
    %2489 = vset.pattern.permute.xlu0 0
    %2490 = vperm.xlu0 %2489, %v2471
    %v2491 = vpop.permute.xlu0 %2490
    %2494 = vset.pattern.permute.xlu0 0
    %2495 = vperm.xlu0 %2494, %v2473
    %v2496 = vpop.permute.xlu0 %2495
    %v2498 = vmul.f32 %v2491, %v56
    %v2499 = vmul.f32 %v2496, %v57
    %v2500 = vsel %vm179, %v2498, 0.0
    %v2501 = vrot.slane %v2500, 4
    %v2502 = vadd.f32 %v2500, %v2501
    %v2503 = vrot.slane %v2502, 2
    %v2504 = vadd.f32 %v2502, %v2503
    %v2505 = vrot.slane %v2504, 1
    %v2506 = vadd.f32 %v2504, %v2505
    %v2507 = vsel %vm179, %v2499, 0.0
    %v2508 = vrot.slane %v2507, 4
    %v2509 = vadd.f32 %v2507, %v2508
    %v2510 = vrot.slane %v2509, 2
    %v2511 = vadd.f32 %v2509, %v2510
    %v2512 = vrot.slane %v2511, 1
    %v2513 = vadd.f32 %v2511, %v2512
    %v2514 = vmul.f32 %v2506, %v2487
    %v2515 = vmul.f32 %v2513, %v2487
    %v2516 = vpack.c.bf16 %v2514, %v2514
    %v2517 = vpack.c.bf16 %v2515, %v2515
    %v2520 = vunpack.c.l.b16 %v2516
    %v2521 = vunpack.c.l.b16 %v2517
    %v2522 = vsel %vm741, %v2521, %v2520
    %v2523 = vpack.c.b16 %v2522, %v2522
    %v2525 = vsel %vm179, %v2523, 0
    %2527 = vmatprep.subr.bf16.mxu0 %v164
    %2528 = vmatpush1.bf16.msra.mxu0 %v163
    %2529 = vmatprep.subr.bf16.mxu0 %v168
    %2530 = vmatpush1.bf16.msra.mxu0 %v167
    %2531 = vmatprep.subr.bf16.mxu0 0
    %2532 = vmatpush1.bf16.msra.mxu0 0
    %2533 = vmatprep.subr.bf16.mxu0 0
    %2534 = vmatpush1.bf16.msra.mxu0 0
    %2535 = vmatprep.subr.bf16.mxu0 0
    %2536 = vmatpush1.bf16.msra.mxu0 0
    %2537 = vmatprep.subr.bf16.mxu0 0
    %2538 = vmatpush1.bf16.msra.mxu0 0
    %2539 = vmatprep.subr.bf16.mxu0 0
    %2540 = vmatpush1.bf16.msra.mxu0 0
    %2541 = vmatprep.subr.bf16.mxu0 0
    %2542 = vmatpush1.bf16.msra.mxu0 0
    %2543 = vmatprep.subr.bf16.mxu0 0
    %2544 = vmatpush1.bf16.msra.mxu0 0
    %2545 = vmatprep.subr.bf16.mxu0 0
    %2546 = vmatpush1.bf16.msra.mxu0 0
    %2547 = vmatprep.subr.bf16.mxu0 0
    %2548 = vmatpush1.bf16.msra.mxu0 0
    %2549 = vmatprep.subr.bf16.mxu0 0
    %2550 = vmatpush1.bf16.msra.mxu0 0
    %2551 = vmatprep.subr.bf16.mxu0 0
    %2552 = vmatpush1.bf16.msra.mxu0 0
    %2553 = vmatprep.subr.bf16.mxu0 0
    %2554 = vmatpush1.bf16.msra.mxu0 0
    %2555 = vmatprep.subr.bf16.mxu0 0
    %2556 = vmatpush1.bf16.msra.mxu0 0
    %2557 = vmatprep.subr.bf16.mxu0 0
    %2558 = vmatpush1.bf16.msra.mxu0 0
    %2559 = vmatprep.mubr.bf16.mxu0 0
    %2560 = vmatmul.mubr.bf16.gmra.mrb[0].mxu0 %v2525
    %v2561 = vpop.f32.mrb[0].mxu0
    %v2562 = vadd.f32 0.0, %v2561
    %v2563 = vpop.f32.mrb[0].mxu0
    %v2564 = vadd.f32 0.0, %v2563
    %v2565 = vpop.f32.mrb[0].mxu0
    %v2566 = vpop.f32.mrb[0].mxu0
    %2567 = vdwg.mxu0
    %2568 = vmatprep.subr.bf16.mxu0 %v166
    %2569 = vmatpush1.bf16.msra.mxu0 %v165
    %2570 = vmatprep.subr.bf16.mxu0 %v170
    %2571 = vmatpush1.bf16.msra.mxu0 %v169
    %2572 = vmatprep.subr.bf16.mxu0 0
    %2573 = vmatpush1.bf16.msra.mxu0 0
    %2574 = vmatprep.subr.bf16.mxu0 0
    %2575 = vmatpush1.bf16.msra.mxu0 0
    %2576 = vmatprep.subr.bf16.mxu0 0
    %2577 = vmatpush1.bf16.msra.mxu0 0
    %2578 = vmatprep.subr.bf16.mxu0 0
    %2579 = vmatpush1.bf16.msra.mxu0 0
    %2580 = vmatprep.subr.bf16.mxu0 0
    %2581 = vmatpush1.bf16.msra.mxu0 0
    %2582 = vmatprep.subr.bf16.mxu0 0
    %2583 = vmatpush1.bf16.msra.mxu0 0
    %2584 = vmatprep.subr.bf16.mxu0 0
    %2585 = vmatpush1.bf16.msra.mxu0 0
    %2586 = vmatprep.subr.bf16.mxu0 0
    %2587 = vmatpush1.bf16.msra.mxu0 0
    %2588 = vmatprep.subr.bf16.mxu0 0
    %2589 = vmatpush1.bf16.msra.mxu0 0
    %2590 = vmatprep.subr.bf16.mxu0 0
    %2591 = vmatpush1.bf16.msra.mxu0 0
    %2592 = vmatprep.subr.bf16.mxu0 0
    %2593 = vmatpush1.bf16.msra.mxu0 0
    %2594 = vmatprep.subr.bf16.mxu0 0
    %2595 = vmatpush1.bf16.msra.mxu0 0
    %2596 = vmatprep.subr.bf16.mxu0 0
    %2597 = vmatpush1.bf16.msra.mxu0 0
    %2598 = vmatprep.subr.bf16.mxu0 0
    %2599 = vmatpush1.bf16.msra.mxu0 0
    %2600 = vmatprep.mubr.bf16.mxu0 0
    %2601 = vmatmul.mubr.bf16.gmra.mrb[0].mxu0 %v2525
    %v2602 = vpop.f32.mrb[0].mxu0
    %v2603 = vadd.f32 0.0, %v2602
    %v2604 = vpop.f32.mrb[0].mxu0
    %v2605 = vadd.f32 0.0, %v2604
    %v2606 = vpop.f32.mrb[0].mxu0
    %v2607 = vpop.f32.mrb[0].mxu0
    %2608 = vdwg.mxu0
    %v2609 = vadd.f32 %v2321, %v2562
    %v2610 = vadd.f32 %v2323, %v2564
    %v2611 = vadd.f32 %v2362, %v2603
    %v2612 = vadd.f32 %v2364, %v2605
    %v2613 = vadd.f32 %v2609, %v121
    %v2614 = vadd.f32 %v2610, %v125
    %v2615 = vadd.f32 %v2611, %v129
    %v2616 = vadd.f32 %v2612, %v133
    %v2617 = vxor.u32 %v2613, 2147483648
    %v2618 = vmul.f32 %v2617, 1.442695
    %v2619 = vpow.pop %v2618
    %v2620 = vadd.f32 %v2619, 1.0
    %v2621 = vrcp.pop %v2620
    %v2622 = vmul.f32 1.0, %v2621
    %v2623 = vxor.u32 %v2614, 2147483648
    %v2624 = vmul.f32 %v2623, 1.442695
    %v2625 = vpow.pop %v2624
    %v2626 = vadd.f32 %v2625, 1.0
    %v2627 = vrcp.pop %v2626
    %v2628 = vmul.f32 1.0, %v2627
    %v2629 = vtanh.pop %v2615
    %v2630 = vxor.u32 %v2616, 2147483648
    %v2631 = vmul.f32 %v2630, 1.442695
    %v2632 = vpow.pop %v2631
    %v2633 = vadd.f32 %v2632, 1.0
    %v2634 = vrcp.pop %v2633
    %v2635 = vmul.f32 1.0, %v2634
    %v2636 = vmul.f32 %v2628, %v2282
    %v2637 = vmul.f32 %v2622, %v2629
    %v2638 = vadd.f32 %v2636, %v2637
    %v2639 = vtanh.pop %v2638
    %v2640 = vmul.f32 %v2635, %v2639
    %v2641 = vpack.c.bf16 %v2640, %v2640
    %2642 = vmatprep.subr.bf16.mxu0 %v419
    %2643 = vmatpush1.bf16.msra.mxu0 %v418
    %2644 = vmatprep.subr.bf16.mxu0 %v424
    %2645 = vmatpush1.bf16.msra.mxu0 %v423
    %2646 = vmatprep.subr.bf16.mxu0 %v429
    %2647 = vmatpush1.bf16.msra.mxu0 %v428
    %2648 = vmatprep.subr.bf16.mxu0 %v434
    %2649 = vmatpush1.bf16.msra.mxu0 %v433
    %2650 = vmatprep.subr.bf16.mxu0 %v439
    %2651 = vmatpush1.bf16.msra.mxu0 %v438
    %2652 = vmatprep.subr.bf16.mxu0 %v444
    %2653 = vmatpush1.bf16.msra.mxu0 %v443
    %2654 = vmatprep.subr.bf16.mxu0 %v449
    %2655 = vmatpush1.bf16.msra.mxu0 %v448
    %2656 = vmatprep.subr.bf16.mxu0 %v454
    %2657 = vmatpush1.bf16.msra.mxu0 %v453
    %2658 = vmatprep.subr.bf16.mxu0 0
    %2659 = vmatpush1.bf16.msra.mxu0 0
    %2660 = vmatprep.subr.bf16.mxu0 0
    %2661 = vmatpush1.bf16.msra.mxu0 0
    %2662 = vmatprep.subr.bf16.mxu0 0
    %2663 = vmatpush1.bf16.msra.mxu0 0
    %2664 = vmatprep.subr.bf16.mxu0 0
    %2665 = vmatpush1.bf16.msra.mxu0 0
    %2666 = vmatprep.subr.bf16.mxu0 0
    %2667 = vmatpush1.bf16.msra.mxu0 0
    %2668 = vmatprep.subr.bf16.mxu0 0
    %2669 = vmatpush1.bf16.msra.mxu0 0
    %2670 = vmatprep.subr.bf16.mxu0 0
    %2671 = vmatpush1.bf16.msra.mxu0 0
    %2672 = vmatprep.subr.bf16.mxu0 0
    %2673 = vmatpush1.bf16.msra.mxu0 0
    %2674 = vmatprep.mubr.bf16.mxu0 0
    %2675 = vmatmul.mubr.bf16.gmra.mrb[0].mxu0 %v2641
    %v2676 = vpop.f32.mrb[0].mxu0
    %v2677 = vadd.f32 0.0, %v2676
    %v2678 = vpop.f32.mrb[0].mxu0
    %v2679 = vadd.f32 0.0, %v2678
    %v2680 = vpop.f32.mrb[0].mxu0
    %v2681 = vpop.f32.mrb[0].mxu0
    %2682 = vdwg.mxu0
    %2683 = vmatprep.subr.bf16.mxu0 %v421
    %2684 = vmatpush1.bf16.msra.mxu0 %v420
    %2685 = vmatprep.subr.bf16.mxu0 %v426
    %2686 = vmatpush1.bf16.msra.mxu0 %v425
    %2687 = vmatprep.subr.bf16.mxu0 %v431
    %2688 = vmatpush1.bf16.msra.mxu0 %v430
    %2689 = vmatprep.subr.bf16.mxu0 %v436
    %2690 = vmatpush1.bf16.msra.mxu0 %v435
    %2691 = vmatprep.subr.bf16.mxu0 %v441
    %2692 = vmatpush1.bf16.msra.mxu0 %v440
    %2693 = vmatprep.subr.bf16.mxu0 %v446
    %2694 = vmatpush1.bf16.msra.mxu0 %v445
    %2695 = vmatprep.subr.bf16.mxu0 %v451
    %2696 = vmatpush1.bf16.msra.mxu0 %v450
    %2697 = vmatprep.subr.bf16.mxu0 %v456
    %2698 = vmatpush1.bf16.msra.mxu0 %v455
    %2699 = vmatprep.subr.bf16.mxu0 0
    %2700 = vmatpush1.bf16.msra.mxu0 0
    %2701 = vmatprep.subr.bf16.mxu0 0
    %2702 = vmatpush1.bf16.msra.mxu0 0
    %2703 = vmatprep.subr.bf16.mxu0 0
    %2704 = vmatpush1.bf16.msra.mxu0 0
    %2705 = vmatprep.subr.bf16.mxu0 0
    %2706 = vmatpush1.bf16.msra.mxu0 0
    %2707 = vmatprep.subr.bf16.mxu0 0
    %2708 = vmatpush1.bf16.msra.mxu0 0
    %2709 = vmatprep.subr.bf16.mxu0 0
    %2710 = vmatpush1.bf16.msra.mxu0 0
    %2711 = vmatprep.subr.bf16.mxu0 0
    %2712 = vmatpush1.bf16.msra.mxu0 0
    %2713 = vmatprep.subr.bf16.mxu0 0
    %2714 = vmatpush1.bf16.msra.mxu0 0
    %2715 = vmatprep.mubr.bf16.mxu0 0
    %2716 = vmatmul.mubr.bf16.gmra.mrb[0].mxu0 %v2641
    %v2717 = vpop.f32.mrb[0].mxu0
    %v2718 = vadd.f32 0.0, %v2717
    %v2719 = vpop.f32.mrb[0].mxu0
    %v2720 = vadd.f32 0.0, %v2719
    %v2721 = vpop.f32.mrb[0].mxu0
    %v2722 = vpop.f32.mrb[0].mxu0
    %2723 = vdwg.mxu0
    %2724 = vmatprep.subr.bf16.mxu0 0
    %2725 = vmatpush1.bf16.msra.mxu0 %v422
    %2726 = vmatprep.subr.bf16.mxu0 0
    %2727 = vmatpush1.bf16.msra.mxu0 %v427
    %2728 = vmatprep.subr.bf16.mxu0 0
    %2729 = vmatpush1.bf16.msra.mxu0 %v432
    %2730 = vmatprep.subr.bf16.mxu0 0
    %2731 = vmatpush1.bf16.msra.mxu0 %v437
    %2732 = vmatprep.subr.bf16.mxu0 0
    %2733 = vmatpush1.bf16.msra.mxu0 %v442
    %2734 = vmatprep.subr.bf16.mxu0 0
    %2735 = vmatpush1.bf16.msra.mxu0 %v447
    %2736 = vmatprep.subr.bf16.mxu0 0
    %2737 = vmatpush1.bf16.msra.mxu0 %v452
    %2738 = vmatprep.subr.bf16.mxu0 0
    %2739 = vmatpush1.bf16.msra.mxu0 %v457
    %2740 = vmatprep.subr.bf16.mxu0 0
    %2741 = vmatpush1.bf16.msra.mxu0 0
    %2742 = vmatprep.subr.bf16.mxu0 0
    %2743 = vmatpush1.bf16.msra.mxu0 0
    %2744 = vmatprep.subr.bf16.mxu0 0
    %2745 = vmatpush1.bf16.msra.mxu0 0
    %2746 = vmatprep.subr.bf16.mxu0 0
    %2747 = vmatpush1.bf16.msra.mxu0 0
    %2748 = vmatprep.subr.bf16.mxu0 0
    %2749 = vmatpush1.bf16.msra.mxu0 0
    %2750 = vmatprep.subr.bf16.mxu0 0
    %2751 = vmatpush1.bf16.msra.mxu0 0
    %2752 = vmatprep.subr.bf16.mxu0 0
    %2753 = vmatpush1.bf16.msra.mxu0 0
    %2754 = vmatprep.subr.bf16.mxu0 0
    %2755 = vmatpush1.bf16.msra.mxu0 0
    %2756 = vmatprep.mubr.bf16.mxu0 0
    %2757 = vmatmul.mubr.bf16.gmra.mrb[0].mxu0 %v2641
    %v2758 = vpop.f32.mrb[0].mxu0
    %v2759 = vadd.f32 0.0, %v2758
    %v2760 = vpop.f32.mrb[0].mxu0
    %v2761 = vpop.f32.mrb[0].mxu0
    %v2762 = vpop.f32.mrb[0].mxu0
    %2763 = vdwg.mxu0
    %v2766 = vunpack.c.l.s4 1966171168
    %v2767 = vunpack.c.0.s8 %v2766
    %v2768 = vlaneseq
    %v2769 = vshrl.u32 %v2768, 7
    %v2770 = vsub.s32 %v2767, %v2769
    %v2771 = vrot.slane %v2759, %v2770
    %v2772 = vcombine.high %v2771, %v2771
    %v2774 = vunpack.c.l.s4 1966171168
    %v2775 = vunpack.c.0.s8 %v2774
    %v2776 = vlaneseq
    %v2777 = vshrl.u32 %v2776, 7
    %v2778 = vsub.s32 %v2775, %v2777
    %v2779 = vrot.slane %v2771, %v2778
    %v2781 = vunpack.c.l.s4 1966171168
    %v2782 = vunpack.c.0.s8 %v2781
    %v2783 = vlaneseq
    %v2784 = vshrl.u32 %v2783, 7
    %v2785 = vsub.s32 %v2782, %v2784
    %v2786 = vrot.slane %v2772, %v2785
    %v2787 = vlaneseq
    %v2788 = vshrl.u32 %v2787, 7
    %v2789 = vsub.s32 0, %v2788
    %v2790 = vrot.slane %v2779, %v2789
    %v2791 = vlaneseq
    %v2792 = vshrl.u32 %v2791, 7
    %v2793 = vsub.s32 0, %v2792
    %v2794 = vrot.slane %v2786, %v2793
    %v2797 = vadd.f32 %v56, %v2790
    %v2798 = vadd.f32 %v57, %v2794
    %v2799 = vtanh.pop %v2797
    %v2800 = vtanh.pop %v2798
    %v2801 = vmul.f32 %v2799, %v661
    %v2802 = vmul.f32 %v2800, %v661
    %v2803 = vsel %vm179, %v2801, 0.0
    %2804 = vadd.xlane.f32.xlu0 %v2803
    %v2805 = vpop.xlane.xlu0 %2804
    %v2806 = vsel %vm179, %v2802, 0.0
    %2807 = vadd.xlane.f32.xlu0 %v2806
    %v2808 = vpop.xlane.xlu0 %2807
    %v2809 = vadd.f32 %v2805, %v114
    %v2810 = vadd.f32 %v2808, %v115
    %v2811 = vsel %vm673, %v2809, -inf
    %v2812 = vsel %vm673, %v2810, -inf
    %v2813 = vmax.f32 %v2811, %v2812
    %2814 = vmax.xlane.f32.xlu0 %v2813
    %v2815 = vpop.xlane.xlu0 %2814
    %v2816 = vrot.slane %v2815, 4
    %v2817 = vmax.f32 %v2815, %v2816
    %v2818 = vrot.slane %v2817, 2
    %v2819 = vmax.f32 %v2817, %v2818
    %v2820 = vrot.slane %v2819, 1
    %v2821 = vmax.f32 %v2819, %v2820
    %s2822 = vtos %v2821
    %v2823 = vstv %s2822
    %v2824 = vsub.f32 %v2809, %v2823
    %v2825 = vsub.f32 %v2810, %v2823
    %v2826 = vmul.f32 %v2824, 1.442695
    %v2827 = vpow.pop %v2826
    %v2828 = vmul.f32 %v2825, 1.442695
    %v2829 = vpow.pop %v2828
    %v2830 = vsel %vm673, %v2827, 0.0
    %v2831 = vsel %vm673, %v2829, 0.0
    %v2832 = vadd.f32 %v2830, %v2831
    %2833 = vadd.xlane.f32.xlu0 %v2832
    %v2834 = vpop.xlane.xlu0 %2833
    %v2835 = vrot.slane %v2834, 4
    %v2836 = vadd.f32 %v2834, %v2835
    %v2837 = vrot.slane %v2836, 2
    %v2838 = vadd.f32 %v2836, %v2837
    %v2839 = vrot.slane %v2838, 1
    %v2840 = vadd.f32 %v2838, %v2839
    %s2841 = vtos %v2840
    %v2842 = vstv %s2841
    %v2843 = vrcp.pop %v2842
    %2845 = vset.pattern.permute.xlu0 0
    %2846 = vperm.xlu0 %2845, %v2827
    %v2847 = vpop.permute.xlu0 %2846
    %2850 = vset.pattern.permute.xlu0 0
    %2851 = vperm.xlu0 %2850, %v2829
    %v2852 = vpop.permute.xlu0 %2851
    %v2854 = vmul.f32 %v2847, %v56
    %v2855 = vmul.f32 %v2852, %v57
    %v2856 = vsel %vm179, %v2854, 0.0
    %v2857 = vrot.slane %v2856, 4
    %v2858 = vadd.f32 %v2856, %v2857
    %v2859 = vrot.slane %v2858, 2
    %v2860 = vadd.f32 %v2858, %v2859
    %v2861 = vrot.slane %v2860, 1
    %v2862 = vadd.f32 %v2860, %v2861
    %v2863 = vsel %vm179, %v2855, 0.0
    %v2864 = vrot.slane %v2863, 4
    %v2865 = vadd.f32 %v2863, %v2864
    %v2866 = vrot.slane %v2865, 2
    %v2867 = vadd.f32 %v2865, %v2866
    %v2868 = vrot.slane %v2867, 1
    %v2869 = vadd.f32 %v2867, %v2868
    %v2870 = vmul.f32 %v2862, %v2843
    %v2871 = vmul.f32 %v2869, %v2843
    %v2872 = vpack.c.bf16 %v2870, %v2870
    %v2873 = vpack.c.bf16 %v2871, %v2871
    %v2876 = vunpack.c.l.b16 %v2872
    %v2877 = vunpack.c.l.b16 %v2873
    %v2878 = vsel %vm741, %v2877, %v2876
    %v2879 = vpack.c.b16 %v2878, %v2878
    %v2881 = vsel %vm179, %v2879, 0
    %2883 = vmatprep.subr.bf16.mxu0 %v164
    %2884 = vmatpush1.bf16.msra.mxu0 %v163
    %2885 = vmatprep.subr.bf16.mxu0 %v168
    %2886 = vmatpush1.bf16.msra.mxu0 %v167
    %2887 = vmatprep.subr.bf16.mxu0 0
    %2888 = vmatpush1.bf16.msra.mxu0 0
    %2889 = vmatprep.subr.bf16.mxu0 0
    %2890 = vmatpush1.bf16.msra.mxu0 0
    %2891 = vmatprep.subr.bf16.mxu0 0
    %2892 = vmatpush1.bf16.msra.mxu0 0
    %2893 = vmatprep.subr.bf16.mxu0 0
    %2894 = vmatpush1.bf16.msra.mxu0 0
    %2895 = vmatprep.subr.bf16.mxu0 0
    %2896 = vmatpush1.bf16.msra.mxu0 0
    %2897 = vmatprep.subr.bf16.mxu0 0
    %2898 = vmatpush1.bf16.msra.mxu0 0
    %2899 = vmatprep.subr.bf16.mxu0 0
    %2900 = vmatpush1.bf16.msra.mxu0 0
    %2901 = vmatprep.subr.bf16.mxu0 0
    %2902 = vmatpush1.bf16.msra.mxu0 0
    %2903 = vmatprep.subr.bf16.mxu0 0
    %2904 = vmatpush1.bf16.msra.mxu0 0
    %2905 = vmatprep.subr.bf16.mxu0 0
    %2906 = vmatpush1.bf16.msra.mxu0 0
    %2907 = vmatprep.subr.bf16.mxu0 0
    %2908 = vmatpush1.bf16.msra.mxu0 0
    %2909 = vmatprep.subr.bf16.mxu0 0
    %2910 = vmatpush1.bf16.msra.mxu0 0
    %2911 = vmatprep.subr.bf16.mxu0 0
    %2912 = vmatpush1.bf16.msra.mxu0 0
    %2913 = vmatprep.subr.bf16.mxu0 0
    %2914 = vmatpush1.bf16.msra.mxu0 0
    %2915 = vmatprep.mubr.bf16.mxu0 0
    %2916 = vmatmul.mubr.bf16.gmra.mrb[0].mxu0 %v2881
    %v2917 = vpop.f32.mrb[0].mxu0
    %v2918 = vadd.f32 0.0, %v2917
    %v2919 = vpop.f32.mrb[0].mxu0
    %v2920 = vadd.f32 0.0, %v2919
    %v2921 = vpop.f32.mrb[0].mxu0
    %v2922 = vpop.f32.mrb[0].mxu0
    %2923 = vdwg.mxu0
    %2924 = vmatprep.subr.bf16.mxu0 %v166
    %2925 = vmatpush1.bf16.msra.mxu0 %v165
    %2926 = vmatprep.subr.bf16.mxu0 %v170
    %2927 = vmatpush1.bf16.msra.mxu0 %v169
    %2928 = vmatprep.subr.bf16.mxu0 0
    %2929 = vmatpush1.bf16.msra.mxu0 0
    %2930 = vmatprep.subr.bf16.mxu0 0
    %2931 = vmatpush1.bf16.msra.mxu0 0
    %2932 = vmatprep.subr.bf16.mxu0 0
    %2933 = vmatpush1.bf16.msra.mxu0 0
    %2934 = vmatprep.subr.bf16.mxu0 0
    %2935 = vmatpush1.bf16.msra.mxu0 0
    %2936 = vmatprep.subr.bf16.mxu0 0
    %2937 = vmatpush1.bf16.msra.mxu0 0
    %2938 = vmatprep.subr.bf16.mxu0 0
    %2939 = vmatpush1.bf16.msra.mxu0 0
    %2940 = vmatprep.subr.bf16.mxu0 0
    %2941 = vmatpush1.bf16.msra.mxu0 0
    %2942 = vmatprep.subr.bf16.mxu0 0
    %2943 = vmatpush1.bf16.msra.mxu0 0
    %2944 = vmatprep.subr.bf16.mxu0 0
    %2945 = vmatpush1.bf16.msra.mxu0 0
    %2946 = vmatprep.subr.bf16.mxu0 0
    %2947 = vmatpush1.bf16.msra.mxu0 0
    %2948 = vmatprep.subr.bf16.mxu0 0
    %2949 = vmatpush1.bf16.msra.mxu0 0
    %2950 = vmatprep.subr.bf16.mxu0 0
    %2951 = vmatpush1.bf16.msra.mxu0 0
    %2952 = vmatprep.subr.bf16.mxu0 0
    %2953 = vmatpush1.bf16.msra.mxu0 0
    %2954 = vmatprep.subr.bf16.mxu0 0
    %2955 = vmatpush1.bf16.msra.mxu0 0
    %2956 = vmatprep.mubr.bf16.mxu0 0
    %2957 = vmatmul.mubr.bf16.gmra.mrb[0].mxu0 %v2881
    %v2958 = vpop.f32.mrb[0].mxu0
    %v2959 = vadd.f32 0.0, %v2958
    %v2960 = vpop.f32.mrb[0].mxu0
    %v2961 = vadd.f32 0.0, %v2960
    %v2962 = vpop.f32.mrb[0].mxu0
    %v2963 = vpop.f32.mrb[0].mxu0
    %2964 = vdwg.mxu0
    %v2965 = vadd.f32 %v2677, %v2918
    %v2966 = vadd.f32 %v2679, %v2920
    %v2967 = vadd.f32 %v2718, %v2959
    %v2968 = vadd.f32 %v2720, %v2961
    %v2969 = vadd.f32 %v2965, %v121
    %v2970 = vadd.f32 %v2966, %v125
    %v2971 = vadd.f32 %v2967, %v129
    %v2972 = vadd.f32 %v2968, %v133
    %v2973 = vxor.u32 %v2969, 2147483648
    %v2974 = vmul.f32 %v2973, 1.442695
    %v2975 = vpow.pop %v2974
    %v2976 = vadd.f32 %v2975, 1.0
    %v2977 = vrcp.pop %v2976
    %v2978 = vmul.f32 1.0, %v2977
    %v2979 = vxor.u32 %v2970, 2147483648
    %v2980 = vmul.f32 %v2979, 1.442695
    %v2981 = vpow.pop %v2980
    %v2982 = vadd.f32 %v2981, 1.0
    %v2983 = vrcp.pop %v2982
    %v2984 = vmul.f32 1.0, %v2983
    %v2985 = vtanh.pop %v2971
    %v2986 = vxor.u32 %v2972, 2147483648
    %v2987 = vmul.f32 %v2986, 1.442695
    %v2988 = vpow.pop %v2987
    %v2989 = vadd.f32 %v2988, 1.0
    %v2990 = vrcp.pop %v2989
    %v2991 = vmul.f32 1.0, %v2990
    %v2992 = vmul.f32 %v2984, %v2638
    %v2993 = vmul.f32 %v2978, %v2985
    %v2994 = vadd.f32 %v2992, %v2993
    %v2995 = vtanh.pop %v2994
    %v2996 = vmul.f32 %v2991, %v2995
    %v2997 = vpack.c.bf16 %v2996, %v2996
    %2998 = vmatprep.subr.bf16.mxu0 0
    %2999 = vmatpush1.bf16.msra.mxu0 %v422
    %3000 = vmatprep.subr.bf16.mxu0 0
    %3001 = vmatpush1.bf16.msra.mxu0 %v427
    %3002 = vmatprep.subr.bf16.mxu0 0
    %3003 = vmatpush1.bf16.msra.mxu0 %v432
    %3004 = vmatprep.subr.bf16.mxu0 0
    %3005 = vmatpush1.bf16.msra.mxu0 %v437
    %3006 = vmatprep.subr.bf16.mxu0 0
    %3007 = vmatpush1.bf16.msra.mxu0 %v442
    %3008 = vmatprep.subr.bf16.mxu0 0
    %3009 = vmatpush1.bf16.msra.mxu0 %v447
    %3010 = vmatprep.subr.bf16.mxu0 0
    %3011 = vmatpush1.bf16.msra.mxu0 %v452
    %3012 = vmatprep.subr.bf16.mxu0 0
    %3013 = vmatpush1.bf16.msra.mxu0 %v457
    %3014 = vmatprep.subr.bf16.mxu0 0
    %3015 = vmatpush1.bf16.msra.mxu0 0
    %3016 = vmatprep.subr.bf16.mxu0 0
    %3017 = vmatpush1.bf16.msra.mxu0 0
    %3018 = vmatprep.subr.bf16.mxu0 0
    %3019 = vmatpush1.bf16.msra.mxu0 0
    %3020 = vmatprep.subr.bf16.mxu0 0
    %3021 = vmatpush1.bf16.msra.mxu0 0
    %3022 = vmatprep.subr.bf16.mxu0 0
    %3023 = vmatpush1.bf16.msra.mxu0 0
    %3024 = vmatprep.subr.bf16.mxu0 0
    %3025 = vmatpush1.bf16.msra.mxu0 0
    %3026 = vmatprep.subr.bf16.mxu0 0
    %3027 = vmatpush1.bf16.msra.mxu0 0
    %3028 = vmatprep.subr.bf16.mxu0 0
    %3029 = vmatpush1.bf16.msra.mxu0 0
    %3030 = vmatprep.mubr.bf16.mxu0 0
    %3031 = vmatmul.mubr.bf16.gmra.mrb[0].mxu0 %v2997
    %v3032 = vpop.f32.mrb[0].mxu0
    %v3033 = vadd.f32 0.0, %v3032
    %v3034 = vpop.f32.mrb[0].mxu0
    %v3035 = vpop.f32.mrb[0].mxu0
    %v3036 = vpop.f32.mrb[0].mxu0
    %3037 = vdwg.mxu0
    %v3040 = vunpack.c.l.s4 1966171168
    %v3041 = vunpack.c.0.s8 %v3040
    %v3042 = vlaneseq
    %v3043 = vshrl.u32 %v3042, 7
    %v3044 = vsub.s32 %v3041, %v3043
    %v3045 = vrot.slane %v3033, %v3044
    %v3046 = vcombine.high %v3045, %v3045
    %v3048 = vunpack.c.l.s4 1966171168
    %v3049 = vunpack.c.0.s8 %v3048
    %v3050 = vlaneseq
    %v3051 = vshrl.u32 %v3050, 7
    %v3052 = vsub.s32 %v3049, %v3051
    %v3053 = vrot.slane %v3045, %v3052
    %v3055 = vunpack.c.l.s4 1966171168
    %v3056 = vunpack.c.0.s8 %v3055
    %v3057 = vlaneseq
    %v3058 = vshrl.u32 %v3057, 7
    %v3059 = vsub.s32 %v3056, %v3058
    %v3060 = vrot.slane %v3046, %v3059
    %v3061 = vlaneseq
    %v3062 = vshrl.u32 %v3061, 7
    %v3063 = vsub.s32 0, %v3062
    %v3064 = vrot.slane %v3053, %v3063
    %v3065 = vlaneseq
    %v3066 = vshrl.u32 %v3065, 7
    %v3067 = vsub.s32 0, %v3066
    %v3068 = vrot.slane %v3060, %v3067
    %v3071 = vadd.f32 %v56, %v3064
    %v3072 = vadd.f32 %v57, %v3068
    %v3073 = vtanh.pop %v3071
    %v3074 = vtanh.pop %v3072
    %v3075 = vmul.f32 %v3073, %v661
    %v3076 = vmul.f32 %v3074, %v661
    %v3077 = vsel %vm179, %v3075, 0.0
    %3078 = vadd.xlane.f32.xlu0 %v3077
    %v3079 = vpop.xlane.xlu0 %3078
    %v3080 = vsel %vm179, %v3076, 0.0
    %3081 = vadd.xlane.f32.xlu0 %v3080
    %v3082 = vpop.xlane.xlu0 %3081
    %v3083 = vadd.f32 %v3079, %v114
    %v3084 = vadd.f32 %v3082, %v115
    %v3085 = vsel %vm673, %v3083, -inf
    %v3086 = vsel %vm673, %v3084, -inf
    %v3087 = vmax.f32 %v3085, %v3086
    %3088 = vmax.xlane.f32.xlu0 %v3087
    %v3089 = vpop.xlane.xlu0 %3088
    %v3090 = vrot.slane %v3089, 4
    %v3091 = vmax.f32 %v3089, %v3090
    %v3092 = vrot.slane %v3091, 2
    %v3093 = vmax.f32 %v3091, %v3092
    %v3094 = vrot.slane %v3093, 1
    %v3095 = vmax.f32 %v3093, %v3094
    %s3096 = vtos %v3095
    %v3097 = vstv %s3096
    %v3098 = vsub.f32 %v3083, %v3097
    %v3099 = vsub.f32 %v3084, %v3097
    %v3100 = vmul.f32 %v3098, 1.442695
    %v3101 = vpow.pop %v3100
    %v3102 = vmul.f32 %v3099, 1.442695
    %v3103 = vpow.pop %v3102
    %v3104 = vsel %vm673, %v3101, 0.0
    %v3105 = vsel %vm673, %v3103, 0.0
    %v3106 = vadd.f32 %v3104, %v3105
    %3107 = vadd.xlane.f32.xlu0 %v3106
    %v3108 = vpop.xlane.xlu0 %3107
    %v3109 = vrot.slane %v3108, 4
    %v3110 = vadd.f32 %v3108, %v3109
    %v3111 = vrot.slane %v3110, 2
    %v3112 = vadd.f32 %v3110, %v3111
    %v3113 = vrot.slane %v3112, 1
    %v3114 = vadd.f32 %v3112, %v3113
    %s3115 = vtos %v3114
    %v3116 = vstv %s3115
    %v3117 = vrcp.pop %v3116
    %3119 = vset.pattern.permute.xlu0 0
    %3120 = vperm.xlu0 %3119, %v3101
    %v3121 = vpop.permute.xlu0 %3120
    %3124 = vset.pattern.permute.xlu0 0
    %3125 = vperm.xlu0 %3124, %v3103
    %v3126 = vpop.permute.xlu0 %3125
    %v3128 = vmul.f32 %v3121, %v56
    %v3129 = vmul.f32 %v3126, %v57
    %v3130 = vsel %vm179, %v3128, 0.0
    %v3131 = vrot.slane %v3130, 4
    %v3132 = vadd.f32 %v3130, %v3131
    %v3133 = vrot.slane %v3132, 2
    %v3134 = vadd.f32 %v3132, %v3133
    %v3135 = vrot.slane %v3134, 1
    %v3136 = vadd.f32 %v3134, %v3135
    %v3137 = vsel %vm179, %v3129, 0.0
    %v3138 = vrot.slane %v3137, 4
    %v3139 = vadd.f32 %v3137, %v3138
    %v3140 = vrot.slane %v3139, 2
    %v3141 = vadd.f32 %v3139, %v3140
    %v3142 = vrot.slane %v3141, 1
    %v3143 = vadd.f32 %v3141, %v3142
    %v3144 = vmul.f32 %v3136, %v3117
    %v3145 = vmul.f32 %v3143, %v3117
    %vm3146 = vcmask 254976
    %3147 = vst.msk [vmem:[#allocation7] sm:$0x3] %vm3146, %v2996
    %v3150 = vsel %vm741, %v3145, %v3144
    %3152 = vst.msk [vmem:[#allocation8] sm:$0x3] %vm3146, %v3150
    // Predicated region
    $region34: #{tpu_custom_call.1} parent=1 // pred_check
      _
    $region35: #{tpu_custom_call.1} parent=1 // pred_check_branch
      %3154 = sbr.rel (0) target = $region37
    $region36: #{tpu_custom_call.1} parent=1 // pred_region
      %s3156 = ssub.s32 32, 32
      %3157 = vsyncadd [#allocation4], %s3156
      %s3159 = sshll.u32 [#allocation7], 4
      %s3160 = int_to_ptr.vmem [resolvable:$true] %s3159
      %3162 = dma.vmem_to_hbm [thread:$0]  %s3160, 32, %s6, [#allocation4]
    $region37: #{tpu_custom_call.1} parent=1 // pred_fallthru
      _
    // Predicated region
    $region38: #{tpu_custom_call.1} parent=1 // pred_check
      _
    $region39: #{tpu_custom_call.1} parent=1 // pred_check_branch
      %3164 = sbr.rel (0) target = $region41
    $region40: #{tpu_custom_call.1} parent=1 // pred_region
      %s3166 = ssub.s32 32, 32
      %3167 = vsyncadd [#allocation9], %s3166
      %s3169 = sshll.u32 [#allocation8], 4
      %s3170 = int_to_ptr.vmem [resolvable:$true] %s3169
      %3172 = dma.vmem_to_hbm [thread:$0]  %s3170, 32, %s7, [#allocation9]
    $region41: #{tpu_custom_call.1} parent=1 // pred_fallthru
      _
    // Predicated region
    $region42: #{tpu_custom_call.1} parent=1 // pred_check
      _
    $region43: #{tpu_custom_call.1} parent=1 // pred_check_branch
      %3174 = sbr.rel (0) target = $region45
    $region44: #{tpu_custom_call.1} parent=1 // pred_region
      %3175 = dma.done [#allocation4], 32
    $region45: #{tpu_custom_call.1} parent=1 // pred_fallthru
      _
    // Predicated region
    $region46: #{tpu_custom_call.1} parent=1 // pred_check
      _
    $region47: #{tpu_custom_call.1} parent=1 // pred_check_branch
      %3177 = sbr.rel (0) target = $region49
    $region48: #{tpu_custom_call.1} parent=1 // pred_region
      %3178 = dma.done [#allocation9], 32
    $region49: #{tpu_custom_call.1} parent=1 // pred_fallthru
      _
    %3179 = vsyncpa [#allocation3], 1
    %3180 = vsyncpa [#allocation6], 1
    %3181 = vsyncpa [#allocation4], 1
    %3182 = vsyncpa [#allocation9], 1

</llo_original>
